<compile_context>
chip_gen: v6e
topology: v6e:2x2x1
jax: 0.10.0
libtpu: 0.0.40
codegen_flags: <defaults>
</compile_context>

<pallas_src>
import math

import jax
import jax.numpy as jnp
from jax.experimental import pallas as pl
from jax.experimental.pallas import tpu as pltpu


# ---------------------------------------------------------------------------
# Fused kernel: GraphWaveletTransform (enc+dec) per metapath + semantic attn
# ---------------------------------------------------------------------------
def dv_encoder_kernel(gid_ref, loc_ref, last_ref,            # scalar prefetch
                      a_ref, x_ref, w_ref, bias_ref, alpha_ref,
                      wa_ref, ba_ref, att_ref,                # inputs
                      o_enc_ref, o_dec_ref,                   # outputs
                      e_sc, sp_sc):                           # VMEM scratch
    del gid_ref  # only used inside index_maps
    f = pl.program_id(0)
    loc = loc_ref[f]                    # slot within the current encoder group
    D = x_ref.shape[1]

    def mm(u, v):
        return jnp.dot(u, v, preferred_element_type=jnp.float32)

    A = a_ref[...]                      # (N, N) bf16 dense propagation matrix
    x = x_ref[...]                      # (N, D) bf16, resident across the grid

    # 4-matmul diffusion chain.  The reference's second-order propagations are
    # exactly these powers (A@x1==x2, A@A@x1==x3, A@x2==x3, A@A@x2==x4).
    x1 = mm(A, x)
    x2 = mm(A, x1.astype(jnp.bfloat16))
    x3 = mm(A, x2.astype(jnp.bfloat16))
    x4 = mm(A, x3.astype(jnp.bfloat16))

    # Reference feature order: [x4,|x1-x2|,|x2-x4|,|x2-x1|,|x3-x2|,|x4-x3|].
    # |x1-x2| == |x2-x1|: its two fc weight blocks were folded in the wrapper.
    feats = jnp.concatenate(
        [x4, jnp.abs(x1 - x2), jnp.abs(x2 - x4),
         jnp.abs(x3 - x2), jnp.abs(x4 - x3)], axis=1).astype(jnp.bfloat16)

    # Shared-chain fc for BOTH branches: (N,5D)@(5D,2D); enc in columns [:D],
    # dec in columns [D:].  bf16 MXU operands, f32 accumulation.
    out = mm(feats, w_ref[...]) + bias_ref[f]                 # (N, 2D) f32
    e = jnp.where(out > 0.0, out, out * alpha_ref[f])         # per-branch PReLU
    e_sc[loc] = e

    # Semantic-attention statistics: block-diagonal (2D,2D) projection handles
    # enc and dec together in one MXU-wide matmul.
    proj = jnp.tanh(mm(e.astype(jnp.bfloat16), wa_ref[...]) + ba_ref[...])
    sp_sc[loc] = jnp.mean(proj, axis=0, keepdims=True)        # (1, 2D)

    # ---- fused semantic-attention epilogue on the group's last metapath ----
    @pl.when(last_ref[f] == 1)
    def _():
        p_max = sp_sc.shape[0]
        n_valid = loc + 1                                     # = P of this group
        mask = jax.lax.broadcasted_iota(jnp.int32, (p_max, 1), 0) < n_valid

        s_full = sp_sc[...] * att_ref[...]                    # (P_max, 1, 2D)
        s_e = jnp.sum(s_full[:, :, :D], axis=2)               # (P_max, 1)
        s_d = jnp.sum(s_full[:, :, D:], axis=2)               # (P_max, 1)

        def masked_softmax(s):
            m = jnp.max(jnp.where(mask, s, -jnp.inf), axis=0, keepdims=True)
            ex = jnp.where(mask, jnp.exp(s - m), 0.0)
            inv = pl.reciprocal(jnp.sum(ex, axis=0, keepdims=True), approx=True)
            return ex * inv                                    # (P_max, 1)

        w_e = masked_softmax(s_e).reshape(p_max, 1, 1)
        w_d = masked_softmax(s_d).reshape(p_max, 1, 1)
        m3 = mask.reshape(p_max, 1, 1)

        emb = e_sc[...]                                        # (P_max, N, 2D)
        o_enc_ref[...] = jnp.sum(jnp.where(m3, w_e * emb[:, :, :D], 0.0), axis=0)
        o_dec_ref[...] = jnp.sum(jnp.where(m3, w_d * emb[:, :, D:], 0.0), axis=0)


# ---------------------------------------------------------------------------
# Wrapper: flatten all (key, metapath) pairs into one gridded pallas_call
# ---------------------------------------------------------------------------
def _fold_fc_weight(Wt, D):
    """fc.weight.T is (6D, D); feature blocks 1 and 3 are both |x1 - x2|,
    so fold their weight blocks -> (5D, D)."""
    blk = [Wt[i * D:(i + 1) * D, :] for i in range(6)]
    return jnp.concatenate([blk[0], blk[1] + blk[3], blk[2], blk[4], blk[5]],
                           axis=0)


def _fused_dv_encoders(params, x, mps_dict, keys):
    N, D = x.shape
    K = len(keys)
    zDD = jnp.zeros((D, D), jnp.float32)

    A_l, Wf_l, b_l, a_l = [], [], [], []
    gid_l, loc_l, last_l = [], [], []
    Wa_l, ba_l, att_l = [], [], []

    for g, k in enumerate(keys):
        adjs = mps_dict[k]
        pe, pd = params["enc"][k], params["dec"][k]
        P = len(adjs)
        for p in range(P):
            A_l.append(adjs[p].astype(jnp.bfloat16))
            Wf_l.append(jnp.concatenate(
                [_fold_fc_weight(pe["gwt"][p]["Wt"], D),
                 _fold_fc_weight(pd["gwt"][p]["Wt"], D)],
                axis=1).astype(jnp.bfloat16))                       # (5D, 2D)
            b_l.append(jnp.concatenate(
                [pe["gwt"][p]["bias"], pd["gwt"][p]["bias"]], axis=1))
            a_l.append(jnp.concatenate(
                [jnp.broadcast_to(pe["gwt"][p]["alpha"], (1, D)),
                 jnp.broadcast_to(pd["gwt"][p]["alpha"], (1, D))], axis=1))
            gid_l.append(g)
            loc_l.append(p)
            last_l.append(1 if p == P - 1 else 0)
        ae, ad = pe["attn"], pd["attn"]
        Wa_l.append(jnp.concatenate(                                 # block-diag
            [jnp.concatenate([ae["Wa_t"], zDD], axis=1),
             jnp.concatenate([zDD, ad["Wa_t"]], axis=1)],
            axis=0).astype(jnp.bfloat16))                            # (2D, 2D)
        ba_l.append(jnp.concatenate([ae["ba"], ad["ba"]], axis=1))   # (1, 2D)
        att_l.append(jnp.concatenate([ae["att"], ad["att"]], axis=1))

    total_P = len(A_l)
    P_max = max(len(mps_dict[k]) for k in keys)

    A_all = jnp.stack(A_l)                     # (total_P, N, N)    bf16
    Wf_all = jnp.stack(Wf_l)                   # (total_P, 5D, 2D)  bf16
    bias_all = jnp.stack(b_l)                  # (total_P, 1, 2D)   f32
    alpha_all = jnp.stack(a_l)                 # (total_P, 1, 2D)   f32
    Wa_all = jnp.stack(Wa_l)                   # (K, 2D, 2D)        bf16
    ba_all = jnp.stack(ba_l)                   # (K, 1, 2D)         f32
    att_all = jnp.stack(att_l)                 # (K, 1, 2D)         f32
    gid = jnp.asarray(gid_l, jnp.int32)
    loc = jnp.asarray(loc_l, jnp.int32)
    last = jnp.asarray(last_l, jnp.int32)
    x_bf = x.astype(jnp.bfloat16)

    # VMEM budget: double-buffered streamed blocks + resident tensors +
    # chain/feature temporaries, 2x headroom, capped at the v7x 64 MiB ceiling.
    budget = (2 * N * N * 2 + 2 * 5 * D * 2 * D * 2 + 2 * 2 * D * 2 * D * 2
              + N * D * 2 + 4 * total_P * 2 * D * 4
              + 2 * 2 * N * D * 4
              + P_max * N * 2 * D * 4 + P_max * 2 * D * 4
              + 16 * N * D * 4)
    vmem_limit = int(min(64 * 2 ** 20, max(16 * 2 ** 20, 2 * budget)))

    grid_spec = pltpu.PrefetchScalarGridSpec(
        num_scalar_prefetch=3,                 # gid, loc, last (SMEM)
        grid=(total_P,),
        in_specs=[
            pl.BlockSpec((None, N, N), lambda f, g, l, la: (f, 0, 0)),         # A
            pl.BlockSpec((N, D), lambda f, g, l, la: (0, 0)),                  # x
            pl.BlockSpec((None, 5 * D, 2 * D), lambda f, g, l, la: (f, 0, 0)), # fc W
            pl.BlockSpec((total_P, 1, 2 * D), lambda f, g, l, la: (0, 0, 0)),  # bias
            pl.BlockSpec((total_P, 1, 2 * D), lambda f, g, l, la: (0, 0, 0)),  # alpha
            pl.BlockSpec((None, 2 * D, 2 * D), lambda f, g, l, la: (g[f], 0, 0)),
            pl.BlockSpec((None, 1, 2 * D), lambda f, g, l, la: (g[f], 0, 0)),
            pl.BlockSpec((None, 1, 2 * D), lambda f, g, l, la: (g[f], 0, 0)),
        ],
        out_specs=(
            pl.BlockSpec((N, D), lambda f, g, l, la: (0, g[f])),    # enc cols
            pl.BlockSpec((N, D), lambda f, g, l, la: (0, g[f])),    # dec cols
        ),
        scratch_shapes=[
            pltpu.VMEM((P_max, N, 2 * D), jnp.float32),   # per-view embeddings
            pltpu.VMEM((P_max, 1, 2 * D), jnp.float32),   # per-view proj means
        ],
    )
    enc_full, dec_full = pl.pallas_call(
        dv_encoder_kernel,
        out_shape=(jax.ShapeDtypeStruct((N, K * D), jnp.float32),
                   jax.ShapeDtypeStruct((N, K * D), jnp.float32)),
        grid_spec=grid_spec,
        # Scratch accumulation + fused attention epilogue carry across the
        # flat metapath axis, hence sequential ("arbitrary").
        compiler_params=pltpu.CompilerParams(
            dimension_semantics=("arbitrary",),
            vmem_limit_bytes=vmem_limit),
    )(gid, loc, last, A_all, x_bf, Wf_all, bias_all, alpha_all,
      Wa_all, ba_all, att_all)
    return enc_full, dec_full


def main_model_forward(params, x, mps_dict):
    keys = list(mps_dict.keys())
    N, D = x.shape
    active = [k for k in keys if len(mps_dict[k]) > 0]
    enc_full = dec_full = None
    if active:
        enc_full, dec_full = _fused_dv_encoders(params, x, mps_dict, active)
    if len(active) == len(keys):
        return jnp.concatenate([enc_full, dec_full], axis=1)
    # Rare path: DVEncoder with P == 0 is the identity on x.
    cols_e, cols_d, ai = [], [], 0
    for k in keys:
        if len(mps_dict[k]) == 0:
            cols_e.append(x)
            cols_d.append(x)
        else:
            cols_e.append(enc_full[:, ai * D:(ai + 1) * D])
            cols_d.append(dec_full[:, ai * D:(ai + 1) * D])
            ai += 1
    return jnp.concatenate(cols_e + cols_d, axis=1)


# ---------------------------------------------------------------------------
# Deterministic parameter initialization (mirrors module __init__ shapes)
# ---------------------------------------------------------------------------
def init_gwt(key, d, J=3):
    total_dim = d * (1 + (J - 1) + J * (J - 1) // 2)          # 6*d for J=3
    std = 1.414 * math.sqrt(2.0 / (total_dim + d))            # xavier_normal_
    Wt = std * jax.random.normal(key, (total_dim, d), jnp.float32)   # fc.weight.T
    bias = jnp.zeros((1, d), jnp.float32)
    alpha = jnp.full((1, 1), 0.25, jnp.float32)               # PReLU default
    return {"Wt": Wt, "bias": bias, "alpha": alpha}


def init_attn(key, d):
    # TODO(synk): SemanticsAttention source was not provided; standard
    # HAN/HeCo-style semantic attention; attn_drop is identity at inference.
    k1, k2, k3 = jax.random.split(key, 3)
    bound = 1.0 / math.sqrt(d)
    Wa_t = jax.random.uniform(k1, (d, d), jnp.float32, -bound, bound)
    ba = jax.random.uniform(k2, (1, d), jnp.float32, -bound, bound)
    std = 1.414 * math.sqrt(2.0 / (1 + d))
    att = std * jax.random.normal(k3, (1, d), jnp.float32)
    return {"Wa_t": Wa_t, "ba": ba, "att": att}


def init_dv_encoder(key, P, d, J=3):
    ks = jax.random.split(key, P + 1)
    return {"gwt": [init_gwt(ks[i], d, J) for i in range(P)],
            "attn": init_attn(ks[P], d)}


def init_main_model(key, mps_len_dict, hid_dim, J=3):
    params = {"enc": {}, "dec": {}}
    for branch in ("enc", "dec"):
        for name, P in mps_len_dict.items():
            key, sub = jax.random.split(key)
            params[branch][name] = init_dv_encoder(sub, P, hid_dim, J)
    return params


# ---------------------------------------------------------------------------
# Pure-JAX f32 reference (mirrors the PyTorch forward) for a sanity check
# ---------------------------------------------------------------------------
def _gwt_ref(A, x, Wt, bias, alpha):
    x1 = A @ x; x2 = A @ x1; x3 = A @ x2; x4 = A @ x3
    feats = jnp.concatenate(
        [x4, jnp.abs(x1 - x2), jnp.abs(x2 - x4),
         jnp.abs(x2 - x1), jnp.abs(x3 - x2), jnp.abs(x4 - x3)], axis=1)
    out = feats @ Wt + bias
    return jnp.where(out > 0, out, alpha * out)


def _dv_encoder_ref(params, x, adj_list):
    if len(adj_list) == 0:
        return x
    E = jnp.stack([_gwt_ref(A, x, g["Wt"], g["bias"], g["alpha"])
                   for g, A in zip(params["gwt"], adj_list)], axis=0)
    a = params["attn"]
    proj = jnp.tanh(E @ a["Wa_t"] + a["ba"])
    scores = jnp.sum(jnp.mean(proj, axis=1) * a["att"], axis=1)
    w = jax.nn.softmax(scores)
    return jnp.einsum("p,pnd->nd", w, E)


def _main_model_ref(params, x, mps_dict):
    enc = [_dv_encoder_ref(params["enc"][k], x, mps_dict[k]) for k in mps_dict]
    dec = [_dv_encoder_ref(params["dec"][k], x, mps_dict[k]) for k in mps_dict]
    return jnp.concatenate(enc + dec, axis=1)


# ---------------------------------------------------------------------------
if __name__ == "__main__":
    key = jax.random.PRNGKey(0)
    # D = 128 keeps feature slabs / stores lane-dense; 2D = 256 fills the MXU.
    N, hid_dim, J = 128, 128, 3
    mps_len_dict = {"mp1": 2, "mp2": 1}

    kx, kp, ka = jax.random.split(key, 3)
    x = jax.random.normal(kx, (N, hid_dim), jnp.float32)

    # Dense, row-normalized random adjacencies (stand-ins for the coalesced
    # sparse adjacency tensors of the PyTorch module).
    def make_adj(k):
        k1, k2 = jax.random.split(k)
        mask = (jax.random.uniform(k1, (N, N)) < 0.3).astype(jnp.float32)
        mask = jnp.minimum(mask + jnp.eye(N, dtype=jnp.float32), 1.0)
        w = jax.random.uniform(k2, (N, N), jnp.float32, 0.1, 1.0) * mask
        return w / jnp.sum(w, axis=1, keepdims=True)

    adj_keys = jax.random.split(ka, sum(mps_len_dict.values()))
    mps_dict, idx = {}, 0
    for name, P in mps_len_dict.items():
        mps_dict[name] = [make_adj(adj_keys[idx + i]) for i in range(P)]
        idx += P

    params = init_main_model(kp, mps_len_dict, hid_dim, J)

    out = jax.block_until_ready(main_model_forward(params, x, mps_dict))
    assert out.shape == (N, 2 * len(mps_len_dict) * hid_dim), out.shape
    assert bool(jnp.all(jnp.isfinite(out)))

    # Loose tolerance: covers bf16 MXU operands (f32 accumulation), approx
    # reciprocal in the softmax and weight-fold order; catches structural bugs.
    ref = jax.block_until_ready(_main_model_ref(params, x, mps_dict))
    err = float(jnp.max(jnp.abs(out - ref)))
    assert bool(jnp.allclose(out, ref, rtol=1e-1, atol=5e-2)), err

    print("KERNEL_OK")
</pallas_src>

<mosaic_0001>
module attributes {stable_mosaic.version = 11 : i64} {
  func.func @dv_encoder_kernel(%arg0: i32, %arg1: memref<3xi32, #tpu.memory_space<smem>>, %arg2: memref<3xi32, #tpu.memory_space<smem>>, %arg3: memref<3xi32, #tpu.memory_space<smem>>, %arg4: memref<1x128x128xbf16, #tpu.memory_space<vmem>>, %arg5: memref<128x128xbf16, #tpu.memory_space<vmem>>, %arg6: memref<1x640x256xbf16, #tpu.memory_space<vmem>>, %arg7: memref<3x1x256xf32, #tpu.memory_space<vmem>>, %arg8: memref<3x1x256xf32, #tpu.memory_space<vmem>>, %arg9: memref<1x256x256xbf16, #tpu.memory_space<vmem>>, %arg10: memref<1x1x256xf32, #tpu.memory_space<vmem>>, %arg11: memref<1x1x256xf32, #tpu.memory_space<vmem>>, %arg12: memref<128x128xf32, #tpu.memory_space<vmem>>, %arg13: memref<128x128xf32, #tpu.memory_space<vmem>>, %arg14: memref<2x128x256xf32, #tpu.memory_space<vmem>>, %arg15: memref<2x1x256xf32, #tpu.memory_space<vmem>>) attributes {dimension_semantics = [#tpu.dimension_semantics<arbitrary>], iteration_bounds = array<i64: 3>, scalar_prefetch = 3 : i64, scratch_operands = 2 : i64, tpu.core_type = #tpu.core_type<tc>, window_params = [{transform_indices = @transform_0, window_bounds = array<i64: 1, 128, 128>}, {pipeline_mode = #tpu.pipeline_mode<synchronous>, transform_indices = @transform_1, window_bounds = array<i64: 128, 128>}, {transform_indices = @transform_2, window_bounds = array<i64: 1, 640, 256>}, {pipeline_mode = #tpu.pipeline_mode<synchronous>, transform_indices = @transform_3, window_bounds = array<i64: 3, 1, 256>}, {pipeline_mode = #tpu.pipeline_mode<synchronous>, transform_indices = @transform_4, window_bounds = array<i64: 3, 1, 256>}, {transform_indices = @transform_5, window_bounds = array<i64: 1, 256, 256>}, {transform_indices = @transform_6, window_bounds = array<i64: 1, 1, 256>}, {transform_indices = @transform_7, window_bounds = array<i64: 1, 1, 256>}, {transform_indices = @transform_8, window_bounds = array<i64: 128, 128>}, {transform_indices = @transform_9, window_bounds = array<i64: 128, 128>}]} {
    %0 = arith.index_cast %arg0 : i32 to index
    %1 = memref.load %arg2[%0] : memref<3xi32, #tpu.memory_space<smem>>
    %c0 = arith.constant 0 : index
    %c0_0 = arith.constant 0 : index
    %c0_1 = arith.constant 0 : index
    %2 = vector.load %arg4[%c0, %c0_0, %c0_1] : memref<1x128x128xbf16, #tpu.memory_space<vmem>>, vector<1x128x128xbf16>
    %3 = vector.shape_cast %2 : vector<1x128x128xbf16> to vector<128x128xbf16>
    %c0_2 = arith.constant 0 : index
    %c0_3 = arith.constant 0 : index
    %4 = vector.load %arg5[%c0_2, %c0_3] : memref<128x128xbf16, #tpu.memory_space<vmem>>, vector<128x128xbf16>
    %cst = arith.constant dense<0.000000e+00> : vector<128x128xf32>
    %5 = tpu.matmul %3, %4, %cst {dimension_numbers = #tpu.dot_dimension_numbers<[1], [0], [0], [1], [0, 0, 1, 1], [], []>} : vector<128x128xbf16>, vector<128x128xbf16>, vector<128x128xf32> -> vector<128x128xf32>
    %6 = arith.truncf %5 : vector<128x128xf32> to vector<128x128xbf16>
    %cst_4 = arith.constant dense<0.000000e+00> : vector<128x128xf32>
    %7 = tpu.matmul %3, %6, %cst_4 {dimension_numbers = #tpu.dot_dimension_numbers<[1], [0], [0], [1], [0, 0, 1, 1], [], []>} : vector<128x128xbf16>, vector<128x128xbf16>, vector<128x128xf32> -> vector<128x128xf32>
    %8 = arith.truncf %7 : vector<128x128xf32> to vector<128x128xbf16>
    %cst_5 = arith.constant dense<0.000000e+00> : vector<128x128xf32>
    %9 = tpu.matmul %3, %8, %cst_5 {dimension_numbers = #tpu.dot_dimension_numbers<[1], [0], [0], [1], [0, 0, 1, 1], [], []>} : vector<128x128xbf16>, vector<128x128xbf16>, vector<128x128xf32> -> vector<128x128xf32>
    %10 = arith.truncf %9 : vector<128x128xf32> to vector<128x128xbf16>
    %cst_6 = arith.constant dense<0.000000e+00> : vector<128x128xf32>
    %11 = tpu.matmul %3, %10, %cst_6 {dimension_numbers = #tpu.dot_dimension_numbers<[1], [0], [0], [1], [0, 0, 1, 1], [], []>} : vector<128x128xbf16>, vector<128x128xbf16>, vector<128x128xf32> -> vector<128x128xf32>
    %12 = arith.subf %5, %7 : vector<128x128xf32>
    %13 = math.absf %12 : vector<128x128xf32>
    %14 = arith.subf %7, %11 : vector<128x128xf32>
    %15 = math.absf %14 : vector<128x128xf32>
    %16 = arith.subf %9, %7 : vector<128x128xf32>
    %17 = math.absf %16 : vector<128x128xf32>
    %18 = arith.subf %11, %9 : vector<128x128xf32>
    %19 = math.absf %18 : vector<128x128xf32>
    %20 = tpu.concatenate %11, %13, %15, %17, %19 in 1 : vector<128x128xf32>, vector<128x128xf32>, vector<128x128xf32>, vector<128x128xf32>, vector<128x128xf32> -> vector<128x640xf32>
    %21 = arith.truncf %20 : vector<128x640xf32> to vector<128x640xbf16>
    %c0_7 = arith.constant 0 : index
    %c0_8 = arith.constant 0 : index
    %c0_9 = arith.constant 0 : index
    %22 = vector.load %arg6[%c0_7, %c0_8, %c0_9] : memref<1x640x256xbf16, #tpu.memory_space<vmem>>, vector<1x640x256xbf16>
    %23 = vector.shape_cast %22 : vector<1x640x256xbf16> to vector<640x256xbf16>
    %cst_10 = arith.constant dense<0.000000e+00> : vector<128x256xf32>
    %24 = tpu.matmul %21, %23, %cst_10 {dimension_numbers = #tpu.dot_dimension_numbers<[1], [0], [0], [1], [0, 0, 1, 1], [], []>} : vector<128x640xbf16>, vector<640x256xbf16>, vector<128x256xf32> -> vector<128x256xf32>
    %25 = arith.index_cast %arg0 : i32 to index
    %c0_11 = arith.constant 0 : index
    %c0_12 = arith.constant 0 : index
    %26 = vector.load %arg7[%25, %c0_11, %c0_12] : memref<3x1x256xf32, #tpu.memory_space<vmem>>, vector<1x1x256xf32>
    %27 = vector.shape_cast %26 : vector<1x1x256xf32> to vector<1x256xf32>
    %28 = vector.broadcast %27 : vector<1x256xf32> to vector<128x256xf32>
    %29 = arith.addf %24, %28 : vector<128x256xf32>
    %cst_13 = arith.constant 0.000000e+00 : f32
    %30 = vector.broadcast %cst_13 : f32 to vector<128x256xf32>
    %31 = arith.cmpf ogt, %29, %30 : vector<128x256xf32>
    %32 = arith.index_cast %arg0 : i32 to index
    %c0_14 = arith.constant 0 : index
    %c0_15 = arith.constant 0 : index
    %33 = vector.load %arg8[%32, %c0_14, %c0_15] : memref<3x1x256xf32, #tpu.memory_space<vmem>>, vector<1x1x256xf32>
    %34 = vector.shape_cast %33 : vector<1x1x256xf32> to vector<1x256xf32>
    %35 = vector.broadcast %34 : vector<1x256xf32> to vector<128x256xf32>
    %36 = arith.mulf %29, %35 : vector<128x256xf32>
    %37 = arith.select %31, %29, %36 : vector<128x256xi1>, vector<128x256xf32>
    %38 = arith.index_cast %1 : i32 to index
    %c0_16 = arith.constant 0 : index
    %c0_17 = arith.constant 0 : index
    %39 = vector.load %arg14[%38, %c0_16, %c0_17] : memref<2x128x256xf32, #tpu.memory_space<vmem>>, vector<1x128x256xf32>
    %40 = vector.shape_cast %39 : vector<1x128x256xf32> to vector<128x256xf32>
    %41 = vector.shape_cast %37 : vector<128x256xf32> to vector<1x128x256xf32>
    tpu.vector_store %arg14[%38, %c0_16, %c0_17], %41 {strides = array<i32>} : memref<2x128x256xf32, #tpu.memory_space<vmem>>, vector<1x128x256xf32>,
    %42 = arith.truncf %37 : vector<128x256xf32> to vector<128x256xbf16>
    %c0_18 = arith.constant 0 : index
    %c0_19 = arith.constant 0 : index
    %c0_20 = arith.constant 0 : index
    %43 = vector.load %arg9[%c0_18, %c0_19, %c0_20] : memref<1x256x256xbf16, #tpu.memory_space<vmem>>, vector<1x256x256xbf16>
    %44 = vector.shape_cast %43 : vector<1x256x256xbf16> to vector<256x256xbf16>
    %cst_21 = arith.constant dense<0.000000e+00> : vector<128x256xf32>
    %45 = tpu.matmul %42, %44, %cst_21 {dimension_numbers = #tpu.dot_dimension_numbers<[1], [0], [0], [1], [0, 0, 1, 1], [], []>} : vector<128x256xbf16>, vector<256x256xbf16>, vector<128x256xf32> -> vector<128x256xf32>
    %c0_22 = arith.constant 0 : index
    %c0_23 = arith.constant 0 : index
    %c0_24 = arith.constant 0 : index
    %46 = vector.load %arg10[%c0_22, %c0_23, %c0_24] : memref<1x1x256xf32, #tpu.memory_space<vmem>>, vector<1x1x256xf32>
    %47 = vector.shape_cast %46 : vector<1x1x256xf32> to vector<1x256xf32>
    %48 = vector.broadcast %47 : vector<1x256xf32> to vector<128x256xf32>
    %49 = arith.addf %45, %48 : vector<128x256xf32>
    %50 = math.tanh %49 : vector<128x256xf32>
    %cst_25 = arith.constant dense<0.000000e+00> : vector<256xf32>
    %51 = vector.multi_reduction <add>, %50, %cst_25 [0] : vector<128x256xf32> to vector<256xf32>
    %52 = vector.shape_cast %51 : vector<256xf32> to vector<1x256xf32>
    %cst_26 = arith.constant 1.280000e+02 : f32
    %53 = vector.broadcast %cst_26 : f32 to vector<1x256xf32>
    %54 = arith.divf %52, %53 : vector<1x256xf32>
    %55 = arith.index_cast %1 : i32 to index
    %c0_27 = arith.constant 0 : index
    %c0_28 = arith.constant 0 : index
    %56 = vector.load %arg15[%55, %c0_27, %c0_28] : memref<2x1x256xf32, #tpu.memory_space<vmem>>, vector<1x1x256xf32>
    %57 = vector.shape_cast %56 : vector<1x1x256xf32> to vector<1x256xf32>
    %58 = vector.shape_cast %54 : vector<1x256xf32> to vector<1x1x256xf32>
    tpu.vector_store %arg15[%55, %c0_27, %c0_28], %58 {strides = array<i32>} : memref<2x1x256xf32, #tpu.memory_space<vmem>>, vector<1x1x256xf32>,
    %59 = arith.index_cast %arg0 : i32 to index
    %60 = memref.load %arg3[%59] : memref<3xi32, #tpu.memory_space<smem>>
    %c1_i32 = arith.constant 1 : i32
    %61 = arith.cmpi eq, %60, %c1_i32 : i32
    %62 = arith.extui %61 : i1 to i32
    %c0_i32 = arith.constant 0 : i32
    %63 = arith.cmpi ne, %62, %c0_i32 : i32
    scf.if %63 {
      %c1_i32_29 = arith.constant 1 : i32
      %64 = arith.addi %1, %c1_i32_29 : i32
      %65 = tpu.iota {dimensions = array<i32: 0>} : vector<2x1xi32>
      %66 = vector.broadcast %64 : i32 to vector<2x1xi32>
      %67 = arith.cmpi slt, %65, %66 : vector<2x1xi32>
      %c0_30 = arith.constant 0 : index
      %c0_31 = arith.constant 0 : index
      %c0_32 = arith.constant 0 : index
      %68 = vector.load %arg15[%c0_30, %c0_31, %c0_32] : memref<2x1x256xf32, #tpu.memory_space<vmem>>, vector<2x1x256xf32>
      %c0_33 = arith.constant 0 : index
      %c0_34 = arith.constant 0 : index
      %c0_35 = arith.constant 0 : index
      %69 = vector.load %arg11[%c0_33, %c0_34, %c0_35] : memref<1x1x256xf32, #tpu.memory_space<vmem>>, vector<1x1x256xf32>
      %70 = vector.shape_cast %69 : vector<1x1x256xf32> to vector<1x256xf32>
      %71 = vector.shape_cast %70 : vector<1x256xf32> to vector<1x1x256xf32>
      %72 = vector.broadcast %71 : vector<1x1x256xf32> to vector<2x1x256xf32>
      %73 = arith.mulf %68, %72 : vector<2x1x256xf32>
      %74 = vector.extract_strided_slice %73 {offsets = [0, 0, 0], sizes = [2, 1, 128], strides = [1, 1, 1]} : vector<2x1x256xf32> to vector<2x1x128xf32>
      %cst_36 = arith.constant dense<0.000000e+00> : vector<2x1xf32>
      %75 = vector.multi_reduction <add>, %74, %cst_36 [2] : vector<2x1x128xf32> to vector<2x1xf32>
      %76 = vector.extract_strided_slice %73 {offsets = [0, 0, 128], sizes = [2, 1, 128], strides = [1, 1, 1]} : vector<2x1x256xf32> to vector<2x1x128xf32>
      %cst_37 = arith.constant dense<0.000000e+00> : vector<2x1xf32>
      %77 = vector.multi_reduction <add>, %76, %cst_37 [2] : vector<2x1x128xf32> to vector<2x1xf32>
      %cst_38 = arith.constant 0xFF800000 : f32
      %78 = vector.broadcast %cst_38 : f32 to vector<2x1xf32>
      %79 = arith.select %67, %75, %78 : vector<2x1xi1>, vector<2x1xf32>
      %cst_39 = arith.constant dense<0xFF800000> : vector<1xf32>
      %80 = vector.multi_reduction <maximumf>, %79, %cst_39 [0] : vector<2x1xf32> to vector<1xf32>
      %81 = vector.shape_cast %80 : vector<1xf32> to vector<1x1xf32>
      %82 = vector.broadcast %81 : vector<1x1xf32> to vector<2x1xf32>
      %83 = arith.subf %75, %82 : vector<2x1xf32>
      %84 = math.exp %83 : vector<2x1xf32>
      %cst_40 = arith.constant 0.000000e+00 : f32
      %85 = vector.broadcast %cst_40 : f32 to vector<2x1xf32>
      %86 = arith.select %67, %84, %85 : vector<2x1xi1>, vector<2x1xf32>
      %cst_41 = arith.constant dense<0.000000e+00> : vector<1xf32>
      %87 = vector.multi_reduction <add>, %86, %cst_41 [0] : vector<2x1xf32> to vector<1xf32>
      %88 = vector.shape_cast %87 : vector<1xf32> to vector<1x1xf32>
      %89 = tpu.reciprocal %88 {approx = true} : vector<1x1xf32> -> vector<1x1xf32>
      %90 = vector.broadcast %89 : vector<1x1xf32> to vector<2x1xf32>
      %91 = arith.mulf %86, %90 : vector<2x1xf32>
      %92 = vector.shape_cast %91 : vector<2x1xf32> to vector<2x1x1xf32>
      %cst_42 = arith.constant 0xFF800000 : f32
      %93 = vector.broadcast %cst_42 : f32 to vector<2x1xf32>
      %94 = arith.select %67, %77, %93 : vector<2x1xi1>, vector<2x1xf32>
      %cst_43 = arith.constant dense<0xFF800000> : vector<1xf32>
      %95 = vector.multi_reduction <maximumf>, %94, %cst_43 [0] : vector<2x1xf32> to vector<1xf32>
      %96 = vector.shape_cast %95 : vector<1xf32> to vector<1x1xf32>
      %97 = vector.broadcast %96 : vector<1x1xf32> to vector<2x1xf32>
      %98 = arith.subf %77, %97 : vector<2x1xf32>
      %99 = math.exp %98 : vector<2x1xf32>
      %cst_44 = arith.constant 0.000000e+00 : f32
      %100 = vector.broadcast %cst_44 : f32 to vector<2x1xf32>
      %101 = arith.select %67, %99, %100 : vector<2x1xi1>, vector<2x1xf32>
      %cst_45 = arith.constant dense<0.000000e+00> : vector<1xf32>
      %102 = vector.multi_reduction <add>, %101, %cst_45 [0] : vector<2x1xf32> to vector<1xf32>
      %103 = vector.shape_cast %102 : vector<1xf32> to vector<1x1xf32>
      %104 = tpu.reciprocal %103 {approx = true} : vector<1x1xf32> -> vector<1x1xf32>
      %105 = vector.broadcast %104 : vector<1x1xf32> to vector<2x1xf32>
      %106 = arith.mulf %101, %105 : vector<2x1xf32>
      %107 = vector.shape_cast %106 : vector<2x1xf32> to vector<2x1x1xf32>
      %108 = vector.shape_cast %67 : vector<2x1xi1> to vector<2x1x1xi1>
      %c0_46 = arith.constant 0 : index
      %c0_47 = arith.constant 0 : index
      %c0_48 = arith.constant 0 : index
      %109 = vector.load %arg14[%c0_46, %c0_47, %c0_48] : memref<2x128x256xf32, #tpu.memory_space<vmem>>, vector<2x128x256xf32>
      %110 = vector.extract_strided_slice %109 {offsets = [0, 0, 0], sizes = [2, 128, 128], strides = [1, 1, 1]} : vector<2x128x256xf32> to vector<2x128x128xf32>
      %111 = vector.broadcast %92 : vector<2x1x1xf32> to vector<2x128x128xf32>
      %112 = arith.mulf %111, %110 : vector<2x128x128xf32>
      %cst_49 = arith.constant 0.000000e+00 : f32
      %113 = vector.shape_cast %108 : vector<2x1x1xi1> to vector<2x1x1xi1>
      %114 = vector.broadcast %113 : vector<2x1x1xi1> to vector<2x128x128xi1>
      %115 = vector.broadcast %cst_49 : f32 to vector<2x128x128xf32>
      %116 = arith.select %114, %112, %115 : vector<2x128x128xi1>, vector<2x128x128xf32>
      %cst_50 = arith.constant dense<0.000000e+00> : vector<128x128xf32>
      %117 = vector.multi_reduction <add>, %116, %cst_50 [0] : vector<2x128x128xf32> to vector<128x128xf32>
      %c0_51 = arith.constant 0 : index
      %c0_52 = arith.constant 0 : index
      %118 = vector.load %arg12[%c0_51, %c0_52] : memref<128x128xf32, #tpu.memory_space<vmem>>, vector<128x128xf32>
      tpu.vector_store %arg12[%c0_51, %c0_52], %117 {strides = array<i32>} : memref<128x128xf32, #tpu.memory_space<vmem>>, vector<128x128xf32>,
      %119 = vector.extract_strided_slice %109 {offsets = [0, 0, 128], sizes = [2, 128, 128], strides = [1, 1, 1]} : vector<2x128x256xf32> to vector<2x128x128xf32>
      %120 = vector.broadcast %107 : vector<2x1x1xf32> to vector<2x128x128xf32>
      %121 = arith.mulf %120, %119 : vector<2x128x128xf32>
      %cst_53 = arith.constant 0.000000e+00 : f32
      %122 = vector.shape_cast %108 : vector<2x1x1xi1> to vector<2x1x1xi1>
      %123 = vector.broadcast %122 : vector<2x1x1xi1> to vector<2x128x128xi1>
      %124 = vector.broadcast %cst_53 : f32 to vector<2x128x128xf32>
      %125 = arith.select %123, %121, %124 : vector<2x128x128xi1>, vector<2x128x128xf32>
      %cst_54 = arith.constant dense<0.000000e+00> : vector<128x128xf32>
      %126 = vector.multi_reduction <add>, %125, %cst_54 [0] : vector<2x128x128xf32> to vector<128x128xf32>
      %c0_55 = arith.constant 0 : index
      %c0_56 = arith.constant 0 : index
      %127 = vector.load %arg13[%c0_55, %c0_56] : memref<128x128xf32, #tpu.memory_space<vmem>>, vector<128x128xf32>
      tpu.vector_store %arg13[%c0_55, %c0_56], %126 {strides = array<i32>} : memref<128x128xf32, #tpu.memory_space<vmem>>, vector<128x128xf32>,
    } else {
    }
    return
  }
  func.func @transform_0(%arg0: i32, %arg1: memref<3xi32, #tpu.memory_space<smem>>, %arg2: memref<3xi32, #tpu.memory_space<smem>>, %arg3: memref<3xi32, #tpu.memory_space<smem>>) -> (i32, i32, i32) {
    %c0_i32 = arith.constant 0 : i32
    %c0_i32_0 = arith.constant 0 : i32
    %c0_i32_1 = arith.constant 0 : i32
    return %arg0, %c0_i32, %c0_i32_0 : i32, i32, i32
  }
  func.func @transform_1(%arg0: i32, %arg1: memref<3xi32, #tpu.memory_space<smem>>, %arg2: memref<3xi32, #tpu.memory_space<smem>>, %arg3: memref<3xi32, #tpu.memory_space<smem>>) -> (i32, i32) {
    %c0_i32 = arith.constant 0 : i32
    %c0_i32_0 = arith.constant 0 : i32
    %c0_i32_1 = arith.constant 0 : i32
    return %c0_i32, %c0_i32_0 : i32, i32
  }
  func.func @transform_2(%arg0: i32, %arg1: memref<3xi32, #tpu.memory_space<smem>>, %arg2: memref<3xi32, #tpu.memory_space<smem>>, %arg3: memref<3xi32, #tpu.memory_space<smem>>) -> (i32, i32, i32) {
    %c0_i32 = arith.constant 0 : i32
    %c0_i32_0 = arith.constant 0 : i32
    %c0_i32_1 = arith.constant 0 : i32
    return %arg0, %c0_i32, %c0_i32_0 : i32, i32, i32
  }
  func.func @transform_3(%arg0: i32, %arg1: memref<3xi32, #tpu.memory_space<smem>>, %arg2: memref<3xi32, #tpu.memory_space<smem>>, %arg3: memref<3xi32, #tpu.memory_space<smem>>) -> (i32, i32, i32) {
    %c0_i32 = arith.constant 0 : i32
    %c0_i32_0 = arith.constant 0 : i32
    %c0_i32_1 = arith.constant 0 : i32
    %c0_i32_2 = arith.constant 0 : i32
    return %c0_i32, %c0_i32_0, %c0_i32_1 : i32, i32, i32
  }
  func.func @transform_4(%arg0: i32, %arg1: memref<3xi32, #tpu.memory_space<smem>>, %arg2: memref<3xi32, #tpu.memory_space<smem>>, %arg3: memref<3xi32, #tpu.memory_space<smem>>) -> (i32, i32, i32) {
    %c0_i32 = arith.constant 0 : i32
    %c0_i32_0 = arith.constant 0 : i32
    %c0_i32_1 = arith.constant 0 : i32
    %c0_i32_2 = arith.constant 0 : i32
    return %c0_i32, %c0_i32_0, %c0_i32_1 : i32, i32, i32
  }
  func.func @transform_5(%arg0: i32, %arg1: memref<3xi32, #tpu.memory_space<smem>>, %arg2: memref<3xi32, #tpu.memory_space<smem>>, %arg3: memref<3xi32, #tpu.memory_space<smem>>) -> (i32, i32, i32) {
    %0 = arith.index_cast %arg0 : i32 to index
    %1 = memref.load %arg1[%0] : memref<3xi32, #tpu.memory_space<smem>>
    %c0_i32 = arith.constant 0 : i32
    %c0_i32_0 = arith.constant 0 : i32
    %c0_i32_1 = arith.constant 0 : i32
    return %1, %c0_i32, %c0_i32_0 : i32, i32, i32
  }
  func.func @transform_6(%arg0: i32, %arg1: memref<3xi32, #tpu.memory_space<smem>>, %arg2: memref<3xi32, #tpu.memory_space<smem>>, %arg3: memref<3xi32, #tpu.memory_space<smem>>) -> (i32, i32, i32) {
    %0 = arith.index_cast %arg0 : i32 to index
    %1 = memref.load %arg1[%0] : memref<3xi32, #tpu.memory_space<smem>>
    %c0_i32 = arith.constant 0 : i32
    %c0_i32_0 = arith.constant 0 : i32
    %c0_i32_1 = arith.constant 0 : i32
    return %1, %c0_i32, %c0_i32_0 : i32, i32, i32
  }
  func.func @transform_7(%arg0: i32, %arg1: memref<3xi32, #tpu.memory_space<smem>>, %arg2: memref<3xi32, #tpu.memory_space<smem>>, %arg3: memref<3xi32, #tpu.memory_space<smem>>) -> (i32, i32, i32) {
    %0 = arith.index_cast %arg0 : i32 to index
    %1 = memref.load %arg1[%0] : memref<3xi32, #tpu.memory_space<smem>>
    %c0_i32 = arith.constant 0 : i32
    %c0_i32_0 = arith.constant 0 : i32
    %c0_i32_1 = arith.constant 0 : i32
    return %1, %c0_i32, %c0_i32_0 : i32, i32, i32
  }
  func.func @transform_8(%arg0: i32, %arg1: memref<3xi32, #tpu.memory_space<smem>>, %arg2: memref<3xi32, #tpu.memory_space<smem>>, %arg3: memref<3xi32, #tpu.memory_space<smem>>) -> (i32, i32) {
    %0 = arith.index_cast %arg0 : i32 to index
    %1 = memref.load %arg1[%0] : memref<3xi32, #tpu.memory_space<smem>>
    %c0_i32 = arith.constant 0 : i32
    %c0_i32_0 = arith.constant 0 : i32
    return %c0_i32, %1 : i32, i32
  }
  func.func @transform_9(%arg0: i32, %arg1: memref<3xi32, #tpu.memory_space<smem>>, %arg2: memref<3xi32, #tpu.memory_space<smem>>, %arg3: memref<3xi32, #tpu.memory_space<smem>>) -> (i32, i32) {
    %0 = arith.index_cast %arg0 : i32 to index
    %1 = memref.load %arg1[%0] : memref<3xi32, #tpu.memory_space<smem>>
    %c0_i32 = arith.constant 0 : i32
    %c0_i32_0 = arith.constant 0 : i32
    return %c0_i32, %1 : i32, i32
  }
}

</mosaic_0001>

<llo_original>
// kernel: tpu_custom_call.1
$region0: #{tpu_custom_call.1}
  #allocation0 [shape = 'u32[]', space=smem, size = 0x4, offset = 0x4, fixed_abs, tag = 'smem constant byte address 0x4 - core index']
  #allocation1 [shape = 'u32[144,128]{1,0:T(1,128)}', space=vmem, size = 0x12000, scoped, tag = 'internal scratch']
  #allocation2 [shape = 'f32[2,128,256]{2,1,0:T(8,128)}', space=vmem, size = 0x40000, scoped, tag = 'scratch operand']
  #allocation3 [shape = 'f32[2,1,256]{2,1,0:T(1,128)}', space=vmem, size = 0x800, scoped, tag = 'scratch operand']
  #allocation4 [shape = 's32[1]{0}', space=sflag, size = 0x4, scoped, tag = 'scoped memory for tpu_custom_call.1']
  #allocation5 [shape = 'u8[512]{0}', space=smem, size = 0x200, scoped, tag = 'prefetched SMEM operand 0']
  #allocation6 [shape = 'u8[512]{0}', space=smem, size = 0x200, scoped, tag = 'prefetched SMEM operand 1']
  #allocation7 [shape = 'u8[512]{0}', space=smem, size = 0x200, scoped, tag = 'prefetched SMEM operand 2']
  %s0 = inlined_call_operand.hbm [shape: s32[3], index: 0, kind: input, shape index: {}]
  %s1 = inlined_call_operand.hbm [shape: s32[3], index: 1, kind: input, shape index: {}]
  %s2 = inlined_call_operand.hbm [shape: s32[3], index: 2, kind: input, shape index: {}]
  %s3 = inlined_call_operand.hbm [shape: bf16[3,128,128], index: 3, kind: input, shape index: {}]
  %s4 = inlined_call_operand.hbm [shape: bf16[128,128], index: 4, kind: input, shape index: {}]
  %s5 = inlined_call_operand.hbm [shape: bf16[3,640,256], index: 5, kind: input, shape index: {}]
  %s6 = inlined_call_operand.vmem [shape: f32[3,1,256], index: 6, kind: input, shape index: {}]
  %s7 = inlined_call_operand.vmem [shape: f32[3,1,256], index: 7, kind: input, shape index: {}]
  %s8 = inlined_call_operand.hbm [shape: bf16[2,256,256], index: 8, kind: input, shape index: {}]
  %s9 = inlined_call_operand.vmem [shape: f32[2,1,256], index: 9, kind: input, shape index: {}]
  %s10 = inlined_call_operand.hbm [shape: f32[2,1,256], index: 10, kind: input, shape index: {}]
  %s11 = inlined_call_operand.hbm [shape: f32[128,256], index: 11, kind: output, shape index: {0}]
  %s12 = inlined_call_operand.hbm [shape: f32[128,256], index: 12, kind: output, shape index: {1}]
  %13 = xla_tuple %s11, %s12
  %s14 = sld [smem:[#allocation0]]
  $region97: #{tpu_custom_call.1} parent=0
    _
  %s16 = ssub.s32 1, %s14
  %s17 = scalar_select 0, %s16, %s14
  %19 = dma.hbm_to_smem %s0, 16, [#allocation5], [#allocation4]
  %21 = dma.hbm_to_smem %s1, 16, [#allocation6], [#allocation4]
  %23 = dma.hbm_to_smem %s2, 16, [#allocation7], [#allocation4]
  %24 = dma.done [#allocation4], 48
  %25 = sfence
  $region1: #{tpu_custom_call.1} parent=0
    #allocation8 [shape = 'u8[65536]{0}', space=vmem, size = 0x10000, scoped, tag = 'input window, operand 3']
    #allocation9 [shape = 's32[2]{0}', space=sflag, size = 0x8, scoped, tag = 'scoped memory for tpu_custom_call.1']
    #allocation10 [shape = 's32[2]{0}', space=sflag, size = 0x8, scoped, tag = 'scoped memory for tpu_custom_call.1']
    #allocation11 [shape = 'u8[32768]{0}', space=vmem, size = 0x8000, scoped, tag = 'input window, operand 4, single buffered']
    #allocation12 [shape = 's32[1]{0}', space=sflag, size = 0x4, scoped, tag = 'scoped memory for tpu_custom_call.1']
    #allocation13 [shape = 'u8[655360]{0}', space=vmem, size = 0xa0000, scoped, tag = 'input window, operand 5']
    #allocation14 [shape = 'u8[262144]{0}', space=vmem, size = 0x40000, scoped, tag = 'input window, operand 8']
    #allocation15 [shape = 'u8[2048]{0}', space=vmem, size = 0x800, scoped, tag = 'input window, operand 10']
    #allocation16 [shape = 'u8[131072]{0}', space=vmem, size = 0x20000, scoped, tag = 'output window, operand 0']
    #allocation17 [shape = 'u8[131072]{0}', space=vmem, size = 0x20000, scoped, tag = 'output window, operand 1']
    #allocation18 [shape = 's32[2]{0}', space=sflag, size = 0x8, scoped, tag = 'scoped memory for tpu_custom_call.1']
    %26 = vsyncpa [#allocation9], 0
    %s27 = scalar_lea.sflag [#allocation9], 1
    %28 = vsyncpa %s27, 0
    %29 = vsyncpa [#allocation12], 0
    %30 = vsyncpa [#allocation10], 0
    %s31 = scalar_lea.sflag [#allocation10], 1
    %32 = vsyncpa %s31, 0
    %33 = vsyncpa [#allocation18], 0
    %s34 = scalar_lea.sflag [#allocation18], 1
    %35 = vsyncpa %s34, 0
    loop: start=0, step=1, limit=5
    $region2: #{tpu_custom_call.1} parent=1 // loop_pre_header
      _
    $region3: #{tpu_custom_call.1} parent=1 // loop_header
      %s37 = sphi 0, %s41
      %p38 = scmp.ge.s32.totalorder %s37, 5
      %s47 = sphi 0, %s49
      %s50 = sphi 0, %s47
      %s51 = sphi 0, %s50
      %s67 = sphi 0, %s51
      %s71 = sphi 0, %s71
      %s73 = sphi 0, %s71
      %s74 = sphi 0, %s73
      %s88 = sphi 0, %s74
      %s94 = sphi 0, %s96
      %s97 = sphi 0, %s94
      %s98 = sphi 0, %s97
      %s114 = sphi 0, %s98
      %s118 = sphi 0, %s118
      %s120 = sphi 0, %s118
      %s121 = sphi 0, %s120
      %s135 = sphi 0, %s121
      %s139 = sphi 0, %s139
      %s141 = sphi 0, %s139
      %s142 = sphi 0, %s141
      %s156 = sphi 0, %s142
      %s164 = sphi 0, %s166
      %s167 = sphi 0, %s164
      %s168 = sphi 0, %s167
      %s184 = sphi 0, %s168
      %s192 = sphi 0, %s194
      %s195 = sphi 0, %s192
      %s196 = sphi 0, %s195
      %s212 = sphi 0, %s196
      %s220 = sphi 0, %s222
      %s223 = sphi 0, %s220
      %s224 = sphi 0, %s223
      %s240 = sphi 0, %s224
      %s248 = sphi 0, %s250
      %s251 = sphi 0, %s248
      %s252 = sphi 0, %s251
      %s268 = sphi 0, %s252
      %s276 = sphi 0, %s278
      %s279 = sphi 0, %s276
      %s280 = sphi 0, %s279
      %s296 = sphi 0, %s280
    $region4: #{tpu_custom_call.1} parent=1 // loop_header_branch
      %40 = sbr.rel (%p38) target = $region8
    $region5: #{tpu_custom_call.1} parent=1 // loop_body
      %s42 = ssub.s32 %s37, 1
      %s43 = ssub.s32 %s37, 2
      %s44 = sadd.s32 %s37, 1
      %s45 = ssub.s32 %s37, %s44
      %p46 = scmp.eq.s32.totalorder %s45, 0
      %s48 = sadd.s32 %s47, 1
      %s49 = scalar_select %p46, %s47, %s48
      %p52 = pneg %p46
      %p53 = scmp.eq.s32.totalorder %s37, 2
      %p54 = por %p52, %p53
      %p55 = scmp.ne.s32.totalorder %s47, %s50
      %p56 = scmp.eq.s32.totalorder %s37, 0
      %p57 = por %p55, %p56
      %p58 = scmp.ne.s32.totalorder %s47, %s50
      %p59 = scmp.eq.s32.totalorder %s42, 2
      %p60 = por %p58, %p59
      %p61 = scmp.ne.s32.totalorder %s50, %s51
      %p62 = scmp.eq.s32.totalorder %s42, 0
      %p63 = por %p61, %p62
      %p64 = scmp.ne.s32.totalorder %s50, %s51
      %p65 = scmp.eq.s32.totalorder %s43, 2
      %p66 = por %p64, %p65
      %p68 = scmp.ne.s32.totalorder %s51, %s67
      %p69 = scmp.eq.s32.totalorder %s43, 0
      %p70 = por %p68, %p69
      %s72 = sadd.s32 %s71, 1
      %p75 = scmp.eq.s32.totalorder %s37, 2
      %p76 = scmp.ne.s32.totalorder %s71, %s73
      %p77 = scmp.eq.s32.totalorder %s37, 0
      %p78 = por %p76, %p77
      %p79 = scmp.ne.s32.totalorder %s71, %s73
      %p80 = scmp.eq.s32.totalorder %s42, 2
      %p81 = por %p79, %p80
      %p82 = scmp.ne.s32.totalorder %s73, %s74
      %p83 = scmp.eq.s32.totalorder %s42, 0
      %p84 = por %p82, %p83
      %p85 = scmp.ne.s32.totalorder %s73, %s74
      %p86 = scmp.eq.s32.totalorder %s43, 2
      %p87 = por %p85, %p86
      %p89 = scmp.ne.s32.totalorder %s74, %s88
      %p90 = scmp.eq.s32.totalorder %s43, 0
      %p91 = por %p89, %p90
      %s92 = ssub.s32 %s37, %s44
      %p93 = scmp.eq.s32.totalorder %s92, 0
      %s95 = sadd.s32 %s94, 1
      %s96 = scalar_select %p93, %s94, %s95
      %p99 = pneg %p93
      %p100 = scmp.eq.s32.totalorder %s37, 2
      %p101 = por %p99, %p100
      %p102 = scmp.ne.s32.totalorder %s94, %s97
      %p103 = scmp.eq.s32.totalorder %s37, 0
      %p104 = por %p102, %p103
      %p105 = scmp.ne.s32.totalorder %s94, %s97
      %p106 = scmp.eq.s32.totalorder %s42, 2
      %p107 = por %p105, %p106
      %p108 = scmp.ne.s32.totalorder %s97, %s98
      %p109 = scmp.eq.s32.totalorder %s42, 0
      %p110 = por %p108, %p109
      %p111 = scmp.ne.s32.totalorder %s97, %s98
      %p112 = scmp.eq.s32.totalorder %s43, 2
      %p113 = por %p111, %p112
      %p115 = scmp.ne.s32.totalorder %s98, %s114
      %p116 = scmp.eq.s32.totalorder %s43, 0
      %p117 = por %p115, %p116
      %s119 = sadd.s32 %s118, 1
      %p122 = scmp.eq.s32.totalorder %s37, 2
      %p123 = scmp.ne.s32.totalorder %s118, %s120
      %p124 = scmp.eq.s32.totalorder %s37, 0
      %p125 = por %p123, %p124
      %p126 = scmp.ne.s32.totalorder %s118, %s120
      %p127 = scmp.eq.s32.totalorder %s42, 2
      %p128 = por %p126, %p127
      %p129 = scmp.ne.s32.totalorder %s120, %s121
      %p130 = scmp.eq.s32.totalorder %s42, 0
      %p131 = por %p129, %p130
      %p132 = scmp.ne.s32.totalorder %s120, %s121
      %p133 = scmp.eq.s32.totalorder %s43, 2
      %p134 = por %p132, %p133
      %p136 = scmp.ne.s32.totalorder %s121, %s135
      %p137 = scmp.eq.s32.totalorder %s43, 0
      %p138 = por %p136, %p137
      %s140 = sadd.s32 %s139, 1
      %p143 = scmp.eq.s32.totalorder %s37, 2
      %p144 = scmp.ne.s32.totalorder %s139, %s141
      %p145 = scmp.eq.s32.totalorder %s37, 0
      %p146 = por %p144, %p145
      %p147 = scmp.ne.s32.totalorder %s139, %s141
      %p148 = scmp.eq.s32.totalorder %s42, 2
      %p149 = por %p147, %p148
      %p150 = scmp.ne.s32.totalorder %s141, %s142
      %p151 = scmp.eq.s32.totalorder %s42, 0
      %p152 = por %p150, %p151
      %p153 = scmp.ne.s32.totalorder %s141, %s142
      %p154 = scmp.eq.s32.totalorder %s43, 2
      %p155 = por %p153, %p154
      %p157 = scmp.ne.s32.totalorder %s142, %s156
      %p158 = scmp.eq.s32.totalorder %s43, 0
      %p159 = por %p157, %p158
      %s160 = sld [smem:[#allocation5 + %s37]]
      %s161 = sld [smem:[#allocation5 + %s44]]
      %s162 = ssub.s32 %s160, %s161
      %p163 = scmp.eq.s32.totalorder %s162, 0
      %s165 = sadd.s32 %s164, 1
      %s166 = scalar_select %p163, %s164, %s165
      %p169 = pneg %p163
      %p170 = scmp.eq.s32.totalorder %s37, 2
      %p171 = por %p169, %p170
      %p172 = scmp.ne.s32.totalorder %s164, %s167
      %p173 = scmp.eq.s32.totalorder %s37, 0
      %p174 = por %p172, %p173
      %p175 = scmp.ne.s32.totalorder %s164, %s167
      %p176 = scmp.eq.s32.totalorder %s42, 2
      %p177 = por %p175, %p176
      %p178 = scmp.ne.s32.totalorder %s167, %s168
      %p179 = scmp.eq.s32.totalorder %s42, 0
      %p180 = por %p178, %p179
      %p181 = scmp.ne.s32.totalorder %s167, %s168
      %p182 = scmp.eq.s32.totalorder %s43, 2
      %p183 = por %p181, %p182
      %p185 = scmp.ne.s32.totalorder %s168, %s184
      %p186 = scmp.eq.s32.totalorder %s43, 0
      %p187 = por %p185, %p186
      %s188 = sld [smem:[#allocation5 + %s37]]
      %s189 = sld [smem:[#allocation5 + %s44]]
      %s190 = ssub.s32 %s188, %s189
      %p191 = scmp.eq.s32.totalorder %s190, 0
      %s193 = sadd.s32 %s192, 1
      %s194 = scalar_select %p191, %s192, %s193
      %p197 = pneg %p191
      %p198 = scmp.eq.s32.totalorder %s37, 2
      %p199 = por %p197, %p198
      %p200 = scmp.ne.s32.totalorder %s192, %s195
      %p201 = scmp.eq.s32.totalorder %s37, 0
      %p202 = por %p200, %p201
      %p203 = scmp.ne.s32.totalorder %s192, %s195
      %p204 = scmp.eq.s32.totalorder %s42, 2
      %p205 = por %p203, %p204
      %p206 = scmp.ne.s32.totalorder %s195, %s196
      %p207 = scmp.eq.s32.totalorder %s42, 0
      %p208 = por %p206, %p207
      %p209 = scmp.ne.s32.totalorder %s195, %s196
      %p210 = scmp.eq.s32.totalorder %s43, 2
      %p211 = por %p209, %p210
      %p213 = scmp.ne.s32.totalorder %s196, %s212
      %p214 = scmp.eq.s32.totalorder %s43, 0
      %p215 = por %p213, %p214
      %s216 = sld [smem:[#allocation5 + %s37]]
      %s217 = sld [smem:[#allocation5 + %s44]]
      %s218 = ssub.s32 %s216, %s217
      %p219 = scmp.eq.s32.totalorder %s218, 0
      %s221 = sadd.s32 %s220, 1
      %s222 = scalar_select %p219, %s220, %s221
      %p225 = pneg %p219
      %p226 = scmp.eq.s32.totalorder %s37, 2
      %p227 = por %p225, %p226
      %p228 = scmp.ne.s32.totalorder %s220, %s223
      %p229 = scmp.eq.s32.totalorder %s37, 0
      %p230 = por %p228, %p229
      %p231 = scmp.ne.s32.totalorder %s220, %s223
      %p232 = scmp.eq.s32.totalorder %s42, 2
      %p233 = por %p231, %p232
      %p234 = scmp.ne.s32.totalorder %s223, %s224
      %p235 = scmp.eq.s32.totalorder %s42, 0
      %p236 = por %p234, %p235
      %p237 = scmp.ne.s32.totalorder %s223, %s224
      %p238 = scmp.eq.s32.totalorder %s43, 2
      %p239 = por %p237, %p238
      %p241 = scmp.ne.s32.totalorder %s224, %s240
      %p242 = scmp.eq.s32.totalorder %s43, 0
      %p243 = por %p241, %p242
      %s244 = sld [smem:[#allocation5 + %s37]]
      %s245 = sld [smem:[#allocation5 + %s44]]
      %s246 = ssub.s32 %s244, %s245
      %p247 = scmp.eq.s32.totalorder %s246, 0
      %s249 = sadd.s32 %s248, 1
      %s250 = scalar_select %p247, %s248, %s249
      %p253 = pneg %p247
      %p254 = scmp.eq.s32.totalorder %s37, 2
      %p255 = por %p253, %p254
      %p256 = scmp.ne.s32.totalorder %s248, %s251
      %p257 = scmp.eq.s32.totalorder %s37, 0
      %p258 = por %p256, %p257
      %p259 = scmp.ne.s32.totalorder %s248, %s251
      %p260 = scmp.eq.s32.totalorder %s42, 2
      %p261 = por %p259, %p260
      %p262 = scmp.ne.s32.totalorder %s251, %s252
      %p263 = scmp.eq.s32.totalorder %s42, 0
      %p264 = por %p262, %p263
      %p265 = scmp.ne.s32.totalorder %s251, %s252
      %p266 = scmp.eq.s32.totalorder %s43, 2
      %p267 = por %p265, %p266
      %p269 = scmp.ne.s32.totalorder %s252, %s268
      %p270 = scmp.eq.s32.totalorder %s43, 0
      %p271 = por %p269, %p270
      %s272 = sld [smem:[#allocation5 + %s37]]
      %s273 = sld [smem:[#allocation5 + %s44]]
      %s274 = ssub.s32 %s272, %s273
      %p275 = scmp.eq.s32.totalorder %s274, 0
      %s277 = sadd.s32 %s276, 1
      %s278 = scalar_select %p275, %s276, %s277
      %p281 = pneg %p275
      %p282 = scmp.eq.s32.totalorder %s37, 2
      %p283 = por %p281, %p282
      %p284 = scmp.ne.s32.totalorder %s276, %s279
      %p285 = scmp.eq.s32.totalorder %s37, 0
      %p286 = por %p284, %p285
      %p287 = scmp.ne.s32.totalorder %s276, %s279
      %p288 = scmp.eq.s32.totalorder %s42, 2
      %p289 = por %p287, %p288
      %p290 = scmp.ne.s32.totalorder %s279, %s280
      %p291 = scmp.eq.s32.totalorder %s42, 0
      %p292 = por %p290, %p291
      %p293 = scmp.ne.s32.totalorder %s279, %s280
      %p294 = scmp.eq.s32.totalorder %s43, 2
      %p295 = por %p293, %p294
      %p297 = scmp.ne.s32.totalorder %s280, %s296
      %p298 = scmp.eq.s32.totalorder %s43, 0
      %p299 = por %p297, %p298
      %p300 = scmp.le.s32.totalorder 1, %s37
      %p301 = scmp.lt.s32.totalorder %s37, 4
      %p302 = pnand %p300, %p301
      %p303 = pneg %p302
      // Predicated region
      $region9: #{tpu_custom_call.1} parent=5 // pred_check
        _
      $region10: #{tpu_custom_call.1} parent=5 // pred_check_branch
        %305 = sbr.rel (%p302) target = $region12
      $region11: #{tpu_custom_call.1} parent=5 // pred_region
        %s306 = ssub.s32 %s37, 1
        // Predicated region
        $region13: #{tpu_custom_call.1} parent=11 // pred_check
          %p307 = pneg %p84
        $region14: #{tpu_custom_call.1} parent=11 // pred_check_branch
          %309 = sbr.rel (%p307) target = $region16
        $region15: #{tpu_custom_call.1} parent=11 // pred_region
          %s311 = ssub.s32 1024, 1024
          %312 = vsyncadd [#allocation12], %s311
          %s313 = sshll.u32 [#allocation11], 4
          %s314 = int_to_ptr.vmem [resolvable:$true] %s313
          %319 = dma.hbm_to_vmem [thread:$0]  %s4, 1024, %s314, [#allocation12], 64, 64, 4
        $region16: #{tpu_custom_call.1} parent=11 // pred_fallthru
          _
        // Predicated region
        $region17: #{tpu_custom_call.1} parent=11 // pred_check
          %p320 = pneg %p131
        $region18: #{tpu_custom_call.1} parent=11 // pred_check_branch
          %322 = sbr.rel (%p320) target = $region20
        $region19: #{tpu_custom_call.1} parent=11 // pred_region
          _
        $region20: #{tpu_custom_call.1} parent=11 // pred_fallthru
          _
        // Predicated region
        $region21: #{tpu_custom_call.1} parent=11 // pred_check
          %p323 = pneg %p152
        $region22: #{tpu_custom_call.1} parent=11 // pred_check_branch
          %325 = sbr.rel (%p323) target = $region24
        $region23: #{tpu_custom_call.1} parent=11 // pred_region
          _
        $region24: #{tpu_custom_call.1} parent=11 // pred_fallthru
          _
      $region12: #{tpu_custom_call.1} parent=5 // pred_fallthru
        _
      %p326 = scmp.lt.s32.totalorder %s37, 3
      // Predicated region
      $region25: #{tpu_custom_call.1} parent=5 // pred_check
        %p327 = pneg %p326
      $region26: #{tpu_custom_call.1} parent=5 // pred_check_branch
        %329 = sbr.rel (%p327) target = $region28
      $region27: #{tpu_custom_call.1} parent=5 // pred_region
        // Predicated region
        $region29: #{tpu_custom_call.1} parent=27 // pred_check
          %p330 = pneg %p57
        $region30: #{tpu_custom_call.1} parent=27 // pred_check_branch
          %332 = sbr.rel (%p330) target = $region32
        $region31: #{tpu_custom_call.1} parent=27 // pred_region
          %s333 = sand.u32 %s37, 1
          %s334 = scalar_lea.sflag [#allocation9], %s333
          %s335 = sand.u32 %s47, 1
          %s336 = smul.addr %s335, 64
          %s337 = scalar_lea.vmem [#allocation8], %s336
          %s339 = ssub.s32 1024, 1024
          %340 = vsyncadd %s334, %s339
          %s341 = smul.addr %s37, 16
          %s342 = smul.addr %s341, 64
          %s343 = scalar_lea.hbm %s3, %s342
          %s344 = sshll.u32 %s337, 4
          %s345 = int_to_ptr.vmem [resolvable:$true] %s344
          %350 = dma.hbm_to_vmem [thread:$0]  %s343, 1024, %s345, %s334, 64, 64, 4
        $region32: #{tpu_custom_call.1} parent=27 // pred_fallthru
          _
        // Predicated region
        $region33: #{tpu_custom_call.1} parent=27 // pred_check
          %p351 = pneg %p104
        $region34: #{tpu_custom_call.1} parent=27 // pred_check_branch
          %353 = sbr.rel (%p351) target = $region36
        $region35: #{tpu_custom_call.1} parent=27 // pred_region
          %s354 = sand.u32 %s37, 1
          %s355 = scalar_lea.sflag [#allocation9], %s354
          %s356 = sand.u32 %s94, 1
          %s357 = smul.addr %s356, 640
          %s358 = scalar_lea.vmem [#allocation13], %s357
          %s360 = ssub.s32 10240, 10240
          %361 = vsyncadd %s355, %s360
          %s362 = smul.addr %s37, 160
          %s363 = smul.addr %s362, 64
          %s364 = scalar_lea.hbm %s5, %s363
          %s365 = sshll.u32 %s358, 4
          %s366 = int_to_ptr.vmem [resolvable:$true] %s365
          %371 = dma.hbm_to_vmem [thread:$0]  %s364, 10240, %s366, %s355, 128, 128, 8
        $region36: #{tpu_custom_call.1} parent=27 // pred_fallthru
          _
        // Predicated region
        $region37: #{tpu_custom_call.1} parent=27 // pred_check
          %p372 = pneg %p174
        $region38: #{tpu_custom_call.1} parent=27 // pred_check_branch
          %374 = sbr.rel (%p372) target = $region40
        $region39: #{tpu_custom_call.1} parent=27 // pred_region
          %s375 = sand.u32 %s37, 1
          %s376 = scalar_lea.sflag [#allocation9], %s375
          %s377 = sand.u32 %s164, 1
          %s378 = smul.addr %s377, 256
          %s379 = scalar_lea.vmem [#allocation14], %s378
          %s380 = sld [smem:[#allocation5 + %s37]]
          %s382 = ssub.s32 4096, 4096
          %383 = vsyncadd %s376, %s382
          %s384 = smul.addr %s380, 64
          %s385 = smul.addr %s384, 64
          %s386 = scalar_lea.hbm %s8, %s385
          %s387 = sshll.u32 %s379, 4
          %s388 = int_to_ptr.vmem [resolvable:$true] %s387
          %393 = dma.hbm_to_vmem [thread:$0]  %s386, 4096, %s388, %s376, 128, 128, 8
        $region40: #{tpu_custom_call.1} parent=27 // pred_fallthru
          _
        // Predicated region
        $region41: #{tpu_custom_call.1} parent=27 // pred_check
          %p394 = pneg %p202
        $region42: #{tpu_custom_call.1} parent=27 // pred_check_branch
          %396 = sbr.rel (%p394) target = $region44
        $region43: #{tpu_custom_call.1} parent=27 // pred_region
          %s397 = sld [smem:[#allocation5 + %s37]]
          %p398 = scmp.lt.s32.totalorder %s397, 1
          %s399 = scalar_select %p398, %s397, 1
          %s400 = smul.addr %s399, 2
          %s401 = scalar_lea.vmem %s9, %s400
          %s402 = sld [smem:[#allocation5 + %s37]]
        $region44: #{tpu_custom_call.1} parent=27 // pred_fallthru
          _
        // Predicated region
        $region45: #{tpu_custom_call.1} parent=27 // pred_check
          %p403 = pneg %p230
        $region46: #{tpu_custom_call.1} parent=27 // pred_check_branch
          %405 = sbr.rel (%p403) target = $region48
        $region47: #{tpu_custom_call.1} parent=27 // pred_region
          %s406 = sand.u32 %s37, 1
          %s407 = scalar_lea.sflag [#allocation9], %s406
          %s408 = sand.u32 %s220, 1
          %s409 = smul.addr %s408, 2
          %s410 = scalar_lea.vmem [#allocation15], %s409
          %s411 = sld [smem:[#allocation5 + %s37]]
          %s413 = ssub.s32 32, 32
          %414 = vsyncadd %s407, %s413
          %s415 = smul.addr %s411, 2
          %s416 = smul.addr %s415, 16
          %s417 = scalar_lea.hbm %s10, %s416
          %s419 = sshll.u32 %s410, 4
          %s420 = int_to_ptr.vmem [resolvable:$true] %s419
          %422 = dma.hbm_to_vmem [thread:$0]  %s417, 32, %s420, %s407
        $region48: #{tpu_custom_call.1} parent=27 // pred_fallthru
          _
      $region28: #{tpu_custom_call.1} parent=5 // pred_fallthru
        _
      %p423 = scmp.le.s32.totalorder 1, %s37
      %p424 = scmp.lt.s32.totalorder %s37, 4
      %p425 = pnand %p423, %p424
      %p426 = pneg %p425
      // Predicated region
      $region49: #{tpu_custom_call.1} parent=5 // pred_check
        _
      $region50: #{tpu_custom_call.1} parent=5 // pred_check_branch
        %428 = sbr.rel (%p425) target = $region52
      $region51: #{tpu_custom_call.1} parent=5 // pred_region
        %s429 = ssub.s32 %s37, 1
        %s430 = sand.u32 %s42, 1
        %s431 = scalar_lea.sflag [#allocation9], %s430
        %s432 = sand.u32 %s50, 1
        %s433 = smul.addr %s432, 64
        %s434 = scalar_lea.vmem [#allocation8], %s433
        // Predicated region
        $region53: #{tpu_custom_call.1} parent=51 // pred_check
          %p435 = pneg %p63
        $region54: #{tpu_custom_call.1} parent=51 // pred_check_branch
          %437 = sbr.rel (%p435) target = $region56
        $region55: #{tpu_custom_call.1} parent=51 // pred_region
          %438 = dma.done %s431, 1024
        $region56: #{tpu_custom_call.1} parent=51 // pred_fallthru
          _
        // Predicated region
        $region57: #{tpu_custom_call.1} parent=51 // pred_check
          %p439 = pneg %p84
        $region58: #{tpu_custom_call.1} parent=51 // pred_check_branch
          %441 = sbr.rel (%p439) target = $region60
        $region59: #{tpu_custom_call.1} parent=51 // pred_region
          %442 = dma.done [#allocation12], 1024
        $region60: #{tpu_custom_call.1} parent=51 // pred_fallthru
          _
        %s443 = sand.u32 %s42, 1
        %s444 = scalar_lea.sflag [#allocation9], %s443
        %s445 = sand.u32 %s97, 1
        %s446 = smul.addr %s445, 640
        %s447 = scalar_lea.vmem [#allocation13], %s446
        // Predicated region
        $region61: #{tpu_custom_call.1} parent=51 // pred_check
          %p448 = pneg %p110
        $region62: #{tpu_custom_call.1} parent=51 // pred_check_branch
          %450 = sbr.rel (%p448) target = $region64
        $region63: #{tpu_custom_call.1} parent=51 // pred_region
          %451 = dma.done %s444, 10240
        $region64: #{tpu_custom_call.1} parent=51 // pred_fallthru
          _
        %s452 = sand.u32 %s42, 1
        %s453 = scalar_lea.sflag [#allocation9], %s452
        %s454 = sand.u32 %s167, 1
        %s455 = smul.addr %s454, 256
        %s456 = scalar_lea.vmem [#allocation14], %s455
        // Predicated region
        $region65: #{tpu_custom_call.1} parent=51 // pred_check
          %p457 = pneg %p180
        $region66: #{tpu_custom_call.1} parent=51 // pred_check_branch
          %459 = sbr.rel (%p457) target = $region68
        $region67: #{tpu_custom_call.1} parent=51 // pred_region
          %460 = dma.done %s453, 4096
        $region68: #{tpu_custom_call.1} parent=51 // pred_fallthru
          _
        %s461 = sand.u32 %s42, 1
        %s462 = scalar_lea.sflag [#allocation9], %s461
        %s463 = sand.u32 %s223, 1
        %s464 = smul.addr %s463, 2
        %s465 = scalar_lea.vmem [#allocation15], %s464
        // Predicated region
        $region69: #{tpu_custom_call.1} parent=51 // pred_check
          %p466 = pneg %p236
        $region70: #{tpu_custom_call.1} parent=51 // pred_check_branch
          %468 = sbr.rel (%p466) target = $region72
        $region71: #{tpu_custom_call.1} parent=51 // pred_region
          %469 = dma.done %s462, 32
        $region72: #{tpu_custom_call.1} parent=51 // pred_fallthru
          _
        %s470 = sand.u32 %s42, 1
        %s471 = scalar_lea.sflag [#allocation9], %s470
        %s472 = sand.u32 %s50, 1
        %s473 = smul.addr %s472, 64
        %s474 = scalar_lea.vmem [#allocation8], %s473
        %p475 = pneg %p63
        %p476 = pneg %p60
        %p477 = pneg %p84
        %p478 = pneg %p81
        %s479 = sand.u32 %s42, 1
        %s480 = scalar_lea.sflag [#allocation9], %s479
        %s481 = sand.u32 %s97, 1
        %s482 = smul.addr %s481, 640
        %s483 = scalar_lea.vmem [#allocation13], %s482
        %p484 = pneg %p110
        %p485 = pneg %p107
        %p486 = pneg %p131
        %p487 = pneg %p128
        %p488 = pneg %p152
        %p489 = pneg %p149
        %s490 = sand.u32 %s42, 1
        %s491 = scalar_lea.sflag [#allocation9], %s490
        %s492 = sand.u32 %s167, 1
        %s493 = smul.addr %s492, 256
        %s494 = scalar_lea.vmem [#allocation14], %s493
        %p495 = pneg %p180
        %p496 = pneg %p177
        %s497 = sld [smem:[#allocation5 + %s42]]
        %p498 = scmp.lt.s32.totalorder %s497, 1
        %s499 = scalar_select %p498, %s497, 1
        %s500 = smul.addr %s499, 2
        %s501 = scalar_lea.vmem %s9, %s500
        %p502 = pneg %p208
        %p503 = pneg %p205
        %s504 = sand.u32 %s42, 1
        %s505 = scalar_lea.sflag [#allocation9], %s504
        %s506 = sand.u32 %s223, 1
        %s507 = smul.addr %s506, 2
        %s508 = scalar_lea.vmem [#allocation15], %s507
        %p509 = pneg %p236
        %p510 = pneg %p233
        %p511 = pneg %p264
        %p512 = pneg %p261
        %s513 = sand.u32 %s251, 1
        %s514 = scalar_lea.sflag [#allocation10], %s513
        %s515 = sand.u32 %s251, 1
        %s516 = smul.addr %s515, 128
        %s517 = scalar_lea.vmem [#allocation16], %s516
        %p518 = pneg %p292
        %p519 = pneg %p289
        %s520 = sand.u32 %s279, 1
        %s521 = scalar_lea.sflag [#allocation18], %s520
        %s522 = sand.u32 %s279, 1
        %s523 = smul.addr %s522, 128
        %s524 = scalar_lea.vmem [#allocation17], %s523
        %s525 = sld [smem:[#allocation5 + %s42]]
        %s526 = sld [smem:[#allocation5 + %s42]]
        %p527 = scmp.lt.s32.totalorder %s526, 1
        %s528 = scalar_select %p527, %s526, 1
        %s529 = smul.addr %s528, 2
        %s530 = scalar_lea.vmem %s9, %s529
        %s531 = sld [smem:[#allocation5 + %s42]]
        %s532 = sld [smem:[#allocation5 + %s42]]
        %s533 = sld [smem:[#allocation5 + %s42]]
        %s534 = sld [smem:[#allocation5 + %s42]]
        %s536 = sld [smem:[#allocation6 + %s42]]
        %v537 = vld [vmem:[%s434] sm:$0xf]
        %v538 = vld [vmem:[%s434 + $0x4] sm:$0xf]
        %v539 = vld [vmem:[%s434 + $0x8] sm:$0xf]
        %v540 = vld [vmem:[%s434 + $0xc] sm:$0xf]
        %v541 = vld [vmem:[%s434 + $0x10] sm:$0xf]
        %v542 = vld [vmem:[%s434 + $0x14] sm:$0xf]
        %v543 = vld [vmem:[%s434 + $0x18] sm:$0xf]
        %v544 = vld [vmem:[%s434 + $0x1c] sm:$0xf]
        %v545 = vld [vmem:[%s434 + $0x20] sm:$0xf]
        %v546 = vld [vmem:[%s434 + $0x24] sm:$0xf]
        %v547 = vld [vmem:[%s434 + $0x28] sm:$0xf]
        %v548 = vld [vmem:[%s434 + $0x2c] sm:$0xf]
        %v549 = vld [vmem:[%s434 + $0x30] sm:$0xf]
        %v550 = vld [vmem:[%s434 + $0x34] sm:$0xf]
        %v551 = vld [vmem:[%s434 + $0x38] sm:$0xf]
        %v552 = vld [vmem:[%s434 + $0x3c] sm:$0xf]
        %v553 = vld [vmem:[#allocation11] sm:$0xf]
        %v554 = vld [vmem:[#allocation11 + $0x4] sm:$0xf]
        %v555 = vld [vmem:[#allocation11 + $0x8] sm:$0xf]
        %v556 = vld [vmem:[#allocation11 + $0xc] sm:$0xf]
        %v557 = vld [vmem:[#allocation11 + $0x10] sm:$0xf]
        %v558 = vld [vmem:[#allocation11 + $0x14] sm:$0xf]
        %v559 = vld [vmem:[#allocation11 + $0x18] sm:$0xf]
        %v560 = vld [vmem:[#allocation11 + $0x1c] sm:$0xf]
        %v561 = vld [vmem:[#allocation11 + $0x20] sm:$0xf]
        %v562 = vld [vmem:[#allocation11 + $0x24] sm:$0xf]
        %v563 = vld [vmem:[#allocation11 + $0x28] sm:$0xf]
        %v564 = vld [vmem:[#allocation11 + $0x2c] sm:$0xf]
        %v565 = vld [vmem:[#allocation11 + $0x30] sm:$0xf]
        %v566 = vld [vmem:[#allocation11 + $0x34] sm:$0xf]
        %v567 = vld [vmem:[#allocation11 + $0x38] sm:$0xf]
        %v568 = vld [vmem:[#allocation11 + $0x3c] sm:$0xf]
        %v585 = vunpack.c.l.b16 %v537
        %v586 = vunpack.c.l.b16 %v538
        %v587 = vunpack.c.l.b16 %v539
        %v588 = vunpack.c.l.b16 %v540
        %v589 = vunpack.c.l.b16 %v541
        %v590 = vunpack.c.l.b16 %v542
        %v591 = vunpack.c.l.b16 %v543
        %v592 = vunpack.c.l.b16 %v544
        %v593 = vunpack.c.l.b16 %v545
        %v594 = vunpack.c.l.b16 %v546
        %v595 = vunpack.c.l.b16 %v547
        %v596 = vunpack.c.l.b16 %v548
        %v597 = vunpack.c.l.b16 %v549
        %v598 = vunpack.c.l.b16 %v550
        %v599 = vunpack.c.l.b16 %v551
        %v600 = vunpack.c.l.b16 %v552
        %v601 = vpack.c.b16 %v586, %v585
        %v602 = vpack.c.b16 %v588, %v587
        %v603 = vpack.c.b16 %v590, %v589
        %v604 = vpack.c.b16 %v592, %v591
        %v605 = vpack.c.b16 %v594, %v593
        %v606 = vpack.c.b16 %v596, %v595
        %v607 = vpack.c.b16 %v598, %v597
        %v608 = vpack.c.b16 %v600, %v599
        %v633 = vunpack.c.l.b16 %v553
        %v634 = vunpack.c.l.b16 %v554
        %v635 = vunpack.c.l.b16 %v555
        %v636 = vunpack.c.l.b16 %v556
        %v637 = vunpack.c.l.b16 %v557
        %v638 = vunpack.c.l.b16 %v558
        %v639 = vunpack.c.l.b16 %v559
        %v640 = vunpack.c.l.b16 %v560
        %v641 = vunpack.c.l.b16 %v561
        %v642 = vunpack.c.l.b16 %v562
        %v643 = vunpack.c.l.b16 %v563
        %v644 = vunpack.c.l.b16 %v564
        %v645 = vunpack.c.l.b16 %v565
        %v646 = vunpack.c.l.b16 %v566
        %v647 = vunpack.c.l.b16 %v567
        %v648 = vunpack.c.l.b16 %v568
        %v649 = vpack.c.b16 %v634, %v633
        %v650 = vpack.c.b16 %v636, %v635
        %v651 = vpack.c.b16 %v638, %v637
        %v652 = vpack.c.b16 %v640, %v639
        %v653 = vpack.c.b16 %v642, %v641
        %v654 = vpack.c.b16 %v644, %v643
        %v655 = vpack.c.b16 %v646, %v645
        %v656 = vpack.c.b16 %v648, %v647
        %665 = vmatprep.subr.bf16.mxu0 0
        %666 = vmatpush1.bf16.msra.mxu0 %v656
        %667 = vmatprep.subr.bf16.mxu0 0
        %668 = vmatpush1.bf16.msra.mxu0 %v655
        %669 = vmatprep.subr.bf16.mxu0 0
        %670 = vmatpush1.bf16.msra.mxu0 %v654
        %671 = vmatprep.subr.bf16.mxu0 0
        %672 = vmatpush1.bf16.msra.mxu0 %v653
        %673 = vmatprep.subr.bf16.mxu0 0
        %674 = vmatpush1.bf16.msra.mxu0 %v652
        %675 = vmatprep.subr.bf16.mxu0 0
        %676 = vmatpush1.bf16.msra.mxu0 %v651
        %677 = vmatprep.subr.bf16.mxu0 0
        %678 = vmatpush1.bf16.msra.mxu0 %v650
        %679 = vmatprep.subr.bf16.mxu0 0
        %680 = vmatpush1.bf16.msra.mxu0 %v649
        %681 = vmatprep.subr.bf16.mxu0 0
        %682 = vmatpush2.bf16.msra.mxu0 0
        %683 = vmatprep.subr.bf16.mxu0 0
        %684 = vmatpush2.bf16.msra.mxu0 0
        %685 = vmatprep.subr.bf16.mxu0 0
        %686 = vmatpush2.bf16.msra.mxu0 0
        %687 = vmatprep.subr.bf16.mxu0 0
        %688 = vmatpush2.bf16.msra.mxu0 0
        %689 = vmatprep.subr.bf16.mxu0 0
        %690 = vmatpush2.bf16.msra.mxu0 0
        %691 = vmatprep.subr.bf16.mxu0 0
        %692 = vmatpush2.bf16.msra.mxu0 0
        %693 = vmatprep.subr.bf16.mxu0 0
        %694 = vmatpush2.bf16.msra.mxu0 0
        %695 = vmatprep.subr.bf16.mxu0 0
        %696 = vmatpush2.bf16.msra.mxu0 0
        %697 = vmatprep.mubr.bf16.mxu0 0
        %698 = vmatmul.mubr.bf16.gmra.mxu0 %v601
        %v699 = vpop.f32.mrf.mxu0
        %v700 = vadd.f32 0.0, %v699
        %v701 = vpop.f32.mrf.mxu0
        %v702 = vpop.f32.mrf.mxu0
        %v703 = vadd.f32 0.0, %v702
        %v704 = vpop.f32.mrf.mxu0
        %705 = vmatprep.mubr.bf16.mxu0 0
        %706 = vmatmul.mubr.bf16.gmra.mxu0 %v602
        %v707 = vpop.f32.mrf.mxu0
        %v708 = vadd.f32 0.0, %v707
        %v709 = vpop.f32.mrf.mxu0
        %v710 = vpop.f32.mrf.mxu0
        %v711 = vadd.f32 0.0, %v710
        %v712 = vpop.f32.mrf.mxu0
        %713 = vmatprep.mubr.bf16.mxu0 0
        %714 = vmatmul.mubr.bf16.gmra.mxu0 %v603
        %v715 = vpop.f32.mrf.mxu0
        %v716 = vadd.f32 0.0, %v715
        %v717 = vpop.f32.mrf.mxu0
        %v718 = vpop.f32.mrf.mxu0
        %v719 = vadd.f32 0.0, %v718
        %v720 = vpop.f32.mrf.mxu0
        %721 = vmatprep.mubr.bf16.mxu0 0
        %722 = vmatmul.mubr.bf16.gmra.mxu0 %v604
        %v723 = vpop.f32.mrf.mxu0
        %v724 = vadd.f32 0.0, %v723
        %v725 = vpop.f32.mrf.mxu0
        %v726 = vpop.f32.mrf.mxu0
        %v727 = vadd.f32 0.0, %v726
        %v728 = vpop.f32.mrf.mxu0
        %729 = vmatprep.mubr.bf16.mxu0 0
        %730 = vmatmul.mubr.bf16.gmra.mxu0 %v605
        %v731 = vpop.f32.mrf.mxu0
        %v732 = vadd.f32 0.0, %v731
        %v733 = vpop.f32.mrf.mxu0
        %v734 = vpop.f32.mrf.mxu0
        %v735 = vadd.f32 0.0, %v734
        %v736 = vpop.f32.mrf.mxu0
        %737 = vmatprep.mubr.bf16.mxu0 0
        %738 = vmatmul.mubr.bf16.gmra.mxu0 %v606
        %v739 = vpop.f32.mrf.mxu0
        %v740 = vadd.f32 0.0, %v739
        %v741 = vpop.f32.mrf.mxu0
        %v742 = vpop.f32.mrf.mxu0
        %v743 = vadd.f32 0.0, %v742
        %v744 = vpop.f32.mrf.mxu0
        %745 = vmatprep.mubr.bf16.mxu0 0
        %746 = vmatmul.mubr.bf16.gmra.mxu0 %v607
        %v747 = vpop.f32.mrf.mxu0
        %v748 = vadd.f32 0.0, %v747
        %v749 = vpop.f32.mrf.mxu0
        %v750 = vpop.f32.mrf.mxu0
        %v751 = vadd.f32 0.0, %v750
        %v752 = vpop.f32.mrf.mxu0
        %753 = vmatprep.mubr.bf16.mxu0 0
        %754 = vmatmul.mubr.bf16.gmra.mxu0 %v608
        %v755 = vpop.f32.mrf.mxu0
        %v756 = vadd.f32 0.0, %v755
        %v757 = vpop.f32.mrf.mxu0
        %v758 = vpop.f32.mrf.mxu0
        %v759 = vadd.f32 0.0, %v758
        %v760 = vpop.f32.mrf.mxu0
        %761 = vdwg.mxu0
        %v762 = vpack.c.bf16 %v703, %v700
        %v763 = vpack.c.bf16 %v711, %v708
        %v764 = vpack.c.bf16 %v719, %v716
        %v765 = vpack.c.bf16 %v727, %v724
        %v766 = vpack.c.bf16 %v735, %v732
        %v767 = vpack.c.bf16 %v743, %v740
        %v768 = vpack.c.bf16 %v751, %v748
        %v769 = vpack.c.bf16 %v759, %v756
        %770 = vmatprep.subr.bf16.mxu0 0
        %771 = vmatpush1.bf16.msra.mxu0 %v769
        %772 = vmatprep.subr.bf16.mxu0 0
        %773 = vmatpush1.bf16.msra.mxu0 %v768
        %774 = vmatprep.subr.bf16.mxu0 0
        %775 = vmatpush1.bf16.msra.mxu0 %v767
        %776 = vmatprep.subr.bf16.mxu0 0
        %777 = vmatpush1.bf16.msra.mxu0 %v766
        %778 = vmatprep.subr.bf16.mxu0 0
        %779 = vmatpush1.bf16.msra.mxu0 %v765
        %780 = vmatprep.subr.bf16.mxu0 0
        %781 = vmatpush1.bf16.msra.mxu0 %v764
        %782 = vmatprep.subr.bf16.mxu0 0
        %783 = vmatpush1.bf16.msra.mxu0 %v763
        %784 = vmatprep.subr.bf16.mxu0 0
        %785 = vmatpush1.bf16.msra.mxu0 %v762
        %786 = vmatprep.subr.bf16.mxu0 0
        %787 = vmatpush2.bf16.msra.mxu0 0
        %788 = vmatprep.subr.bf16.mxu0 0
        %789 = vmatpush2.bf16.msra.mxu0 0
        %790 = vmatprep.subr.bf16.mxu0 0
        %791 = vmatpush2.bf16.msra.mxu0 0
        %792 = vmatprep.subr.bf16.mxu0 0
        %793 = vmatpush2.bf16.msra.mxu0 0
        %794 = vmatprep.subr.bf16.mxu0 0
        %795 = vmatpush2.bf16.msra.mxu0 0
        %796 = vmatprep.subr.bf16.mxu0 0
        %797 = vmatpush2.bf16.msra.mxu0 0
        %798 = vmatprep.subr.bf16.mxu0 0
        %799 = vmatpush2.bf16.msra.mxu0 0
        %800 = vmatprep.subr.bf16.mxu0 0
        %801 = vmatpush2.bf16.msra.mxu0 0
        %802 = vmatprep.mubr.bf16.mxu0 0
        %803 = vmatmul.mubr.bf16.gmra.mxu0 %v601
        %v804 = vpop.f32.mrf.mxu0
        %v805 = vadd.f32 0.0, %v804
        %v806 = vpop.f32.mrf.mxu0
        %v807 = vpop.f32.mrf.mxu0
        %v808 = vadd.f32 0.0, %v807
        %v809 = vpop.f32.mrf.mxu0
        %810 = vmatprep.mubr.bf16.mxu0 0
        %811 = vmatmul.mubr.bf16.gmra.mxu0 %v602
        %v812 = vpop.f32.mrf.mxu0
        %v813 = vadd.f32 0.0, %v812
        %v814 = vpop.f32.mrf.mxu0
        %v815 = vpop.f32.mrf.mxu0
        %v816 = vadd.f32 0.0, %v815
        %v817 = vpop.f32.mrf.mxu0
        %818 = vmatprep.mubr.bf16.mxu0 0
        %819 = vmatmul.mubr.bf16.gmra.mxu0 %v603
        %v820 = vpop.f32.mrf.mxu0
        %v821 = vadd.f32 0.0, %v820
        %v822 = vpop.f32.mrf.mxu0
        %v823 = vpop.f32.mrf.mxu0
        %v824 = vadd.f32 0.0, %v823
        %v825 = vpop.f32.mrf.mxu0
        %826 = vmatprep.mubr.bf16.mxu0 0
        %827 = vmatmul.mubr.bf16.gmra.mxu0 %v604
        %v828 = vpop.f32.mrf.mxu0
        %v829 = vadd.f32 0.0, %v828
        %v830 = vpop.f32.mrf.mxu0
        %v831 = vpop.f32.mrf.mxu0
        %v832 = vadd.f32 0.0, %v831
        %v833 = vpop.f32.mrf.mxu0
        %834 = vmatprep.mubr.bf16.mxu0 0
        %835 = vmatmul.mubr.bf16.gmra.mxu0 %v605
        %v836 = vpop.f32.mrf.mxu0
        %v837 = vadd.f32 0.0, %v836
        %v838 = vpop.f32.mrf.mxu0
        %v839 = vpop.f32.mrf.mxu0
        %v840 = vadd.f32 0.0, %v839
        %v841 = vpop.f32.mrf.mxu0
        %842 = vmatprep.mubr.bf16.mxu0 0
        %843 = vmatmul.mubr.bf16.gmra.mxu0 %v606
        %v844 = vpop.f32.mrf.mxu0
        %v845 = vadd.f32 0.0, %v844
        %v846 = vpop.f32.mrf.mxu0
        %v847 = vpop.f32.mrf.mxu0
        %v848 = vadd.f32 0.0, %v847
        %v849 = vpop.f32.mrf.mxu0
        %850 = vmatprep.mubr.bf16.mxu0 0
        %851 = vmatmul.mubr.bf16.gmra.mxu0 %v607
        %v852 = vpop.f32.mrf.mxu0
        %v853 = vadd.f32 0.0, %v852
        %v854 = vpop.f32.mrf.mxu0
        %v855 = vpop.f32.mrf.mxu0
        %v856 = vadd.f32 0.0, %v855
        %v857 = vpop.f32.mrf.mxu0
        %858 = vmatprep.mubr.bf16.mxu0 0
        %859 = vmatmul.mubr.bf16.gmra.mxu0 %v608
        %v860 = vpop.f32.mrf.mxu0
        %v861 = vadd.f32 0.0, %v860
        %v862 = vpop.f32.mrf.mxu0
        %v863 = vpop.f32.mrf.mxu0
        %v864 = vadd.f32 0.0, %v863
        %v865 = vpop.f32.mrf.mxu0
        %866 = vdwg.mxu0
        %v867 = vpack.c.bf16 %v808, %v805
        %v868 = vpack.c.bf16 %v816, %v813
        %v869 = vpack.c.bf16 %v824, %v821
        %v870 = vpack.c.bf16 %v832, %v829
        %v871 = vpack.c.bf16 %v840, %v837
        %v872 = vpack.c.bf16 %v848, %v845
        %v873 = vpack.c.bf16 %v856, %v853
        %v874 = vpack.c.bf16 %v864, %v861
        %875 = vmatprep.subr.bf16.mxu0 0
        %876 = vmatpush1.bf16.msra.mxu0 %v874
        %877 = vmatprep.subr.bf16.mxu0 0
        %878 = vmatpush1.bf16.msra.mxu0 %v873
        %879 = vmatprep.subr.bf16.mxu0 0
        %880 = vmatpush1.bf16.msra.mxu0 %v872
        %881 = vmatprep.subr.bf16.mxu0 0
        %882 = vmatpush1.bf16.msra.mxu0 %v871
        %883 = vmatprep.subr.bf16.mxu0 0
        %884 = vmatpush1.bf16.msra.mxu0 %v870
        %885 = vmatprep.subr.bf16.mxu0 0
        %886 = vmatpush1.bf16.msra.mxu0 %v869
        %887 = vmatprep.subr.bf16.mxu0 0
        %888 = vmatpush1.bf16.msra.mxu0 %v868
        %889 = vmatprep.subr.bf16.mxu0 0
        %890 = vmatpush1.bf16.msra.mxu0 %v867
        %891 = vmatprep.subr.bf16.mxu0 0
        %892 = vmatpush2.bf16.msra.mxu0 0
        %893 = vmatprep.subr.bf16.mxu0 0
        %894 = vmatpush2.bf16.msra.mxu0 0
        %895 = vmatprep.subr.bf16.mxu0 0
        %896 = vmatpush2.bf16.msra.mxu0 0
        %897 = vmatprep.subr.bf16.mxu0 0
        %898 = vmatpush2.bf16.msra.mxu0 0
        %899 = vmatprep.subr.bf16.mxu0 0
        %900 = vmatpush2.bf16.msra.mxu0 0
        %901 = vmatprep.subr.bf16.mxu0 0
        %902 = vmatpush2.bf16.msra.mxu0 0
        %903 = vmatprep.subr.bf16.mxu0 0
        %904 = vmatpush2.bf16.msra.mxu0 0
        %905 = vmatprep.subr.bf16.mxu0 0
        %906 = vmatpush2.bf16.msra.mxu0 0
        %907 = vmatprep.mubr.bf16.mxu0 0
        %908 = vmatmul.mubr.bf16.gmra.mxu0 %v601
        %v909 = vpop.f32.mrf.mxu0
        %v910 = vadd.f32 0.0, %v909
        %v911 = vpop.f32.mrf.mxu0
        %v912 = vpop.f32.mrf.mxu0
        %v913 = vadd.f32 0.0, %v912
        %v914 = vpop.f32.mrf.mxu0
        %915 = vmatprep.mubr.bf16.mxu0 0
        %916 = vmatmul.mubr.bf16.gmra.mxu0 %v602
        %v917 = vpop.f32.mrf.mxu0
        %v918 = vadd.f32 0.0, %v917
        %v919 = vpop.f32.mrf.mxu0
        %v920 = vpop.f32.mrf.mxu0
        %v921 = vadd.f32 0.0, %v920
        %v922 = vpop.f32.mrf.mxu0
        %923 = vmatprep.mubr.bf16.mxu0 0
        %924 = vmatmul.mubr.bf16.gmra.mxu0 %v603
        %v925 = vpop.f32.mrf.mxu0
        %v926 = vadd.f32 0.0, %v925
        %v927 = vpop.f32.mrf.mxu0
        %v928 = vpop.f32.mrf.mxu0
        %v929 = vadd.f32 0.0, %v928
        %v930 = vpop.f32.mrf.mxu0
        %931 = vmatprep.mubr.bf16.mxu0 0
        %932 = vmatmul.mubr.bf16.gmra.mxu0 %v604
        %v933 = vpop.f32.mrf.mxu0
        %v934 = vadd.f32 0.0, %v933
        %v935 = vpop.f32.mrf.mxu0
        %v936 = vpop.f32.mrf.mxu0
        %v937 = vadd.f32 0.0, %v936
        %v938 = vpop.f32.mrf.mxu0
        %939 = vmatprep.mubr.bf16.mxu0 0
        %940 = vmatmul.mubr.bf16.gmra.mxu0 %v605
        %v941 = vpop.f32.mrf.mxu0
        %v942 = vadd.f32 0.0, %v941
        %v943 = vpop.f32.mrf.mxu0
        %v944 = vpop.f32.mrf.mxu0
        %v945 = vadd.f32 0.0, %v944
        %v946 = vpop.f32.mrf.mxu0
        %947 = vmatprep.mubr.bf16.mxu0 0
        %948 = vmatmul.mubr.bf16.gmra.mxu0 %v606
        %v949 = vpop.f32.mrf.mxu0
        %v950 = vadd.f32 0.0, %v949
        %v951 = vpop.f32.mrf.mxu0
        %v952 = vpop.f32.mrf.mxu0
        %v953 = vadd.f32 0.0, %v952
        %v954 = vpop.f32.mrf.mxu0
        %955 = vmatprep.mubr.bf16.mxu0 0
        %956 = vmatmul.mubr.bf16.gmra.mxu0 %v607
        %v957 = vpop.f32.mrf.mxu0
        %v958 = vadd.f32 0.0, %v957
        %v959 = vpop.f32.mrf.mxu0
        %v960 = vpop.f32.mrf.mxu0
        %v961 = vadd.f32 0.0, %v960
        %v962 = vpop.f32.mrf.mxu0
        %963 = vmatprep.mubr.bf16.mxu0 0
        %964 = vmatmul.mubr.bf16.gmra.mxu0 %v608
        %v965 = vpop.f32.mrf.mxu0
        %v966 = vadd.f32 0.0, %v965
        %v967 = vpop.f32.mrf.mxu0
        %v968 = vpop.f32.mrf.mxu0
        %v969 = vadd.f32 0.0, %v968
        %v970 = vpop.f32.mrf.mxu0
        %971 = vdwg.mxu0
        %v972 = vpack.c.bf16 %v913, %v910
        %v973 = vpack.c.bf16 %v921, %v918
        %v974 = vpack.c.bf16 %v929, %v926
        %v975 = vpack.c.bf16 %v937, %v934
        %v976 = vpack.c.bf16 %v945, %v942
        %v977 = vpack.c.bf16 %v953, %v950
        %v978 = vpack.c.bf16 %v961, %v958
        %v979 = vpack.c.bf16 %v969, %v966
        %980 = vmatprep.subr.bf16.mxu0 0
        %981 = vmatpush1.bf16.msra.mxu0 %v979
        %982 = vmatprep.subr.bf16.mxu0 0
        %983 = vmatpush1.bf16.msra.mxu0 %v978
        %984 = vmatprep.subr.bf16.mxu0 0
        %985 = vmatpush1.bf16.msra.mxu0 %v977
        %986 = vmatprep.subr.bf16.mxu0 0
        %987 = vmatpush1.bf16.msra.mxu0 %v976
        %988 = vmatprep.subr.bf16.mxu0 0
        %989 = vmatpush1.bf16.msra.mxu0 %v975
        %990 = vmatprep.subr.bf16.mxu0 0
        %991 = vmatpush1.bf16.msra.mxu0 %v974
        %992 = vmatprep.subr.bf16.mxu0 0
        %993 = vmatpush1.bf16.msra.mxu0 %v973
        %994 = vmatprep.subr.bf16.mxu0 0
        %995 = vmatpush1.bf16.msra.mxu0 %v972
        %996 = vmatprep.subr.bf16.mxu0 0
        %997 = vmatpush2.bf16.msra.mxu0 0
        %998 = vmatprep.subr.bf16.mxu0 0
        %999 = vmatpush2.bf16.msra.mxu0 0
        %1000 = vmatprep.subr.bf16.mxu0 0
        %1001 = vmatpush2.bf16.msra.mxu0 0
        %1002 = vmatprep.subr.bf16.mxu0 0
        %1003 = vmatpush2.bf16.msra.mxu0 0
        %1004 = vmatprep.subr.bf16.mxu0 0
        %1005 = vmatpush2.bf16.msra.mxu0 0
        %1006 = vmatprep.subr.bf16.mxu0 0
        %1007 = vmatpush2.bf16.msra.mxu0 0
        %1008 = vmatprep.subr.bf16.mxu0 0
        %1009 = vmatpush2.bf16.msra.mxu0 0
        %1010 = vmatprep.subr.bf16.mxu0 0
        %1011 = vmatpush2.bf16.msra.mxu0 0
        %1012 = vmatprep.mubr.bf16.mxu0 0
        %1013 = vmatmul.mubr.bf16.gmra.mxu0 %v601
        %v1014 = vpop.f32.mrf.mxu0
        %v1015 = vadd.f32 0.0, %v1014
        %v1016 = vpop.f32.mrf.mxu0
        %v1017 = vpop.f32.mrf.mxu0
        %v1018 = vadd.f32 0.0, %v1017
        %v1019 = vpop.f32.mrf.mxu0
        %1020 = vmatprep.mubr.bf16.mxu0 0
        %1021 = vmatmul.mubr.bf16.gmra.mxu0 %v602
        %v1022 = vpop.f32.mrf.mxu0
        %v1023 = vadd.f32 0.0, %v1022
        %v1024 = vpop.f32.mrf.mxu0
        %v1025 = vpop.f32.mrf.mxu0
        %v1026 = vadd.f32 0.0, %v1025
        %v1027 = vpop.f32.mrf.mxu0
        %1028 = vmatprep.mubr.bf16.mxu0 0
        %1029 = vmatmul.mubr.bf16.gmra.mxu0 %v603
        %v1030 = vpop.f32.mrf.mxu0
        %v1031 = vadd.f32 0.0, %v1030
        %v1032 = vpop.f32.mrf.mxu0
        %v1033 = vpop.f32.mrf.mxu0
        %v1034 = vadd.f32 0.0, %v1033
        %v1035 = vpop.f32.mrf.mxu0
        %1036 = vmatprep.mubr.bf16.mxu0 0
        %1037 = vmatmul.mubr.bf16.gmra.mxu0 %v604
        %v1038 = vpop.f32.mrf.mxu0
        %v1039 = vadd.f32 0.0, %v1038
        %v1040 = vpop.f32.mrf.mxu0
        %v1041 = vpop.f32.mrf.mxu0
        %v1042 = vadd.f32 0.0, %v1041
        %v1043 = vpop.f32.mrf.mxu0
        %1044 = vmatprep.mubr.bf16.mxu0 0
        %1045 = vmatmul.mubr.bf16.gmra.mxu0 %v605
        %v1046 = vpop.f32.mrf.mxu0
        %v1047 = vadd.f32 0.0, %v1046
        %v1048 = vpop.f32.mrf.mxu0
        %v1049 = vpop.f32.mrf.mxu0
        %v1050 = vadd.f32 0.0, %v1049
        %v1051 = vpop.f32.mrf.mxu0
        %1052 = vmatprep.mubr.bf16.mxu0 0
        %1053 = vmatmul.mubr.bf16.gmra.mxu0 %v606
        %v1054 = vpop.f32.mrf.mxu0
        %v1055 = vadd.f32 0.0, %v1054
        %v1056 = vpop.f32.mrf.mxu0
        %v1057 = vpop.f32.mrf.mxu0
        %v1058 = vadd.f32 0.0, %v1057
        %v1059 = vpop.f32.mrf.mxu0
        %1060 = vmatprep.mubr.bf16.mxu0 0
        %1061 = vmatmul.mubr.bf16.gmra.mxu0 %v607
        %v1062 = vpop.f32.mrf.mxu0
        %v1063 = vadd.f32 0.0, %v1062
        %v1064 = vpop.f32.mrf.mxu0
        %v1065 = vpop.f32.mrf.mxu0
        %v1066 = vadd.f32 0.0, %v1065
        %v1067 = vpop.f32.mrf.mxu0
        %1068 = vmatprep.mubr.bf16.mxu0 0
        %1069 = vmatmul.mubr.bf16.gmra.mxu0 %v608
        %v1070 = vpop.f32.mrf.mxu0
        %v1071 = vadd.f32 0.0, %v1070
        %v1072 = vpop.f32.mrf.mxu0
        %v1073 = vpop.f32.mrf.mxu0
        %v1074 = vadd.f32 0.0, %v1073
        %v1075 = vpop.f32.mrf.mxu0
        %1076 = vdwg.mxu0
        %v1077 = vsub.f32 %v700, %v805
        %v1078 = vsub.f32 %v703, %v808
        %v1079 = vsub.f32 %v708, %v813
        %v1080 = vsub.f32 %v711, %v816
        %v1081 = vsub.f32 %v716, %v821
        %v1082 = vsub.f32 %v719, %v824
        %v1083 = vsub.f32 %v724, %v829
        %v1084 = vsub.f32 %v727, %v832
        %v1085 = vsub.f32 %v732, %v837
        %v1086 = vsub.f32 %v735, %v840
        %v1087 = vsub.f32 %v740, %v845
        %v1088 = vsub.f32 %v743, %v848
        %v1089 = vsub.f32 %v748, %v853
        %v1090 = vsub.f32 %v751, %v856
        %v1091 = vsub.f32 %v756, %v861
        %v1092 = vsub.f32 %v759, %v864
        %v1093 = vand.u32 2147483647, %v1077
        %v1094 = vand.u32 2147483647, %v1078
        %v1095 = vand.u32 2147483647, %v1079
        %v1096 = vand.u32 2147483647, %v1080
        %v1097 = vand.u32 2147483647, %v1081
        %v1098 = vand.u32 2147483647, %v1082
        %v1099 = vand.u32 2147483647, %v1083
        %v1100 = vand.u32 2147483647, %v1084
        %v1101 = vand.u32 2147483647, %v1085
        %v1102 = vand.u32 2147483647, %v1086
        %v1103 = vand.u32 2147483647, %v1087
        %v1104 = vand.u32 2147483647, %v1088
        %v1105 = vand.u32 2147483647, %v1089
        %v1106 = vand.u32 2147483647, %v1090
        %v1107 = vand.u32 2147483647, %v1091
        %v1108 = vand.u32 2147483647, %v1092
        %v1109 = vsub.f32 %v805, %v1015
        %v1110 = vsub.f32 %v808, %v1018
        %v1111 = vsub.f32 %v813, %v1023
        %v1112 = vsub.f32 %v816, %v1026
        %v1113 = vsub.f32 %v821, %v1031
        %v1114 = vsub.f32 %v824, %v1034
        %v1115 = vsub.f32 %v829, %v1039
        %v1116 = vsub.f32 %v832, %v1042
        %v1117 = vsub.f32 %v837, %v1047
        %v1118 = vsub.f32 %v840, %v1050
        %v1119 = vsub.f32 %v845, %v1055
        %v1120 = vsub.f32 %v848, %v1058
        %v1121 = vsub.f32 %v853, %v1063
        %v1122 = vsub.f32 %v856, %v1066
        %v1123 = vsub.f32 %v861, %v1071
        %v1124 = vsub.f32 %v864, %v1074
        %v1125 = vand.u32 2147483647, %v1109
        %v1126 = vand.u32 2147483647, %v1110
        %v1127 = vand.u32 2147483647, %v1111
        %v1128 = vand.u32 2147483647, %v1112
        %v1129 = vand.u32 2147483647, %v1113
        %v1130 = vand.u32 2147483647, %v1114
        %v1131 = vand.u32 2147483647, %v1115
        %v1132 = vand.u32 2147483647, %v1116
        %v1133 = vand.u32 2147483647, %v1117
        %v1134 = vand.u32 2147483647, %v1118
        %v1135 = vand.u32 2147483647, %v1119
        %v1136 = vand.u32 2147483647, %v1120
        %v1137 = vand.u32 2147483647, %v1121
        %v1138 = vand.u32 2147483647, %v1122
        %v1139 = vand.u32 2147483647, %v1123
        %v1140 = vand.u32 2147483647, %v1124
        %v1141 = vsub.f32 %v910, %v805
        %v1142 = vsub.f32 %v913, %v808
        %v1143 = vsub.f32 %v918, %v813
        %v1144 = vsub.f32 %v921, %v816
        %v1145 = vsub.f32 %v926, %v821
        %v1146 = vsub.f32 %v929, %v824
        %v1147 = vsub.f32 %v934, %v829
        %v1148 = vsub.f32 %v937, %v832
        %v1149 = vsub.f32 %v942, %v837
        %v1150 = vsub.f32 %v945, %v840
        %v1151 = vsub.f32 %v950, %v845
        %v1152 = vsub.f32 %v953, %v848
        %v1153 = vsub.f32 %v958, %v853
        %v1154 = vsub.f32 %v961, %v856
        %v1155 = vsub.f32 %v966, %v861
        %v1156 = vsub.f32 %v969, %v864
        %v1157 = vand.u32 2147483647, %v1141
        %v1158 = vand.u32 2147483647, %v1142
        %v1159 = vand.u32 2147483647, %v1143
        %v1160 = vand.u32 2147483647, %v1144
        %v1161 = vand.u32 2147483647, %v1145
        %v1162 = vand.u32 2147483647, %v1146
        %v1163 = vand.u32 2147483647, %v1147
        %v1164 = vand.u32 2147483647, %v1148
        %v1165 = vand.u32 2147483647, %v1149
        %v1166 = vand.u32 2147483647, %v1150
        %v1167 = vand.u32 2147483647, %v1151
        %v1168 = vand.u32 2147483647, %v1152
        %v1169 = vand.u32 2147483647, %v1153
        %v1170 = vand.u32 2147483647, %v1154
        %v1171 = vand.u32 2147483647, %v1155
        %v1172 = vand.u32 2147483647, %v1156
        %v1173 = vsub.f32 %v1015, %v910
        %v1174 = vsub.f32 %v1018, %v913
        %v1175 = vsub.f32 %v1023, %v918
        %v1176 = vsub.f32 %v1026, %v921
        %v1177 = vsub.f32 %v1031, %v926
        %v1178 = vsub.f32 %v1034, %v929
        %v1179 = vsub.f32 %v1039, %v934
        %v1180 = vsub.f32 %v1042, %v937
        %v1181 = vsub.f32 %v1047, %v942
        %v1182 = vsub.f32 %v1050, %v945
        %v1183 = vsub.f32 %v1055, %v950
        %v1184 = vsub.f32 %v1058, %v953
        %v1185 = vsub.f32 %v1063, %v958
        %v1186 = vsub.f32 %v1066, %v961
        %v1187 = vsub.f32 %v1071, %v966
        %v1188 = vsub.f32 %v1074, %v969
        %v1189 = vand.u32 2147483647, %v1173
        %v1190 = vand.u32 2147483647, %v1174
        %v1191 = vand.u32 2147483647, %v1175
        %v1192 = vand.u32 2147483647, %v1176
        %v1193 = vand.u32 2147483647, %v1177
        %v1194 = vand.u32 2147483647, %v1178
        %v1195 = vand.u32 2147483647, %v1179
        %v1196 = vand.u32 2147483647, %v1180
        %v1197 = vand.u32 2147483647, %v1181
        %v1198 = vand.u32 2147483647, %v1182
        %v1199 = vand.u32 2147483647, %v1183
        %v1200 = vand.u32 2147483647, %v1184
        %v1201 = vand.u32 2147483647, %v1185
        %v1202 = vand.u32 2147483647, %v1186
        %v1203 = vand.u32 2147483647, %v1187
        %v1204 = vand.u32 2147483647, %v1188
        %v1205 = vpack.c.bf16 %v1018, %v1015
        %v1206 = vpack.c.bf16 %v1094, %v1093
        %v1207 = vpack.c.bf16 %v1126, %v1125
        %v1208 = vpack.c.bf16 %v1158, %v1157
        %v1209 = vpack.c.bf16 %v1190, %v1189
        %v1210 = vpack.c.bf16 %v1026, %v1023
        %v1211 = vpack.c.bf16 %v1096, %v1095
        %v1212 = vpack.c.bf16 %v1128, %v1127
        %v1213 = vpack.c.bf16 %v1160, %v1159
        %v1214 = vpack.c.bf16 %v1192, %v1191
        %v1215 = vpack.c.bf16 %v1034, %v1031
        %v1216 = vpack.c.bf16 %v1098, %v1097
        %v1217 = vpack.c.bf16 %v1130, %v1129
        %v1218 = vpack.c.bf16 %v1162, %v1161
        %v1219 = vpack.c.bf16 %v1194, %v1193
        %v1220 = vpack.c.bf16 %v1042, %v1039
        %v1221 = vpack.c.bf16 %v1100, %v1099
        %v1222 = vpack.c.bf16 %v1132, %v1131
        %v1223 = vpack.c.bf16 %v1164, %v1163
        %v1224 = vpack.c.bf16 %v1196, %v1195
        %v1225 = vpack.c.bf16 %v1050, %v1047
        %v1226 = vpack.c.bf16 %v1102, %v1101
        %v1227 = vpack.c.bf16 %v1134, %v1133
        %v1228 = vpack.c.bf16 %v1166, %v1165
        %v1229 = vpack.c.bf16 %v1198, %v1197
        %v1230 = vpack.c.bf16 %v1058, %v1055
        %v1231 = vpack.c.bf16 %v1104, %v1103
        %v1232 = vpack.c.bf16 %v1136, %v1135
        %v1233 = vpack.c.bf16 %v1168, %v1167
        %v1234 = vpack.c.bf16 %v1200, %v1199
        %v1235 = vpack.c.bf16 %v1066, %v1063
        %v1236 = vpack.c.bf16 %v1106, %v1105
        %v1237 = vpack.c.bf16 %v1138, %v1137
        %v1238 = vpack.c.bf16 %v1170, %v1169
        %v1239 = vpack.c.bf16 %v1202, %v1201
        %v1240 = vpack.c.bf16 %v1074, %v1071
        %v1241 = vpack.c.bf16 %v1108, %v1107
        %v1242 = vpack.c.bf16 %v1140, %v1139
        %v1243 = vpack.c.bf16 %v1172, %v1171
        %v1244 = vpack.c.bf16 %v1204, %v1203
        %v1245 = vld [vmem:[%s447] sm:$0xff]
        %v1246 = vld [vmem:[%s447 + $0x8] sm:$0xff]
        %v1247 = vld [vmem:[%s447 + $0x10] sm:$0xff]
        %v1248 = vld [vmem:[%s447 + $0x18] sm:$0xff]
        %v1249 = vld [vmem:[%s447 + $0x20] sm:$0xff]
        %v1250 = vld [vmem:[%s447 + $0x28] sm:$0xff]
        %v1251 = vld [vmem:[%s447 + $0x30] sm:$0xff]
        %v1252 = vld [vmem:[%s447 + $0x38] sm:$0xff]
        %v1253 = vld [vmem:[%s447 + $0x40] sm:$0xff]
        %v1254 = vld [vmem:[%s447 + $0x48] sm:$0xff]
        %v1255 = vld [vmem:[%s447 + $0x50] sm:$0xff]
        %v1256 = vld [vmem:[%s447 + $0x58] sm:$0xff]
        %v1257 = vld [vmem:[%s447 + $0x60] sm:$0xff]
        %v1258 = vld [vmem:[%s447 + $0x68] sm:$0xff]
        %v1259 = vld [vmem:[%s447 + $0x70] sm:$0xff]
        %v1260 = vld [vmem:[%s447 + $0x78] sm:$0xff]
        %v1261 = vld [vmem:[%s447 + $0x80] sm:$0xff]
        %v1262 = vld [vmem:[%s447 + $0x88] sm:$0xff]
        %v1263 = vld [vmem:[%s447 + $0x90] sm:$0xff]
        %v1264 = vld [vmem:[%s447 + $0x98] sm:$0xff]
        %v1265 = vld [vmem:[%s447 + $0xa0] sm:$0xff]
        %v1266 = vld [vmem:[%s447 + $0xa8] sm:$0xff]
        %v1267 = vld [vmem:[%s447 + $0xb0] sm:$0xff]
        %v1268 = vld [vmem:[%s447 + $0xb8] sm:$0xff]
        %v1269 = vld [vmem:[%s447 + $0xc0] sm:$0xff]
        %v1270 = vld [vmem:[%s447 + $0xc8] sm:$0xff]
        %v1271 = vld [vmem:[%s447 + $0xd0] sm:$0xff]
        %v1272 = vld [vmem:[%s447 + $0xd8] sm:$0xff]
        %v1273 = vld [vmem:[%s447 + $0xe0] sm:$0xff]
        %v1274 = vld [vmem:[%s447 + $0xe8] sm:$0xff]
        %v1275 = vld [vmem:[%s447 + $0xf0] sm:$0xff]
        %v1276 = vld [vmem:[%s447 + $0xf8] sm:$0xff]
        %v1277 = vld [vmem:[%s447 + $0x100] sm:$0xff]
        %v1278 = vld [vmem:[%s447 + $0x108] sm:$0xff]
        %v1279 = vld [vmem:[%s447 + $0x110] sm:$0xff]
        %v1280 = vld [vmem:[%s447 + $0x118] sm:$0xff]
        %v1281 = vld [vmem:[%s447 + $0x120] sm:$0xff]
        %v1282 = vld [vmem:[%s447 + $0x128] sm:$0xff]
        %v1283 = vld [vmem:[%s447 + $0x130] sm:$0xff]
        %v1284 = vld [vmem:[%s447 + $0x138] sm:$0xff]
        %v1285 = vld [vmem:[%s447 + $0x140] sm:$0xff]
        %v1286 = vld [vmem:[%s447 + $0x148] sm:$0xff]
        %v1287 = vld [vmem:[%s447 + $0x150] sm:$0xff]
        %v1288 = vld [vmem:[%s447 + $0x158] sm:$0xff]
        %v1289 = vld [vmem:[%s447 + $0x160] sm:$0xff]
        %v1290 = vld [vmem:[%s447 + $0x168] sm:$0xff]
        %v1291 = vld [vmem:[%s447 + $0x170] sm:$0xff]
        %v1292 = vld [vmem:[%s447 + $0x178] sm:$0xff]
        %v1293 = vld [vmem:[%s447 + $0x180] sm:$0xff]
        %v1294 = vld [vmem:[%s447 + $0x188] sm:$0xff]
        %v1295 = vld [vmem:[%s447 + $0x190] sm:$0xff]
        %v1296 = vld [vmem:[%s447 + $0x198] sm:$0xff]
        %v1297 = vld [vmem:[%s447 + $0x1a0] sm:$0xff]
        %v1298 = vld [vmem:[%s447 + $0x1a8] sm:$0xff]
        %v1299 = vld [vmem:[%s447 + $0x1b0] sm:$0xff]
        %v1300 = vld [vmem:[%s447 + $0x1b8] sm:$0xff]
        %v1301 = vld [vmem:[%s447 + $0x1c0] sm:$0xff]
        %v1302 = vld [vmem:[%s447 + $0x1c8] sm:$0xff]
        %v1303 = vld [vmem:[%s447 + $0x1d0] sm:$0xff]
        %v1304 = vld [vmem:[%s447 + $0x1d8] sm:$0xff]
        %v1305 = vld [vmem:[%s447 + $0x1e0] sm:$0xff]
        %v1306 = vld [vmem:[%s447 + $0x1e8] sm:$0xff]
        %v1307 = vld [vmem:[%s447 + $0x1f0] sm:$0xff]
        %v1308 = vld [vmem:[%s447 + $0x1f8] sm:$0xff]
        %v1309 = vld [vmem:[%s447 + $0x200] sm:$0xff]
        %v1310 = vld [vmem:[%s447 + $0x208] sm:$0xff]
        %v1311 = vld [vmem:[%s447 + $0x210] sm:$0xff]
        %v1312 = vld [vmem:[%s447 + $0x218] sm:$0xff]
        %v1313 = vld [vmem:[%s447 + $0x220] sm:$0xff]
        %v1314 = vld [vmem:[%s447 + $0x228] sm:$0xff]
        %v1315 = vld [vmem:[%s447 + $0x230] sm:$0xff]
        %v1316 = vld [vmem:[%s447 + $0x238] sm:$0xff]
        %v1317 = vld [vmem:[%s447 + $0x240] sm:$0xff]
        %v1318 = vld [vmem:[%s447 + $0x248] sm:$0xff]
        %v1319 = vld [vmem:[%s447 + $0x250] sm:$0xff]
        %v1320 = vld [vmem:[%s447 + $0x258] sm:$0xff]
        %v1321 = vld [vmem:[%s447 + $0x260] sm:$0xff]
        %v1322 = vld [vmem:[%s447 + $0x268] sm:$0xff]
        %v1323 = vld [vmem:[%s447 + $0x270] sm:$0xff]
        %v1324 = vld [vmem:[%s447 + $0x278] sm:$0xff]
        %s1325 = smul.u32 %s42, 2
        %s1326 = scalar_lea.vmem %s6, %s1325
        %v1327 = vld [vmem:[%s1326] sm:$0x3]
        %v1329 = vlaneseq
        %v1330 = vshrl.u32 %v1329, 7
        %v1331 = vsub.s32 0, %v1330
        %v1332 = vrot.slane %v1327, %v1331
        %v1333 = vlaneseq
        %v1334 = vshrl.u32 %v1333, 7
        %v1335 = vsub.s32 1, %v1334
        %v1336 = vrot.slane %v1327, %v1335
        %v1419 = vunpack.c.l.b16 %v1245
        %v1420 = vunpack.c.h.b16 %v1245
        %v1421 = vunpack.c.l.b16 %v1246
        %v1422 = vunpack.c.h.b16 %v1246
        %v1423 = vunpack.c.l.b16 %v1247
        %v1424 = vunpack.c.h.b16 %v1247
        %v1425 = vunpack.c.l.b16 %v1248
        %v1426 = vunpack.c.h.b16 %v1248
        %v1427 = vunpack.c.l.b16 %v1249
        %v1428 = vunpack.c.h.b16 %v1249
        %v1429 = vunpack.c.l.b16 %v1250
        %v1430 = vunpack.c.h.b16 %v1250
        %v1431 = vunpack.c.l.b16 %v1251
        %v1432 = vunpack.c.h.b16 %v1251
        %v1433 = vunpack.c.l.b16 %v1252
        %v1434 = vunpack.c.h.b16 %v1252
        %v1435 = vunpack.c.l.b16 %v1253
        %v1436 = vunpack.c.h.b16 %v1253
        %v1437 = vunpack.c.l.b16 %v1254
        %v1438 = vunpack.c.h.b16 %v1254
        %v1439 = vunpack.c.l.b16 %v1255
        %v1440 = vunpack.c.h.b16 %v1255
        %v1441 = vunpack.c.l.b16 %v1256
        %v1442 = vunpack.c.h.b16 %v1256
        %v1443 = vunpack.c.l.b16 %v1257
        %v1444 = vunpack.c.h.b16 %v1257
        %v1445 = vunpack.c.l.b16 %v1258
        %v1446 = vunpack.c.h.b16 %v1258
        %v1447 = vunpack.c.l.b16 %v1259
        %v1448 = vunpack.c.h.b16 %v1259
        %v1449 = vunpack.c.l.b16 %v1260
        %v1450 = vunpack.c.h.b16 %v1260
        %v1451 = vunpack.c.l.b16 %v1261
        %v1452 = vunpack.c.h.b16 %v1261
        %v1453 = vunpack.c.l.b16 %v1262
        %v1454 = vunpack.c.h.b16 %v1262
        %v1455 = vunpack.c.l.b16 %v1263
        %v1456 = vunpack.c.h.b16 %v1263
        %v1457 = vunpack.c.l.b16 %v1264
        %v1458 = vunpack.c.h.b16 %v1264
        %v1459 = vunpack.c.l.b16 %v1265
        %v1460 = vunpack.c.h.b16 %v1265
        %v1461 = vunpack.c.l.b16 %v1266
        %v1462 = vunpack.c.h.b16 %v1266
        %v1463 = vunpack.c.l.b16 %v1267
        %v1464 = vunpack.c.h.b16 %v1267
        %v1465 = vunpack.c.l.b16 %v1268
        %v1466 = vunpack.c.h.b16 %v1268
        %v1467 = vunpack.c.l.b16 %v1269
        %v1468 = vunpack.c.h.b16 %v1269
        %v1469 = vunpack.c.l.b16 %v1270
        %v1470 = vunpack.c.h.b16 %v1270
        %v1471 = vunpack.c.l.b16 %v1271
        %v1472 = vunpack.c.h.b16 %v1271
        %v1473 = vunpack.c.l.b16 %v1272
        %v1474 = vunpack.c.h.b16 %v1272
        %v1475 = vunpack.c.l.b16 %v1273
        %v1476 = vunpack.c.h.b16 %v1273
        %v1477 = vunpack.c.l.b16 %v1274
        %v1478 = vunpack.c.h.b16 %v1274
        %v1479 = vunpack.c.l.b16 %v1275
        %v1480 = vunpack.c.h.b16 %v1275
        %v1481 = vunpack.c.l.b16 %v1276
        %v1482 = vunpack.c.h.b16 %v1276
        %v1483 = vunpack.c.l.b16 %v1277
        %v1484 = vunpack.c.h.b16 %v1277
        %v1485 = vunpack.c.l.b16 %v1278
        %v1486 = vunpack.c.h.b16 %v1278
        %v1487 = vunpack.c.l.b16 %v1279
        %v1488 = vunpack.c.h.b16 %v1279
        %v1489 = vunpack.c.l.b16 %v1280
        %v1490 = vunpack.c.h.b16 %v1280
        %v1491 = vunpack.c.l.b16 %v1281
        %v1492 = vunpack.c.h.b16 %v1281
        %v1493 = vunpack.c.l.b16 %v1282
        %v1494 = vunpack.c.h.b16 %v1282
        %v1495 = vunpack.c.l.b16 %v1283
        %v1496 = vunpack.c.h.b16 %v1283
        %v1497 = vunpack.c.l.b16 %v1284
        %v1498 = vunpack.c.h.b16 %v1284
        %v1499 = vunpack.c.l.b16 %v1285
        %v1500 = vunpack.c.h.b16 %v1285
        %v1501 = vunpack.c.l.b16 %v1286
        %v1502 = vunpack.c.h.b16 %v1286
        %v1503 = vunpack.c.l.b16 %v1287
        %v1504 = vunpack.c.h.b16 %v1287
        %v1505 = vunpack.c.l.b16 %v1288
        %v1506 = vunpack.c.h.b16 %v1288
        %v1507 = vunpack.c.l.b16 %v1289
        %v1508 = vunpack.c.h.b16 %v1289
        %v1509 = vunpack.c.l.b16 %v1290
        %v1510 = vunpack.c.h.b16 %v1290
        %v1511 = vunpack.c.l.b16 %v1291
        %v1512 = vunpack.c.h.b16 %v1291
        %v1513 = vunpack.c.l.b16 %v1292
        %v1514 = vunpack.c.h.b16 %v1292
        %v1515 = vunpack.c.l.b16 %v1293
        %v1516 = vunpack.c.h.b16 %v1293
        %v1517 = vunpack.c.l.b16 %v1294
        %v1518 = vunpack.c.h.b16 %v1294
        %v1519 = vunpack.c.l.b16 %v1295
        %v1520 = vunpack.c.h.b16 %v1295
        %v1521 = vunpack.c.l.b16 %v1296
        %v1522 = vunpack.c.h.b16 %v1296
        %v1523 = vunpack.c.l.b16 %v1297
        %v1524 = vunpack.c.h.b16 %v1297
        %v1525 = vunpack.c.l.b16 %v1298
        %v1526 = vunpack.c.h.b16 %v1298
        %v1527 = vunpack.c.l.b16 %v1299
        %v1528 = vunpack.c.h.b16 %v1299
        %v1529 = vunpack.c.l.b16 %v1300
        %v1530 = vunpack.c.h.b16 %v1300
        %v1531 = vunpack.c.l.b16 %v1301
        %v1532 = vunpack.c.h.b16 %v1301
        %v1533 = vunpack.c.l.b16 %v1302
        %v1534 = vunpack.c.h.b16 %v1302
        %v1535 = vunpack.c.l.b16 %v1303
        %v1536 = vunpack.c.h.b16 %v1303
        %v1537 = vunpack.c.l.b16 %v1304
        %v1538 = vunpack.c.h.b16 %v1304
        %v1539 = vunpack.c.l.b16 %v1305
        %v1540 = vunpack.c.h.b16 %v1305
        %v1541 = vunpack.c.l.b16 %v1306
        %v1542 = vunpack.c.h.b16 %v1306
        %v1543 = vunpack.c.l.b16 %v1307
        %v1544 = vunpack.c.h.b16 %v1307
        %v1545 = vunpack.c.l.b16 %v1308
        %v1546 = vunpack.c.h.b16 %v1308
        %v1547 = vunpack.c.l.b16 %v1309
        %v1548 = vunpack.c.h.b16 %v1309
        %v1549 = vunpack.c.l.b16 %v1310
        %v1550 = vunpack.c.h.b16 %v1310
        %v1551 = vunpack.c.l.b16 %v1311
        %v1552 = vunpack.c.h.b16 %v1311
        %v1553 = vunpack.c.l.b16 %v1312
        %v1554 = vunpack.c.h.b16 %v1312
        %v1555 = vunpack.c.l.b16 %v1313
        %v1556 = vunpack.c.h.b16 %v1313
        %v1557 = vunpack.c.l.b16 %v1314
        %v1558 = vunpack.c.h.b16 %v1314
        %v1559 = vunpack.c.l.b16 %v1315
        %v1560 = vunpack.c.h.b16 %v1315
        %v1561 = vunpack.c.l.b16 %v1316
        %v1562 = vunpack.c.h.b16 %v1316
        %v1563 = vunpack.c.l.b16 %v1317
        %v1564 = vunpack.c.h.b16 %v1317
        %v1565 = vunpack.c.l.b16 %v1318
        %v1566 = vunpack.c.h.b16 %v1318
        %v1567 = vunpack.c.l.b16 %v1319
        %v1568 = vunpack.c.h.b16 %v1319
        %v1569 = vunpack.c.l.b16 %v1320
        %v1570 = vunpack.c.h.b16 %v1320
        %v1571 = vunpack.c.l.b16 %v1321
        %v1572 = vunpack.c.h.b16 %v1321
        %v1573 = vunpack.c.l.b16 %v1322
        %v1574 = vunpack.c.h.b16 %v1322
        %v1575 = vunpack.c.l.b16 %v1323
        %v1576 = vunpack.c.h.b16 %v1323
        %v1577 = vunpack.c.l.b16 %v1324
        %v1578 = vunpack.c.h.b16 %v1324
        %v1579 = vpack.c.b16 %v1421, %v1419
        %v1580 = vpack.c.b16 %v1422, %v1420
        %v1581 = vpack.c.b16 %v1425, %v1423
        %v1582 = vpack.c.b16 %v1426, %v1424
        %v1583 = vpack.c.b16 %v1429, %v1427
        %v1584 = vpack.c.b16 %v1430, %v1428
        %v1585 = vpack.c.b16 %v1433, %v1431
        %v1586 = vpack.c.b16 %v1434, %v1432
        %v1587 = vpack.c.b16 %v1437, %v1435
        %v1588 = vpack.c.b16 %v1438, %v1436
        %v1589 = vpack.c.b16 %v1441, %v1439
        %v1590 = vpack.c.b16 %v1442, %v1440
        %v1591 = vpack.c.b16 %v1445, %v1443
        %v1592 = vpack.c.b16 %v1446, %v1444
        %v1593 = vpack.c.b16 %v1449, %v1447
        %v1594 = vpack.c.b16 %v1450, %v1448
        %v1595 = vpack.c.b16 %v1453, %v1451
        %v1596 = vpack.c.b16 %v1454, %v1452
        %v1597 = vpack.c.b16 %v1457, %v1455
        %v1598 = vpack.c.b16 %v1458, %v1456
        %v1599 = vpack.c.b16 %v1461, %v1459
        %v1600 = vpack.c.b16 %v1462, %v1460
        %v1601 = vpack.c.b16 %v1465, %v1463
        %v1602 = vpack.c.b16 %v1466, %v1464
        %v1603 = vpack.c.b16 %v1469, %v1467
        %v1604 = vpack.c.b16 %v1470, %v1468
        %v1605 = vpack.c.b16 %v1473, %v1471
        %v1606 = vpack.c.b16 %v1474, %v1472
        %v1607 = vpack.c.b16 %v1477, %v1475
        %v1608 = vpack.c.b16 %v1478, %v1476
        %v1609 = vpack.c.b16 %v1481, %v1479
        %v1610 = vpack.c.b16 %v1482, %v1480
        %v1611 = vpack.c.b16 %v1485, %v1483
        %v1612 = vpack.c.b16 %v1486, %v1484
        %v1613 = vpack.c.b16 %v1489, %v1487
        %v1614 = vpack.c.b16 %v1490, %v1488
        %v1615 = vpack.c.b16 %v1493, %v1491
        %v1616 = vpack.c.b16 %v1494, %v1492
        %v1617 = vpack.c.b16 %v1497, %v1495
        %v1618 = vpack.c.b16 %v1498, %v1496
        %v1619 = vpack.c.b16 %v1501, %v1499
        %v1620 = vpack.c.b16 %v1502, %v1500
        %v1621 = vpack.c.b16 %v1505, %v1503
        %v1622 = vpack.c.b16 %v1506, %v1504
        %v1623 = vpack.c.b16 %v1509, %v1507
        %v1624 = vpack.c.b16 %v1510, %v1508
        %v1625 = vpack.c.b16 %v1513, %v1511
        %v1626 = vpack.c.b16 %v1514, %v1512
        %v1627 = vpack.c.b16 %v1517, %v1515
        %v1628 = vpack.c.b16 %v1518, %v1516
        %v1629 = vpack.c.b16 %v1521, %v1519
        %v1630 = vpack.c.b16 %v1522, %v1520
        %v1631 = vpack.c.b16 %v1525, %v1523
        %v1632 = vpack.c.b16 %v1526, %v1524
        %v1633 = vpack.c.b16 %v1529, %v1527
        %v1634 = vpack.c.b16 %v1530, %v1528
        %v1635 = vpack.c.b16 %v1533, %v1531
        %v1636 = vpack.c.b16 %v1534, %v1532
        %v1637 = vpack.c.b16 %v1537, %v1535
        %v1638 = vpack.c.b16 %v1538, %v1536
        %v1639 = vpack.c.b16 %v1541, %v1539
        %v1640 = vpack.c.b16 %v1542, %v1540
        %v1641 = vpack.c.b16 %v1545, %v1543
        %v1642 = vpack.c.b16 %v1546, %v1544
        %v1643 = vpack.c.b16 %v1549, %v1547
        %v1644 = vpack.c.b16 %v1550, %v1548
        %v1645 = vpack.c.b16 %v1553, %v1551
        %v1646 = vpack.c.b16 %v1554, %v1552
        %v1647 = vpack.c.b16 %v1557, %v1555
        %v1648 = vpack.c.b16 %v1558, %v1556
        %v1649 = vpack.c.b16 %v1561, %v1559
        %v1650 = vpack.c.b16 %v1562, %v1560
        %v1651 = vpack.c.b16 %v1565, %v1563
        %v1652 = vpack.c.b16 %v1566, %v1564
        %v1653 = vpack.c.b16 %v1569, %v1567
        %v1654 = vpack.c.b16 %v1570, %v1568
        %v1655 = vpack.c.b16 %v1573, %v1571
        %v1656 = vpack.c.b16 %v1574, %v1572
        %v1657 = vpack.c.b16 %v1577, %v1575
        %v1658 = vpack.c.b16 %v1578, %v1576
        %1739 = vmatprep.subr.bf16.mxu0 %v1594
        %1740 = vmatpush1.bf16.msra.mxu0 %v1593
        %1741 = vmatprep.subr.bf16.mxu0 %v1592
        %1742 = vmatpush1.bf16.msra.mxu0 %v1591
        %1743 = vmatprep.subr.bf16.mxu0 %v1590
        %1744 = vmatpush1.bf16.msra.mxu0 %v1589
        %1745 = vmatprep.subr.bf16.mxu0 %v1588
        %1746 = vmatpush1.bf16.msra.mxu0 %v1587
        %1747 = vmatprep.subr.bf16.mxu0 %v1586
        %1748 = vmatpush1.bf16.msra.mxu0 %v1585
        %1749 = vmatprep.subr.bf16.mxu0 %v1584
        %1750 = vmatpush1.bf16.msra.mxu0 %v1583
        %1751 = vmatprep.subr.bf16.mxu0 %v1582
        %1752 = vmatpush1.bf16.msra.mxu0 %v1581
        %1753 = vmatprep.subr.bf16.mxu0 %v1580
        %1754 = vmatpush1.bf16.msra.mxu0 %v1579
        %1755 = vmatprep.subr.bf16.mxu0 %v1610
        %1756 = vmatpush2.bf16.msra.mxu0 %v1609
        %1757 = vmatprep.subr.bf16.mxu0 %v1608
        %1758 = vmatpush2.bf16.msra.mxu0 %v1607
        %1759 = vmatprep.subr.bf16.mxu0 %v1606
        %1760 = vmatpush2.bf16.msra.mxu0 %v1605
        %1761 = vmatprep.subr.bf16.mxu0 %v1604
        %1762 = vmatpush2.bf16.msra.mxu0 %v1603
        %1763 = vmatprep.subr.bf16.mxu0 %v1602
        %1764 = vmatpush2.bf16.msra.mxu0 %v1601
        %1765 = vmatprep.subr.bf16.mxu0 %v1600
        %1766 = vmatpush2.bf16.msra.mxu0 %v1599
        %1767 = vmatprep.subr.bf16.mxu0 %v1598
        %1768 = vmatpush2.bf16.msra.mxu0 %v1597
        %1769 = vmatprep.subr.bf16.mxu0 %v1596
        %1770 = vmatpush2.bf16.msra.mxu0 %v1595
        %1771 = vmatprep.mubr.bf16.mxu0 %v1206
        %1772 = vmatmul.mubr.bf16.gmra.mxu0 %v1205
        %v1773 = vpop.f32.mrf.mxu0
        %v1774 = vadd.f32 %v1332, %v1773
        %v1775 = vpop.f32.mrf.mxu0
        %v1776 = vadd.f32 %v1336, %v1775
        %v1777 = vpop.f32.mrf.mxu0
        %v1778 = vadd.f32 %v1332, %v1777
        %v1779 = vpop.f32.mrf.mxu0
        %v1780 = vadd.f32 %v1336, %v1779
        %1781 = vmatprep.mubr.bf16.mxu0 %v1211
        %1782 = vmatmul.mubr.bf16.gmra.mxu0 %v1210
        %v1783 = vpop.f32.mrf.mxu0
        %v1784 = vadd.f32 %v1332, %v1783
        %v1785 = vpop.f32.mrf.mxu0
        %v1786 = vadd.f32 %v1336, %v1785
        %v1787 = vpop.f32.mrf.mxu0
        %v1788 = vadd.f32 %v1332, %v1787
        %v1789 = vpop.f32.mrf.mxu0
        %v1790 = vadd.f32 %v1336, %v1789
        %1791 = vmatprep.mubr.bf16.mxu0 %v1216
        %1792 = vmatmul.mubr.bf16.gmra.mxu0 %v1215
        %v1793 = vpop.f32.mrf.mxu0
        %v1794 = vadd.f32 %v1332, %v1793
        %v1795 = vpop.f32.mrf.mxu0
        %v1796 = vadd.f32 %v1336, %v1795
        %v1797 = vpop.f32.mrf.mxu0
        %v1798 = vadd.f32 %v1332, %v1797
        %v1799 = vpop.f32.mrf.mxu0
        %v1800 = vadd.f32 %v1336, %v1799
        %1801 = vmatprep.mubr.bf16.mxu0 %v1221
        %1802 = vmatmul.mubr.bf16.gmra.mxu0 %v1220
        %v1803 = vpop.f32.mrf.mxu0
        %v1804 = vadd.f32 %v1332, %v1803
        %v1805 = vpop.f32.mrf.mxu0
        %v1806 = vadd.f32 %v1336, %v1805
        %v1807 = vpop.f32.mrf.mxu0
        %v1808 = vadd.f32 %v1332, %v1807
        %v1809 = vpop.f32.mrf.mxu0
        %v1810 = vadd.f32 %v1336, %v1809
        %1811 = vmatprep.mubr.bf16.mxu0 %v1226
        %1812 = vmatmul.mubr.bf16.gmra.mxu0 %v1225
        %v1813 = vpop.f32.mrf.mxu0
        %v1814 = vadd.f32 %v1332, %v1813
        %v1815 = vpop.f32.mrf.mxu0
        %v1816 = vadd.f32 %v1336, %v1815
        %v1817 = vpop.f32.mrf.mxu0
        %v1818 = vadd.f32 %v1332, %v1817
        %v1819 = vpop.f32.mrf.mxu0
        %v1820 = vadd.f32 %v1336, %v1819
        %1821 = vmatprep.mubr.bf16.mxu0 %v1231
        %1822 = vmatmul.mubr.bf16.gmra.mxu0 %v1230
        %v1823 = vpop.f32.mrf.mxu0
        %v1824 = vadd.f32 %v1332, %v1823
        %v1825 = vpop.f32.mrf.mxu0
        %v1826 = vadd.f32 %v1336, %v1825
        %v1827 = vpop.f32.mrf.mxu0
        %v1828 = vadd.f32 %v1332, %v1827
        %v1829 = vpop.f32.mrf.mxu0
        %v1830 = vadd.f32 %v1336, %v1829
        %1831 = vmatprep.mubr.bf16.mxu0 %v1236
        %1832 = vmatmul.mubr.bf16.gmra.mxu0 %v1235
        %v1833 = vpop.f32.mrf.mxu0
        %v1834 = vadd.f32 %v1332, %v1833
        %v1835 = vpop.f32.mrf.mxu0
        %v1836 = vadd.f32 %v1336, %v1835
        %v1837 = vpop.f32.mrf.mxu0
        %v1838 = vadd.f32 %v1332, %v1837
        %v1839 = vpop.f32.mrf.mxu0
        %v1840 = vadd.f32 %v1336, %v1839
        %1841 = vmatprep.mubr.bf16.mxu0 %v1241
        %1842 = vmatmul.mubr.bf16.gmra.mxu0 %v1240
        %v1843 = vpop.f32.mrf.mxu0
        %v1844 = vadd.f32 %v1332, %v1843
        %v1845 = vpop.f32.mrf.mxu0
        %v1846 = vadd.f32 %v1336, %v1845
        %v1847 = vpop.f32.mrf.mxu0
        %v1848 = vadd.f32 %v1332, %v1847
        %v1849 = vpop.f32.mrf.mxu0
        %v1850 = vadd.f32 %v1336, %v1849
        %1851 = vdwg.mxu0
        %1852 = vmatprep.subr.bf16.mxu0 %v1626
        %1853 = vmatpush1.bf16.msra.mxu0 %v1625
        %1854 = vmatprep.subr.bf16.mxu0 %v1624
        %1855 = vmatpush1.bf16.msra.mxu0 %v1623
        %1856 = vmatprep.subr.bf16.mxu0 %v1622
        %1857 = vmatpush1.bf16.msra.mxu0 %v1621
        %1858 = vmatprep.subr.bf16.mxu0 %v1620
        %1859 = vmatpush1.bf16.msra.mxu0 %v1619
        %1860 = vmatprep.subr.bf16.mxu0 %v1618
        %1861 = vmatpush1.bf16.msra.mxu0 %v1617
        %1862 = vmatprep.subr.bf16.mxu0 %v1616
        %1863 = vmatpush1.bf16.msra.mxu0 %v1615
        %1864 = vmatprep.subr.bf16.mxu0 %v1614
        %1865 = vmatpush1.bf16.msra.mxu0 %v1613
        %1866 = vmatprep.subr.bf16.mxu0 %v1612
        %1867 = vmatpush1.bf16.msra.mxu0 %v1611
        %1868 = vmatprep.subr.bf16.mxu0 %v1642
        %1869 = vmatpush2.bf16.msra.mxu0 %v1641
        %1870 = vmatprep.subr.bf16.mxu0 %v1640
        %1871 = vmatpush2.bf16.msra.mxu0 %v1639
        %1872 = vmatprep.subr.bf16.mxu0 %v1638
        %1873 = vmatpush2.bf16.msra.mxu0 %v1637
        %1874 = vmatprep.subr.bf16.mxu0 %v1636
        %1875 = vmatpush2.bf16.msra.mxu0 %v1635
        %1876 = vmatprep.subr.bf16.mxu0 %v1634
        %1877 = vmatpush2.bf16.msra.mxu0 %v1633
        %1878 = vmatprep.subr.bf16.mxu0 %v1632
        %1879 = vmatpush2.bf16.msra.mxu0 %v1631
        %1880 = vmatprep.subr.bf16.mxu0 %v1630
        %1881 = vmatpush2.bf16.msra.mxu0 %v1629
        %1882 = vmatprep.subr.bf16.mxu0 %v1628
        %1883 = vmatpush2.bf16.msra.mxu0 %v1627
        %1884 = vmatprep.mubr.bf16.mxu0 %v1208
        %1885 = vmatmul.mubr.bf16.gmra.mxu0 %v1207
        %v1886 = vpop.f32.mrf.mxu0
        %v1887 = vadd.f32 %v1774, %v1886
        %v1888 = vpop.f32.mrf.mxu0
        %v1889 = vadd.f32 %v1776, %v1888
        %v1890 = vpop.f32.mrf.mxu0
        %v1891 = vadd.f32 %v1778, %v1890
        %v1892 = vpop.f32.mrf.mxu0
        %v1893 = vadd.f32 %v1780, %v1892
        %1894 = vmatprep.mubr.bf16.mxu0 %v1213
        %1895 = vmatmul.mubr.bf16.gmra.mxu0 %v1212
        %v1896 = vpop.f32.mrf.mxu0
        %v1897 = vadd.f32 %v1784, %v1896
        %v1898 = vpop.f32.mrf.mxu0
        %v1899 = vadd.f32 %v1786, %v1898
        %v1900 = vpop.f32.mrf.mxu0
        %v1901 = vadd.f32 %v1788, %v1900
        %v1902 = vpop.f32.mrf.mxu0
        %v1903 = vadd.f32 %v1790, %v1902
        %1904 = vmatprep.mubr.bf16.mxu0 %v1218
        %1905 = vmatmul.mubr.bf16.gmra.mxu0 %v1217
        %v1906 = vpop.f32.mrf.mxu0
        %v1907 = vadd.f32 %v1794, %v1906
        %v1908 = vpop.f32.mrf.mxu0
        %v1909 = vadd.f32 %v1796, %v1908
        %v1910 = vpop.f32.mrf.mxu0
        %v1911 = vadd.f32 %v1798, %v1910
        %v1912 = vpop.f32.mrf.mxu0
        %v1913 = vadd.f32 %v1800, %v1912
        %1914 = vmatprep.mubr.bf16.mxu0 %v1223
        %1915 = vmatmul.mubr.bf16.gmra.mxu0 %v1222
        %v1916 = vpop.f32.mrf.mxu0
        %v1917 = vadd.f32 %v1804, %v1916
        %v1918 = vpop.f32.mrf.mxu0
        %v1919 = vadd.f32 %v1806, %v1918
        %v1920 = vpop.f32.mrf.mxu0
        %v1921 = vadd.f32 %v1808, %v1920
        %v1922 = vpop.f32.mrf.mxu0
        %v1923 = vadd.f32 %v1810, %v1922
        %1924 = vmatprep.mubr.bf16.mxu0 %v1228
        %1925 = vmatmul.mubr.bf16.gmra.mxu0 %v1227
        %v1926 = vpop.f32.mrf.mxu0
        %v1927 = vadd.f32 %v1814, %v1926
        %v1928 = vpop.f32.mrf.mxu0
        %v1929 = vadd.f32 %v1816, %v1928
        %v1930 = vpop.f32.mrf.mxu0
        %v1931 = vadd.f32 %v1818, %v1930
        %v1932 = vpop.f32.mrf.mxu0
        %v1933 = vadd.f32 %v1820, %v1932
        %1934 = vmatprep.mubr.bf16.mxu0 %v1233
        %1935 = vmatmul.mubr.bf16.gmra.mxu0 %v1232
        %v1936 = vpop.f32.mrf.mxu0
        %v1937 = vadd.f32 %v1824, %v1936
        %v1938 = vpop.f32.mrf.mxu0
        %v1939 = vadd.f32 %v1826, %v1938
        %v1940 = vpop.f32.mrf.mxu0
        %v1941 = vadd.f32 %v1828, %v1940
        %v1942 = vpop.f32.mrf.mxu0
        %v1943 = vadd.f32 %v1830, %v1942
        %1944 = vmatprep.mubr.bf16.mxu0 %v1238
        %1945 = vmatmul.mubr.bf16.gmra.mxu0 %v1237
        %v1946 = vpop.f32.mrf.mxu0
        %v1947 = vadd.f32 %v1834, %v1946
        %v1948 = vpop.f32.mrf.mxu0
        %v1949 = vadd.f32 %v1836, %v1948
        %v1950 = vpop.f32.mrf.mxu0
        %v1951 = vadd.f32 %v1838, %v1950
        %v1952 = vpop.f32.mrf.mxu0
        %v1953 = vadd.f32 %v1840, %v1952
        %1954 = vmatprep.mubr.bf16.mxu0 %v1243
        %1955 = vmatmul.mubr.bf16.gmra.mxu0 %v1242
        %v1956 = vpop.f32.mrf.mxu0
        %v1957 = vadd.f32 %v1844, %v1956
        %v1958 = vpop.f32.mrf.mxu0
        %v1959 = vadd.f32 %v1846, %v1958
        %v1960 = vpop.f32.mrf.mxu0
        %v1961 = vadd.f32 %v1848, %v1960
        %v1962 = vpop.f32.mrf.mxu0
        %v1963 = vadd.f32 %v1850, %v1962
        %1964 = vdwg.mxu0
        %1965 = vmatprep.subr.bf16.mxu0 %v1658
        %1966 = vmatpush1.bf16.msra.mxu0 %v1657
        %1967 = vmatprep.subr.bf16.mxu0 %v1656
        %1968 = vmatpush1.bf16.msra.mxu0 %v1655
        %1969 = vmatprep.subr.bf16.mxu0 %v1654
        %1970 = vmatpush1.bf16.msra.mxu0 %v1653
        %1971 = vmatprep.subr.bf16.mxu0 %v1652
        %1972 = vmatpush1.bf16.msra.mxu0 %v1651
        %1973 = vmatprep.subr.bf16.mxu0 %v1650
        %1974 = vmatpush1.bf16.msra.mxu0 %v1649
        %1975 = vmatprep.subr.bf16.mxu0 %v1648
        %1976 = vmatpush1.bf16.msra.mxu0 %v1647
        %1977 = vmatprep.subr.bf16.mxu0 %v1646
        %1978 = vmatpush1.bf16.msra.mxu0 %v1645
        %1979 = vmatprep.subr.bf16.mxu0 %v1644
        %1980 = vmatpush1.bf16.msra.mxu0 %v1643
        %1981 = vmatprep.subr.bf16.mxu0 0
        %1982 = vmatpush2.bf16.msra.mxu0 0
        %1983 = vmatprep.subr.bf16.mxu0 0
        %1984 = vmatpush2.bf16.msra.mxu0 0
        %1985 = vmatprep.subr.bf16.mxu0 0
        %1986 = vmatpush2.bf16.msra.mxu0 0
        %1987 = vmatprep.subr.bf16.mxu0 0
        %1988 = vmatpush2.bf16.msra.mxu0 0
        %1989 = vmatprep.subr.bf16.mxu0 0
        %1990 = vmatpush2.bf16.msra.mxu0 0
        %1991 = vmatprep.subr.bf16.mxu0 0
        %1992 = vmatpush2.bf16.msra.mxu0 0
        %1993 = vmatprep.subr.bf16.mxu0 0
        %1994 = vmatpush2.bf16.msra.mxu0 0
        %1995 = vmatprep.subr.bf16.mxu0 0
        %1996 = vmatpush2.bf16.msra.mxu0 0
        %1997 = vmatprep.mubr.bf16.mxu0 0
        %1998 = vmatmul.mubr.bf16.gmra.mxu0 %v1209
        %v1999 = vpop.f32.mrf.mxu0
        %v2000 = vadd.f32 %v1887, %v1999
        %v2001 = vpop.f32.mrf.mxu0
        %v2002 = vadd.f32 %v1889, %v2001
        %v2003 = vpop.f32.mrf.mxu0
        %v2004 = vadd.f32 %v1891, %v2003
        %v2005 = vpop.f32.mrf.mxu0
        %v2006 = vadd.f32 %v1893, %v2005
        %2007 = vmatprep.mubr.bf16.mxu0 0
        %2008 = vmatmul.mubr.bf16.gmra.mxu0 %v1214
        %v2009 = vpop.f32.mrf.mxu0
        %v2010 = vadd.f32 %v1897, %v2009
        %v2011 = vpop.f32.mrf.mxu0
        %v2012 = vadd.f32 %v1899, %v2011
        %v2013 = vpop.f32.mrf.mxu0
        %v2014 = vadd.f32 %v1901, %v2013
        %v2015 = vpop.f32.mrf.mxu0
        %v2016 = vadd.f32 %v1903, %v2015
        %2017 = vmatprep.mubr.bf16.mxu0 0
        %2018 = vmatmul.mubr.bf16.gmra.mxu0 %v1219
        %v2019 = vpop.f32.mrf.mxu0
        %v2020 = vadd.f32 %v1907, %v2019
        %v2021 = vpop.f32.mrf.mxu0
        %v2022 = vadd.f32 %v1909, %v2021
        %v2023 = vpop.f32.mrf.mxu0
        %v2024 = vadd.f32 %v1911, %v2023
        %v2025 = vpop.f32.mrf.mxu0
        %v2026 = vadd.f32 %v1913, %v2025
        %2027 = vmatprep.mubr.bf16.mxu0 0
        %2028 = vmatmul.mubr.bf16.gmra.mxu0 %v1224
        %v2029 = vpop.f32.mrf.mxu0
        %v2030 = vadd.f32 %v1917, %v2029
        %v2031 = vpop.f32.mrf.mxu0
        %v2032 = vadd.f32 %v1919, %v2031
        %v2033 = vpop.f32.mrf.mxu0
        %v2034 = vadd.f32 %v1921, %v2033
        %v2035 = vpop.f32.mrf.mxu0
        %v2036 = vadd.f32 %v1923, %v2035
        %2037 = vmatprep.mubr.bf16.mxu0 0
        %2038 = vmatmul.mubr.bf16.gmra.mxu0 %v1229
        %v2039 = vpop.f32.mrf.mxu0
        %v2040 = vadd.f32 %v1927, %v2039
        %v2041 = vpop.f32.mrf.mxu0
        %v2042 = vadd.f32 %v1929, %v2041
        %v2043 = vpop.f32.mrf.mxu0
        %v2044 = vadd.f32 %v1931, %v2043
        %v2045 = vpop.f32.mrf.mxu0
        %v2046 = vadd.f32 %v1933, %v2045
        %2047 = vmatprep.mubr.bf16.mxu0 0
        %2048 = vmatmul.mubr.bf16.gmra.mxu0 %v1234
        %v2049 = vpop.f32.mrf.mxu0
        %v2050 = vadd.f32 %v1937, %v2049
        %v2051 = vpop.f32.mrf.mxu0
        %v2052 = vadd.f32 %v1939, %v2051
        %v2053 = vpop.f32.mrf.mxu0
        %v2054 = vadd.f32 %v1941, %v2053
        %v2055 = vpop.f32.mrf.mxu0
        %v2056 = vadd.f32 %v1943, %v2055
        %2057 = vmatprep.mubr.bf16.mxu0 0
        %2058 = vmatmul.mubr.bf16.gmra.mxu0 %v1239
        %v2059 = vpop.f32.mrf.mxu0
        %v2060 = vadd.f32 %v1947, %v2059
        %v2061 = vpop.f32.mrf.mxu0
        %v2062 = vadd.f32 %v1949, %v2061
        %v2063 = vpop.f32.mrf.mxu0
        %v2064 = vadd.f32 %v1951, %v2063
        %v2065 = vpop.f32.mrf.mxu0
        %v2066 = vadd.f32 %v1953, %v2065
        %2067 = vmatprep.mubr.bf16.mxu0 0
        %2068 = vmatmul.mubr.bf16.gmra.mxu0 %v1244
        %v2069 = vpop.f32.mrf.mxu0
        %v2070 = vadd.f32 %v1957, %v2069
        %v2071 = vpop.f32.mrf.mxu0
        %v2072 = vadd.f32 %v1959, %v2071
        %v2073 = vpop.f32.mrf.mxu0
        %v2074 = vadd.f32 %v1961, %v2073
        %v2075 = vpop.f32.mrf.mxu0
        %v2076 = vadd.f32 %v1963, %v2075
        %2077 = vdwg.mxu0
        %vm2078 = vcmp.gt.f32.partialorder %v2000, 0.0
        %vm2079 = vcmp.gt.f32.partialorder %v2002, 0.0
        %vm2080 = vcmp.gt.f32.partialorder %v2004, 0.0
        %vm2081 = vcmp.gt.f32.partialorder %v2006, 0.0
        %vm2082 = vcmp.gt.f32.partialorder %v2010, 0.0
        %vm2083 = vcmp.gt.f32.partialorder %v2012, 0.0
        %vm2084 = vcmp.gt.f32.partialorder %v2014, 0.0
        %vm2085 = vcmp.gt.f32.partialorder %v2016, 0.0
        %vm2086 = vcmp.gt.f32.partialorder %v2020, 0.0
        %vm2087 = vcmp.gt.f32.partialorder %v2022, 0.0
        %vm2088 = vcmp.gt.f32.partialorder %v2024, 0.0
        %vm2089 = vcmp.gt.f32.partialorder %v2026, 0.0
        %vm2090 = vcmp.gt.f32.partialorder %v2030, 0.0
        %vm2091 = vcmp.gt.f32.partialorder %v2032, 0.0
        %vm2092 = vcmp.gt.f32.partialorder %v2034, 0.0
        %vm2093 = vcmp.gt.f32.partialorder %v2036, 0.0
        %vm2094 = vcmp.gt.f32.partialorder %v2040, 0.0
        %vm2095 = vcmp.gt.f32.partialorder %v2042, 0.0
        %vm2096 = vcmp.gt.f32.partialorder %v2044, 0.0
        %vm2097 = vcmp.gt.f32.partialorder %v2046, 0.0
        %vm2098 = vcmp.gt.f32.partialorder %v2050, 0.0
        %vm2099 = vcmp.gt.f32.partialorder %v2052, 0.0
        %vm2100 = vcmp.gt.f32.partialorder %v2054, 0.0
        %vm2101 = vcmp.gt.f32.partialorder %v2056, 0.0
        %vm2102 = vcmp.gt.f32.partialorder %v2060, 0.0
        %vm2103 = vcmp.gt.f32.partialorder %v2062, 0.0
        %vm2104 = vcmp.gt.f32.partialorder %v2064, 0.0
        %vm2105 = vcmp.gt.f32.partialorder %v2066, 0.0
        %vm2106 = vcmp.gt.f32.partialorder %v2070, 0.0
        %vm2107 = vcmp.gt.f32.partialorder %v2072, 0.0
        %vm2108 = vcmp.gt.f32.partialorder %v2074, 0.0
        %vm2109 = vcmp.gt.f32.partialorder %v2076, 0.0
        %s2110 = scalar_lea.vmem %s7, %s1325
        %v2111 = vld [vmem:[%s2110] sm:$0x3]
        %v2113 = vlaneseq
        %v2114 = vshrl.u32 %v2113, 7
        %v2115 = vsub.s32 0, %v2114
        %v2116 = vrot.slane %v2111, %v2115
        %v2117 = vlaneseq
        %v2118 = vshrl.u32 %v2117, 7
        %v2119 = vsub.s32 1, %v2118
        %v2120 = vrot.slane %v2111, %v2119
        %v2123 = vmul.f32 %v2000, %v2116
        %v2124 = vmul.f32 %v2002, %v2120
        %v2125 = vmul.f32 %v2004, %v2116
        %v2126 = vmul.f32 %v2006, %v2120
        %v2127 = vmul.f32 %v2010, %v2116
        %v2128 = vmul.f32 %v2012, %v2120
        %v2129 = vmul.f32 %v2014, %v2116
        %v2130 = vmul.f32 %v2016, %v2120
        %v2131 = vmul.f32 %v2020, %v2116
        %v2132 = vmul.f32 %v2022, %v2120
        %v2133 = vmul.f32 %v2024, %v2116
        %v2134 = vmul.f32 %v2026, %v2120
        %v2135 = vmul.f32 %v2030, %v2116
        %v2136 = vmul.f32 %v2032, %v2120
        %v2137 = vmul.f32 %v2034, %v2116
        %v2138 = vmul.f32 %v2036, %v2120
        %v2139 = vmul.f32 %v2040, %v2116
        %v2140 = vmul.f32 %v2042, %v2120
        %v2141 = vmul.f32 %v2044, %v2116
        %v2142 = vmul.f32 %v2046, %v2120
        %v2143 = vmul.f32 %v2050, %v2116
        %v2144 = vmul.f32 %v2052, %v2120
        %v2145 = vmul.f32 %v2054, %v2116
        %v2146 = vmul.f32 %v2056, %v2120
        %v2147 = vmul.f32 %v2060, %v2116
        %v2148 = vmul.f32 %v2062, %v2120
        %v2149 = vmul.f32 %v2064, %v2116
        %v2150 = vmul.f32 %v2066, %v2120
        %v2151 = vmul.f32 %v2070, %v2116
        %v2152 = vmul.f32 %v2072, %v2120
        %v2153 = vmul.f32 %v2074, %v2116
        %v2154 = vmul.f32 %v2076, %v2120
        %v2155 = vsel %vm2078, %v2000, %v2123
        %v2156 = vsel %vm2079, %v2002, %v2124
        %v2157 = vsel %vm2080, %v2004, %v2125
        %v2158 = vsel %vm2081, %v2006, %v2126
        %v2159 = vsel %vm2082, %v2010, %v2127
        %v2160 = vsel %vm2083, %v2012, %v2128
        %v2161 = vsel %vm2084, %v2014, %v2129
        %v2162 = vsel %vm2085, %v2016, %v2130
        %v2163 = vsel %vm2086, %v2020, %v2131
        %v2164 = vsel %vm2087, %v2022, %v2132
        %v2165 = vsel %vm2088, %v2024, %v2133
        %v2166 = vsel %vm2089, %v2026, %v2134
        %v2167 = vsel %vm2090, %v2030, %v2135
        %v2168 = vsel %vm2091, %v2032, %v2136
        %v2169 = vsel %vm2092, %v2034, %v2137
        %v2170 = vsel %vm2093, %v2036, %v2138
        %v2171 = vsel %vm2094, %v2040, %v2139
        %v2172 = vsel %vm2095, %v2042, %v2140
        %v2173 = vsel %vm2096, %v2044, %v2141
        %v2174 = vsel %vm2097, %v2046, %v2142
        %v2175 = vsel %vm2098, %v2050, %v2143
        %v2176 = vsel %vm2099, %v2052, %v2144
        %v2177 = vsel %vm2100, %v2054, %v2145
        %v2178 = vsel %vm2101, %v2056, %v2146
        %v2179 = vsel %vm2102, %v2060, %v2147
        %v2180 = vsel %vm2103, %v2062, %v2148
        %v2181 = vsel %vm2104, %v2064, %v2149
        %v2182 = vsel %vm2105, %v2066, %v2150
        %v2183 = vsel %vm2106, %v2070, %v2151
        %v2184 = vsel %vm2107, %v2072, %v2152
        %v2185 = vsel %vm2108, %v2074, %v2153
        %v2186 = vsel %vm2109, %v2076, %v2154
        %s2187 = smul.u32 %s536, 32
        %s2188 = smul.addr %s2187, 8
        %s2189 = scalar_lea.vmem [#allocation2], %s2188
        %2190 = vst [vmem:[%s2189] sm:$0xff] %v2155
        %2191 = vst [vmem:[%s2189 + $0x8] sm:$0xff] %v2156
        %2192 = vst [vmem:[%s2189 + $0x10] sm:$0xff] %v2157
        %2193 = vst [vmem:[%s2189 + $0x18] sm:$0xff] %v2158
        %2194 = vst [vmem:[%s2189 + $0x20] sm:$0xff] %v2159
        %2195 = vst [vmem:[%s2189 + $0x28] sm:$0xff] %v2160
        %2196 = vst [vmem:[%s2189 + $0x30] sm:$0xff] %v2161
        %2197 = vst [vmem:[%s2189 + $0x38] sm:$0xff] %v2162
        %2198 = vst [vmem:[%s2189 + $0x40] sm:$0xff] %v2163
        %2199 = vst [vmem:[%s2189 + $0x48] sm:$0xff] %v2164
        %2200 = vst [vmem:[%s2189 + $0x50] sm:$0xff] %v2165
        %2201 = vst [vmem:[%s2189 + $0x58] sm:$0xff] %v2166
        %2202 = vst [vmem:[%s2189 + $0x60] sm:$0xff] %v2167
        %2203 = vst [vmem:[%s2189 + $0x68] sm:$0xff] %v2168
        %2204 = vst [vmem:[%s2189 + $0x70] sm:$0xff] %v2169
        %2205 = vst [vmem:[%s2189 + $0x78] sm:$0xff] %v2170
        %2206 = vst [vmem:[%s2189 + $0x80] sm:$0xff] %v2171
        %2207 = vst [vmem:[%s2189 + $0x88] sm:$0xff] %v2172
        %2208 = vst [vmem:[%s2189 + $0x90] sm:$0xff] %v2173
        %2209 = vst [vmem:[%s2189 + $0x98] sm:$0xff] %v2174
        %2210 = vst [vmem:[%s2189 + $0xa0] sm:$0xff] %v2175
        %2211 = vst [vmem:[%s2189 + $0xa8] sm:$0xff] %v2176
        %2212 = vst [vmem:[%s2189 + $0xb0] sm:$0xff] %v2177
        %2213 = vst [vmem:[%s2189 + $0xb8] sm:$0xff] %v2178
        %2214 = vst [vmem:[%s2189 + $0xc0] sm:$0xff] %v2179
        %2215 = vst [vmem:[%s2189 + $0xc8] sm:$0xff] %v2180
        %2216 = vst [vmem:[%s2189 + $0xd0] sm:$0xff] %v2181
        %2217 = vst [vmem:[%s2189 + $0xd8] sm:$0xff] %v2182
        %2218 = vst [vmem:[%s2189 + $0xe0] sm:$0xff] %v2183
        %2219 = vst [vmem:[%s2189 + $0xe8] sm:$0xff] %v2184
        %2220 = vst [vmem:[%s2189 + $0xf0] sm:$0xff] %v2185
        %2221 = vst [vmem:[%s2189 + $0xf8] sm:$0xff] %v2186
        %v2222 = vpack.c.bf16 %v2157, %v2155
        %v2223 = vpack.c.bf16 %v2158, %v2156
        %v2224 = vpack.c.bf16 %v2161, %v2159
        %v2225 = vpack.c.bf16 %v2162, %v2160
        %v2226 = vpack.c.bf16 %v2165, %v2163
        %v2227 = vpack.c.bf16 %v2166, %v2164
        %v2228 = vpack.c.bf16 %v2169, %v2167
        %v2229 = vpack.c.bf16 %v2170, %v2168
        %v2230 = vpack.c.bf16 %v2173, %v2171
        %v2231 = vpack.c.bf16 %v2174, %v2172
        %v2232 = vpack.c.bf16 %v2177, %v2175
        %v2233 = vpack.c.bf16 %v2178, %v2176
        %v2234 = vpack.c.bf16 %v2181, %v2179
        %v2235 = vpack.c.bf16 %v2182, %v2180
        %v2236 = vpack.c.bf16 %v2185, %v2183
        %v2237 = vpack.c.bf16 %v2186, %v2184
        %v2238 = vld [vmem:[%s456] sm:$0xff]
        %v2239 = vld [vmem:[%s456 + $0x8] sm:$0xff]
        %v2240 = vld [vmem:[%s456 + $0x10] sm:$0xff]
        %v2241 = vld [vmem:[%s456 + $0x18] sm:$0xff]
        %v2242 = vld [vmem:[%s456 + $0x20] sm:$0xff]
        %v2243 = vld [vmem:[%s456 + $0x28] sm:$0xff]
        %v2244 = vld [vmem:[%s456 + $0x30] sm:$0xff]
        %v2245 = vld [vmem:[%s456 + $0x38] sm:$0xff]
        %v2246 = vld [vmem:[%s456 + $0x40] sm:$0xff]
        %v2247 = vld [vmem:[%s456 + $0x48] sm:$0xff]
        %v2248 = vld [vmem:[%s456 + $0x50] sm:$0xff]
        %v2249 = vld [vmem:[%s456 + $0x58] sm:$0xff]
        %v2250 = vld [vmem:[%s456 + $0x60] sm:$0xff]
        %v2251 = vld [vmem:[%s456 + $0x68] sm:$0xff]
        %v2252 = vld [vmem:[%s456 + $0x70] sm:$0xff]
        %v2253 = vld [vmem:[%s456 + $0x78] sm:$0xff]
        %v2254 = vld [vmem:[%s456 + $0x80] sm:$0xff]
        %v2255 = vld [vmem:[%s456 + $0x88] sm:$0xff]
        %v2256 = vld [vmem:[%s456 + $0x90] sm:$0xff]
        %v2257 = vld [vmem:[%s456 + $0x98] sm:$0xff]
        %v2258 = vld [vmem:[%s456 + $0xa0] sm:$0xff]
        %v2259 = vld [vmem:[%s456 + $0xa8] sm:$0xff]
        %v2260 = vld [vmem:[%s456 + $0xb0] sm:$0xff]
        %v2261 = vld [vmem:[%s456 + $0xb8] sm:$0xff]
        %v2262 = vld [vmem:[%s456 + $0xc0] sm:$0xff]
        %v2263 = vld [vmem:[%s456 + $0xc8] sm:$0xff]
        %v2264 = vld [vmem:[%s456 + $0xd0] sm:$0xff]
        %v2265 = vld [vmem:[%s456 + $0xd8] sm:$0xff]
        %v2266 = vld [vmem:[%s456 + $0xe0] sm:$0xff]
        %v2267 = vld [vmem:[%s456 + $0xe8] sm:$0xff]
        %v2268 = vld [vmem:[%s456 + $0xf0] sm:$0xff]
        %v2269 = vld [vmem:[%s456 + $0xf8] sm:$0xff]
        %v2270 = vld [vmem:[%s530] sm:$0x3]
        %v2272 = vlaneseq
        %v2273 = vshrl.u32 %v2272, 7
        %v2274 = vsub.s32 0, %v2273
        %v2275 = vrot.slane %v2270, %v2274
        %v2276 = vlaneseq
        %v2277 = vshrl.u32 %v2276, 7
        %v2278 = vsub.s32 1, %v2277
        %v2279 = vrot.slane %v2270, %v2278
        %v2314 = vunpack.c.l.b16 %v2238
        %v2315 = vunpack.c.h.b16 %v2238
        %v2316 = vunpack.c.l.b16 %v2239
        %v2317 = vunpack.c.h.b16 %v2239
        %v2318 = vunpack.c.l.b16 %v2240
        %v2319 = vunpack.c.h.b16 %v2240
        %v2320 = vunpack.c.l.b16 %v2241
        %v2321 = vunpack.c.h.b16 %v2241
        %v2322 = vunpack.c.l.b16 %v2242
        %v2323 = vunpack.c.h.b16 %v2242
        %v2324 = vunpack.c.l.b16 %v2243
        %v2325 = vunpack.c.h.b16 %v2243
        %v2326 = vunpack.c.l.b16 %v2244
        %v2327 = vunpack.c.h.b16 %v2244
        %v2328 = vunpack.c.l.b16 %v2245
        %v2329 = vunpack.c.h.b16 %v2245
        %v2330 = vunpack.c.l.b16 %v2246
        %v2331 = vunpack.c.h.b16 %v2246
        %v2332 = vunpack.c.l.b16 %v2247
        %v2333 = vunpack.c.h.b16 %v2247
        %v2334 = vunpack.c.l.b16 %v2248
        %v2335 = vunpack.c.h.b16 %v2248
        %v2336 = vunpack.c.l.b16 %v2249
        %v2337 = vunpack.c.h.b16 %v2249
        %v2338 = vunpack.c.l.b16 %v2250
        %v2339 = vunpack.c.h.b16 %v2250
        %v2340 = vunpack.c.l.b16 %v2251
        %v2341 = vunpack.c.h.b16 %v2251
        %v2342 = vunpack.c.l.b16 %v2252
        %v2343 = vunpack.c.h.b16 %v2252
        %v2344 = vunpack.c.l.b16 %v2253
        %v2345 = vunpack.c.h.b16 %v2253
        %v2346 = vunpack.c.l.b16 %v2254
        %v2347 = vunpack.c.h.b16 %v2254
        %v2348 = vunpack.c.l.b16 %v2255
        %v2349 = vunpack.c.h.b16 %v2255
        %v2350 = vunpack.c.l.b16 %v2256
        %v2351 = vunpack.c.h.b16 %v2256
        %v2352 = vunpack.c.l.b16 %v2257
        %v2353 = vunpack.c.h.b16 %v2257
        %v2354 = vunpack.c.l.b16 %v2258
        %v2355 = vunpack.c.h.b16 %v2258
        %v2356 = vunpack.c.l.b16 %v2259
        %v2357 = vunpack.c.h.b16 %v2259
        %v2358 = vunpack.c.l.b16 %v2260
        %v2359 = vunpack.c.h.b16 %v2260
        %v2360 = vunpack.c.l.b16 %v2261
        %v2361 = vunpack.c.h.b16 %v2261
        %v2362 = vunpack.c.l.b16 %v2262
        %v2363 = vunpack.c.h.b16 %v2262
        %v2364 = vunpack.c.l.b16 %v2263
        %v2365 = vunpack.c.h.b16 %v2263
        %v2366 = vunpack.c.l.b16 %v2264
        %v2367 = vunpack.c.h.b16 %v2264
        %v2368 = vunpack.c.l.b16 %v2265
        %v2369 = vunpack.c.h.b16 %v2265
        %v2370 = vunpack.c.l.b16 %v2266
        %v2371 = vunpack.c.h.b16 %v2266
        %v2372 = vunpack.c.l.b16 %v2267
        %v2373 = vunpack.c.h.b16 %v2267
        %v2374 = vunpack.c.l.b16 %v2268
        %v2375 = vunpack.c.h.b16 %v2268
        %v2376 = vunpack.c.l.b16 %v2269
        %v2377 = vunpack.c.h.b16 %v2269
        %v2378 = vpack.c.b16 %v2316, %v2314
        %v2379 = vpack.c.b16 %v2317, %v2315
        %v2380 = vpack.c.b16 %v2320, %v2318
        %v2381 = vpack.c.b16 %v2321, %v2319
        %v2382 = vpack.c.b16 %v2324, %v2322
        %v2383 = vpack.c.b16 %v2325, %v2323
        %v2384 = vpack.c.b16 %v2328, %v2326
        %v2385 = vpack.c.b16 %v2329, %v2327
        %v2386 = vpack.c.b16 %v2332, %v2330
        %v2387 = vpack.c.b16 %v2333, %v2331
        %v2388 = vpack.c.b16 %v2336, %v2334
        %v2389 = vpack.c.b16 %v2337, %v2335
        %v2390 = vpack.c.b16 %v2340, %v2338
        %v2391 = vpack.c.b16 %v2341, %v2339
        %v2392 = vpack.c.b16 %v2344, %v2342
        %v2393 = vpack.c.b16 %v2345, %v2343
        %v2394 = vpack.c.b16 %v2348, %v2346
        %v2395 = vpack.c.b16 %v2349, %v2347
        %v2396 = vpack.c.b16 %v2352, %v2350
        %v2397 = vpack.c.b16 %v2353, %v2351
        %v2398 = vpack.c.b16 %v2356, %v2354
        %v2399 = vpack.c.b16 %v2357, %v2355
        %v2400 = vpack.c.b16 %v2360, %v2358
        %v2401 = vpack.c.b16 %v2361, %v2359
        %v2402 = vpack.c.b16 %v2364, %v2362
        %v2403 = vpack.c.b16 %v2365, %v2363
        %v2404 = vpack.c.b16 %v2368, %v2366
        %v2405 = vpack.c.b16 %v2369, %v2367
        %v2406 = vpack.c.b16 %v2372, %v2370
        %v2407 = vpack.c.b16 %v2373, %v2371
        %v2408 = vpack.c.b16 %v2376, %v2374
        %v2409 = vpack.c.b16 %v2377, %v2375
        %2442 = vmatprep.subr.bf16.mxu0 %v2393
        %2443 = vmatpush1.bf16.msra.mxu0 %v2392
        %2444 = vmatprep.subr.bf16.mxu0 %v2391
        %2445 = vmatpush1.bf16.msra.mxu0 %v2390
        %2446 = vmatprep.subr.bf16.mxu0 %v2389
        %2447 = vmatpush1.bf16.msra.mxu0 %v2388
        %2448 = vmatprep.subr.bf16.mxu0 %v2387
        %2449 = vmatpush1.bf16.msra.mxu0 %v2386
        %2450 = vmatprep.subr.bf16.mxu0 %v2385
        %2451 = vmatpush1.bf16.msra.mxu0 %v2384
        %2452 = vmatprep.subr.bf16.mxu0 %v2383
        %2453 = vmatpush1.bf16.msra.mxu0 %v2382
        %2454 = vmatprep.subr.bf16.mxu0 %v2381
        %2455 = vmatpush1.bf16.msra.mxu0 %v2380
        %2456 = vmatprep.subr.bf16.mxu0 %v2379
        %2457 = vmatpush1.bf16.msra.mxu0 %v2378
        %2458 = vmatprep.subr.bf16.mxu0 %v2409
        %2459 = vmatpush2.bf16.msra.mxu0 %v2408
        %2460 = vmatprep.subr.bf16.mxu0 %v2407
        %2461 = vmatpush2.bf16.msra.mxu0 %v2406
        %2462 = vmatprep.subr.bf16.mxu0 %v2405
        %2463 = vmatpush2.bf16.msra.mxu0 %v2404
        %2464 = vmatprep.subr.bf16.mxu0 %v2403
        %2465 = vmatpush2.bf16.msra.mxu0 %v2402
        %2466 = vmatprep.subr.bf16.mxu0 %v2401
        %2467 = vmatpush2.bf16.msra.mxu0 %v2400
        %2468 = vmatprep.subr.bf16.mxu0 %v2399
        %2469 = vmatpush2.bf16.msra.mxu0 %v2398
        %2470 = vmatprep.subr.bf16.mxu0 %v2397
        %2471 = vmatpush2.bf16.msra.mxu0 %v2396
        %2472 = vmatprep.subr.bf16.mxu0 %v2395
        %2473 = vmatpush2.bf16.msra.mxu0 %v2394
        %2474 = vmatprep.mubr.bf16.mxu0 %v2223
        %2475 = vmatmul.mubr.bf16.gmra.mxu0 %v2222
        %v2476 = vpop.f32.mrf.mxu0
        %v2477 = vadd.f32 %v2275, %v2476
        %v2478 = vpop.f32.mrf.mxu0
        %v2479 = vadd.f32 %v2279, %v2478
        %v2480 = vpop.f32.mrf.mxu0
        %v2481 = vadd.f32 %v2275, %v2480
        %v2482 = vpop.f32.mrf.mxu0
        %v2483 = vadd.f32 %v2279, %v2482
        %2484 = vmatprep.mubr.bf16.mxu0 %v2225
        %2485 = vmatmul.mubr.bf16.gmra.mxu0 %v2224
        %v2486 = vpop.f32.mrf.mxu0
        %v2487 = vadd.f32 %v2275, %v2486
        %v2488 = vpop.f32.mrf.mxu0
        %v2489 = vadd.f32 %v2279, %v2488
        %v2490 = vpop.f32.mrf.mxu0
        %v2491 = vadd.f32 %v2275, %v2490
        %v2492 = vpop.f32.mrf.mxu0
        %v2493 = vadd.f32 %v2279, %v2492
        %2494 = vmatprep.mubr.bf16.mxu0 %v2227
        %2495 = vmatmul.mubr.bf16.gmra.mxu0 %v2226
        %v2496 = vpop.f32.mrf.mxu0
        %v2497 = vadd.f32 %v2275, %v2496
        %v2498 = vpop.f32.mrf.mxu0
        %v2499 = vadd.f32 %v2279, %v2498
        %v2500 = vpop.f32.mrf.mxu0
        %v2501 = vadd.f32 %v2275, %v2500
        %v2502 = vpop.f32.mrf.mxu0
        %v2503 = vadd.f32 %v2279, %v2502
        %2504 = vmatprep.mubr.bf16.mxu0 %v2229
        %2505 = vmatmul.mubr.bf16.gmra.mxu0 %v2228
        %v2506 = vpop.f32.mrf.mxu0
        %v2507 = vadd.f32 %v2275, %v2506
        %v2508 = vpop.f32.mrf.mxu0
        %v2509 = vadd.f32 %v2279, %v2508
        %v2510 = vpop.f32.mrf.mxu0
        %v2511 = vadd.f32 %v2275, %v2510
        %v2512 = vpop.f32.mrf.mxu0
        %v2513 = vadd.f32 %v2279, %v2512
        %2514 = vmatprep.mubr.bf16.mxu0 %v2231
        %2515 = vmatmul.mubr.bf16.gmra.mxu0 %v2230
        %v2516 = vpop.f32.mrf.mxu0
        %v2517 = vadd.f32 %v2275, %v2516
        %v2518 = vpop.f32.mrf.mxu0
        %v2519 = vadd.f32 %v2279, %v2518
        %v2520 = vpop.f32.mrf.mxu0
        %v2521 = vadd.f32 %v2275, %v2520
        %v2522 = vpop.f32.mrf.mxu0
        %v2523 = vadd.f32 %v2279, %v2522
        %2524 = vmatprep.mubr.bf16.mxu0 %v2233
        %2525 = vmatmul.mubr.bf16.gmra.mxu0 %v2232
        %v2526 = vpop.f32.mrf.mxu0
        %v2527 = vadd.f32 %v2275, %v2526
        %v2528 = vpop.f32.mrf.mxu0
        %v2529 = vadd.f32 %v2279, %v2528
        %v2530 = vpop.f32.mrf.mxu0
        %v2531 = vadd.f32 %v2275, %v2530
        %v2532 = vpop.f32.mrf.mxu0
        %v2533 = vadd.f32 %v2279, %v2532
        %2534 = vmatprep.mubr.bf16.mxu0 %v2235
        %2535 = vmatmul.mubr.bf16.gmra.mxu0 %v2234
        %v2536 = vpop.f32.mrf.mxu0
        %v2537 = vadd.f32 %v2275, %v2536
        %v2538 = vpop.f32.mrf.mxu0
        %v2539 = vadd.f32 %v2279, %v2538
        %v2540 = vpop.f32.mrf.mxu0
        %v2541 = vadd.f32 %v2275, %v2540
        %v2542 = vpop.f32.mrf.mxu0
        %v2543 = vadd.f32 %v2279, %v2542
        %2544 = vmatprep.mubr.bf16.mxu0 %v2237
        %2545 = vmatmul.mubr.bf16.gmra.mxu0 %v2236
        %v2546 = vpop.f32.mrf.mxu0
        %v2547 = vadd.f32 %v2275, %v2546
        %v2548 = vpop.f32.mrf.mxu0
        %v2549 = vadd.f32 %v2279, %v2548
        %v2550 = vpop.f32.mrf.mxu0
        %v2551 = vadd.f32 %v2275, %v2550
        %v2552 = vpop.f32.mrf.mxu0
        %v2553 = vadd.f32 %v2279, %v2552
        %2554 = vdwg.mxu0
        %v2555 = vtanh.pop %v2477
        %v2556 = vtanh.pop %v2479
        %v2557 = vtanh.pop %v2481
        %v2558 = vtanh.pop %v2483
        %v2559 = vtanh.pop %v2487
        %v2560 = vtanh.pop %v2489
        %v2561 = vtanh.pop %v2491
        %v2562 = vtanh.pop %v2493
        %v2563 = vtanh.pop %v2497
        %v2564 = vtanh.pop %v2499
        %v2565 = vtanh.pop %v2501
        %v2566 = vtanh.pop %v2503
        %v2567 = vtanh.pop %v2507
        %v2568 = vtanh.pop %v2509
        %v2569 = vtanh.pop %v2511
        %v2570 = vtanh.pop %v2513
        %v2571 = vtanh.pop %v2517
        %v2572 = vtanh.pop %v2519
        %v2573 = vtanh.pop %v2521
        %v2574 = vtanh.pop %v2523
        %v2575 = vtanh.pop %v2527
        %v2576 = vtanh.pop %v2529
        %v2577 = vtanh.pop %v2531
        %v2578 = vtanh.pop %v2533
        %v2579 = vtanh.pop %v2537
        %v2580 = vtanh.pop %v2539
        %v2581 = vtanh.pop %v2541
        %v2582 = vtanh.pop %v2543
        %v2583 = vtanh.pop %v2547
        %v2584 = vtanh.pop %v2549
        %v2585 = vtanh.pop %v2551
        %v2586 = vtanh.pop %v2553
        %v2587 = vadd.f32 %v2555, %v2557
        %v2588 = vadd.f32 %v2587, %v2559
        %v2589 = vadd.f32 %v2588, %v2561
        %v2590 = vadd.f32 %v2589, %v2563
        %v2591 = vadd.f32 %v2590, %v2565
        %v2592 = vadd.f32 %v2591, %v2567
        %v2593 = vadd.f32 %v2592, %v2569
        %v2594 = vadd.f32 %v2593, %v2571
        %v2595 = vadd.f32 %v2594, %v2573
        %v2596 = vadd.f32 %v2595, %v2575
        %v2597 = vadd.f32 %v2596, %v2577
        %v2598 = vadd.f32 %v2597, %v2579
        %v2599 = vadd.f32 %v2598, %v2581
        %v2600 = vadd.f32 %v2599, %v2583
        %v2601 = vadd.f32 %v2600, %v2585
        %v2602 = vrot.slane %v2601, 4
        %v2603 = vadd.f32 %v2601, %v2602
        %v2604 = vrot.slane %v2603, 2
        %v2605 = vadd.f32 %v2603, %v2604
        %v2606 = vrot.slane %v2605, 1
        %v2607 = vadd.f32 %v2605, %v2606
        %v2608 = vadd.f32 %v2556, %v2558
        %v2609 = vadd.f32 %v2608, %v2560
        %v2610 = vadd.f32 %v2609, %v2562
        %v2611 = vadd.f32 %v2610, %v2564
        %v2612 = vadd.f32 %v2611, %v2566
        %v2613 = vadd.f32 %v2612, %v2568
        %v2614 = vadd.f32 %v2613, %v2570
        %v2615 = vadd.f32 %v2614, %v2572
        %v2616 = vadd.f32 %v2615, %v2574
        %v2617 = vadd.f32 %v2616, %v2576
        %v2618 = vadd.f32 %v2617, %v2578
        %v2619 = vadd.f32 %v2618, %v2580
        %v2620 = vadd.f32 %v2619, %v2582
        %v2621 = vadd.f32 %v2620, %v2584
        %v2622 = vadd.f32 %v2621, %v2586
        %v2623 = vrot.slane %v2622, 4
        %v2624 = vadd.f32 %v2622, %v2623
        %v2625 = vrot.slane %v2624, 2
        %v2626 = vadd.f32 %v2624, %v2625
        %v2627 = vrot.slane %v2626, 1
        %v2628 = vadd.f32 %v2626, %v2627
        %v2629 = vrcp.pop 128.0
        %v2630 = vmul.f32 %v2607, %v2629
        %v2631 = vmul.f32 %v2628, %v2629
        %v2634 = vcombine.low %v2630, %v2631
        %v2636 = vunpack.c.l.s4 1966171168
        %v2637 = vunpack.c.0.s8 %v2636
        %v2638 = vlaneseq
        %v2639 = vshrl.u32 %v2638, 7
        %v2640 = vsub.s32 %v2637, %v2639
        %v2641 = vrot.slane %v2634, %v2640
        %v2643 = vunpack.c.l.s4 1966171168
        %v2644 = vunpack.c.0.s8 %v2643
        %v2645 = vlaneseq
        %v2646 = vshrl.u32 %v2645, 7
        %v2647 = vsub.s32 %v2644, %v2646
        %v2648 = vrot.slane %v2641, %v2647
        %s2650 = smul.u32 %s536, 2
        %s2651 = scalar_lea.vmem [#allocation3], %s2650
        %v2652 = vlaneseq
        %vm2653 = vcmp.ge.s32.totalorder %v2652, 0
        %vm2654 = vcmp.lt.s32.totalorder %v2652, 256
        %vm2655 = vmand %vm2653, %vm2654
        %2656 = vst.msk [vmem:[%s2651] sm:$0x3] %vm2655, %v2648
        %s2657 = sld [smem:[#allocation7 + %s42]]
        %p2658 = scmp.eq.s32.totalorder %s2657, 1
        // Predicated region
        $region73: #{tpu_custom_call.1} parent=51 // pred_check
          %p2659 = pneg %p2658
        $region74: #{tpu_custom_call.1} parent=51 // pred_check_branch
          %2661 = sbr.rel (%p2659) target = $region76
        $region75: #{tpu_custom_call.1} parent=51 // pred_region
          %s2662 = sadd.s32 %s536, 1
          %v2663 = vlaneseq
          %v2664 = vshrl.u32 %v2663, 7
          %v2665 = vstv %s2662
          %vm2666 = vcmp.lt.s32.totalorder %v2664, %v2665
          %v2667 = vld [vmem:[#allocation3] sm:$0x3]
          %v2668 = vld [vmem:[#allocation3 + $0x2] sm:$0x3]
          %v2669 = vld [vmem:[%s465] sm:$0x3]
          %v2670 = vmul.f32 %v2667, %v2669
          %v2671 = vmul.f32 %v2668, %v2669
          %vm2672 = vcmask 1040384
          %v2673 = vsel %vm2672, %v2670, 0.0
          %2674 = vadd.xlane.f32.xlu0 %v2673
          %v2675 = vpop.xlane.xlu0 %2674
          %v2676 = vsel %vm2672, %v2671, 0.0
          %2677 = vadd.xlane.f32.xlu0 %v2676
          %v2678 = vpop.xlane.xlu0 %2677
          %v2681 = vlaneseq
          %v2682 = vshrl.u32 %v2681, 7
          %v2683 = vsub.s32 1, %v2682
          %v2684 = vrot.slane %v2670, %v2683
          %v2685 = vlaneseq
          %v2686 = vshrl.u32 %v2685, 7
          %v2687 = vsub.s32 1, %v2686
          %v2688 = vrot.slane %v2671, %v2687
          %v2691 = vsel %vm2672, %v2684, 0.0
          %2692 = vadd.xlane.f32.xlu0 %v2691
          %v2693 = vpop.xlane.xlu0 %2692
          %v2694 = vsel %vm2672, %v2688, 0.0
          %2695 = vadd.xlane.f32.xlu0 %v2694
          %v2696 = vpop.xlane.xlu0 %2695
          %v2699 = vrot.slane %v2678, 7
          %vm2700 = vcmask 1041409
          %v2701 = vsel %vm2700, %v2699, %v2675
          %v2703 = vsel %vm2666, %v2701, -inf
          %vm2704 = vcmask 1024
          %v2705 = vsel %vm2704, %v2703, -inf
          %v2706 = vrot.slane %v2705, 4
          %v2707 = vmax.f32 %v2705, %v2706
          %v2708 = vrot.slane %v2707, 2
          %v2709 = vmax.f32 %v2707, %v2708
          %v2710 = vrot.slane %v2709, 1
          %v2711 = vmax.f32 %v2709, %v2710
          %2714 = vbcast.lane.b32.xlu0 %v2711, 256
          %v2715 = vpop.permute.xlu0 %2714
          %v2717 = vsub.f32 %v2675, %v2715
          %v2718 = vsub.f32 %v2678, %v2715
          %v2719 = vmul.f32 %v2717, 1.442695
          %v2720 = vpow.pop %v2719
          %v2721 = vmul.f32 %v2718, 1.442695
          %v2722 = vpow.pop %v2721
          %v2725 = vrot.slane %v2722, 7
          %v2726 = vsel %vm2700, %v2725, %v2720
          %v2728 = vsel %vm2666, %v2726, 0.0
          %v2729 = vsel %vm2704, %v2728, 0.0
          %v2730 = vrot.slane %v2729, 4
          %v2731 = vadd.f32 %v2729, %v2730
          %v2732 = vrot.slane %v2731, 2
          %v2733 = vadd.f32 %v2731, %v2732
          %v2734 = vrot.slane %v2733, 1
          %v2735 = vadd.f32 %v2733, %v2734
          %v2736 = vrcp.pop %v2735
          %v2737 = vmul.f32 %v2728, %v2736
          %v2740 = vunpack.c.l.s4 1966171168
          %v2741 = vunpack.c.0.s8 %v2740
          %v2742 = vlaneseq
          %v2743 = vshrl.u32 %v2742, 7
          %v2744 = vsub.s32 %v2741, %v2743
          %v2745 = vrot.slane %v2737, %v2744
          %v2746 = vcombine.high %v2745, %v2745
          %v2748 = vunpack.c.l.s4 1966171168
          %v2749 = vunpack.c.0.s8 %v2748
          %v2750 = vlaneseq
          %v2751 = vshrl.u32 %v2750, 7
          %v2752 = vsub.s32 %v2749, %v2751
          %v2753 = vrot.slane %v2745, %v2752
          %v2755 = vunpack.c.l.s4 1966171168
          %v2756 = vunpack.c.0.s8 %v2755
          %v2757 = vlaneseq
          %v2758 = vshrl.u32 %v2757, 7
          %v2759 = vsub.s32 %v2756, %v2758
          %v2760 = vrot.slane %v2746, %v2759
          %v2763 = vrot.slane %v2696, 7
          %v2764 = vsel %vm2700, %v2763, %v2693
          %v2766 = vsel %vm2666, %v2764, -inf
          %v2767 = vsel %vm2704, %v2766, -inf
          %v2768 = vrot.slane %v2767, 4
          %v2769 = vmax.f32 %v2767, %v2768
          %v2770 = vrot.slane %v2769, 2
          %v2771 = vmax.f32 %v2769, %v2770
          %v2772 = vrot.slane %v2771, 1
          %v2773 = vmax.f32 %v2771, %v2772
          %2776 = vbcast.lane.b32.xlu0 %v2773, 256
          %v2777 = vpop.permute.xlu0 %2776
          %v2779 = vsub.f32 %v2693, %v2777
          %v2780 = vsub.f32 %v2696, %v2777
          %v2781 = vmul.f32 %v2779, 1.442695
          %v2782 = vpow.pop %v2781
          %v2783 = vmul.f32 %v2780, 1.442695
          %v2784 = vpow.pop %v2783
          %v2787 = vrot.slane %v2784, 7
          %v2788 = vsel %vm2700, %v2787, %v2782
          %v2790 = vsel %vm2666, %v2788, 0.0
          %v2791 = vsel %vm2704, %v2790, 0.0
          %v2792 = vrot.slane %v2791, 4
          %v2793 = vadd.f32 %v2791, %v2792
          %v2794 = vrot.slane %v2793, 2
          %v2795 = vadd.f32 %v2793, %v2794
          %v2796 = vrot.slane %v2795, 1
          %v2797 = vadd.f32 %v2795, %v2796
          %v2798 = vrcp.pop %v2797
          %v2799 = vmul.f32 %v2790, %v2798
          %v2802 = vunpack.c.l.s4 1966171168
          %v2803 = vunpack.c.0.s8 %v2802
          %v2804 = vlaneseq
          %v2805 = vshrl.u32 %v2804, 7
          %v2806 = vsub.s32 %v2803, %v2805
          %v2807 = vrot.slane %v2799, %v2806
          %v2808 = vcombine.high %v2807, %v2807
          %v2810 = vunpack.c.l.s4 1966171168
          %v2811 = vunpack.c.0.s8 %v2810
          %v2812 = vlaneseq
          %v2813 = vshrl.u32 %v2812, 7
          %v2814 = vsub.s32 %v2811, %v2813
          %v2815 = vrot.slane %v2807, %v2814
          %v2817 = vunpack.c.l.s4 1966171168
          %v2818 = vunpack.c.0.s8 %v2817
          %v2819 = vlaneseq
          %v2820 = vshrl.u32 %v2819, 7
          %v2821 = vsub.s32 %v2818, %v2820
          %v2822 = vrot.slane %v2808, %v2821
          %v2823 = vsel %vm2666, 1, 0
          %v2824 = vlaneseq
          %v2825 = vshrl.u32 %v2824, 7
          %v2826 = vsub.s32 0, %v2825
          %v2827 = vrot.slane %v2823, %v2826
          %v2828 = vlaneseq
          %v2829 = vshrl.u32 %v2828, 7
          %v2830 = vsub.s32 1, %v2829
          %v2831 = vrot.slane %v2823, %v2830
          %vm2832 = vcmp.ne.s32.totalorder %v2827, 0
          %vm2833 = vcmp.ne.s32.totalorder %v2831, 0
          %v2834 = vld [vmem:[#allocation2] sm:$0xff]
          %v2835 = vld [vmem:[#allocation2 + $0x8] sm:$0xff]
          %v2836 = vld [vmem:[#allocation2 + $0x10] sm:$0xff]
          %v2837 = vld [vmem:[#allocation2 + $0x18] sm:$0xff]
          %v2838 = vld [vmem:[#allocation2 + $0x20] sm:$0xff]
          %v2839 = vld [vmem:[#allocation2 + $0x28] sm:$0xff]
          %v2840 = vld [vmem:[#allocation2 + $0x30] sm:$0xff]
          %v2841 = vld [vmem:[#allocation2 + $0x38] sm:$0xff]
          %v2842 = vld [vmem:[#allocation2 + $0x40] sm:$0xff]
          %v2843 = vld [vmem:[#allocation2 + $0x48] sm:$0xff]
          %v2844 = vld [vmem:[#allocation2 + $0x50] sm:$0xff]
          %v2845 = vld [vmem:[#allocation2 + $0x58] sm:$0xff]
          %v2846 = vld [vmem:[#allocation2 + $0x60] sm:$0xff]
          %v2847 = vld [vmem:[#allocation2 + $0x68] sm:$0xff]
          %v2848 = vld [vmem:[#allocation2 + $0x70] sm:$0xff]
          %v2849 = vld [vmem:[#allocation2 + $0x78] sm:$0xff]
          %v2850 = vld [vmem:[#allocation2 + $0x80] sm:$0xff]
          %v2851 = vld [vmem:[#allocation2 + $0x88] sm:$0xff]
          %v2852 = vld [vmem:[#allocation2 + $0x90] sm:$0xff]
          %v2853 = vld [vmem:[#allocation2 + $0x98] sm:$0xff]
          %v2854 = vld [vmem:[#allocation2 + $0xa0] sm:$0xff]
          %v2855 = vld [vmem:[#allocation2 + $0xa8] sm:$0xff]
          %v2856 = vld [vmem:[#allocation2 + $0xb0] sm:$0xff]
          %v2857 = vld [vmem:[#allocation2 + $0xb8] sm:$0xff]
          %v2858 = vld [vmem:[#allocation2 + $0xc0] sm:$0xff]
          %v2859 = vld [vmem:[#allocation2 + $0xc8] sm:$0xff]
          %v2860 = vld [vmem:[#allocation2 + $0xd0] sm:$0xff]
          %v2861 = vld [vmem:[#allocation2 + $0xd8] sm:$0xff]
          %v2862 = vld [vmem:[#allocation2 + $0xe0] sm:$0xff]
          %v2863 = vld [vmem:[#allocation2 + $0xe8] sm:$0xff]
          %v2864 = vld [vmem:[#allocation2 + $0xf0] sm:$0xff]
          %v2865 = vld [vmem:[#allocation2 + $0xf8] sm:$0xff]
          %v2866 = vld [vmem:[#allocation2 + $0x100] sm:$0xff]
          %v2867 = vld [vmem:[#allocation2 + $0x108] sm:$0xff]
          %v2868 = vld [vmem:[#allocation2 + $0x110] sm:$0xff]
          %v2869 = vld [vmem:[#allocation2 + $0x118] sm:$0xff]
          %v2870 = vld [vmem:[#allocation2 + $0x120] sm:$0xff]
          %v2871 = vld [vmem:[#allocation2 + $0x128] sm:$0xff]
          %v2872 = vld [vmem:[#allocation2 + $0x130] sm:$0xff]
          %v2873 = vld [vmem:[#allocation2 + $0x138] sm:$0xff]
          %v2874 = vld [vmem:[#allocation2 + $0x140] sm:$0xff]
          %v2875 = vld [vmem:[#allocation2 + $0x148] sm:$0xff]
          %v2876 = vld [vmem:[#allocation2 + $0x150] sm:$0xff]
          %v2877 = vld [vmem:[#allocation2 + $0x158] sm:$0xff]
          %v2878 = vld [vmem:[#allocation2 + $0x160] sm:$0xff]
          %v2879 = vld [vmem:[#allocation2 + $0x168] sm:$0xff]
          %v2880 = vld [vmem:[#allocation2 + $0x170] sm:$0xff]
          %v2881 = vld [vmem:[#allocation2 + $0x178] sm:$0xff]
          %v2882 = vld [vmem:[#allocation2 + $0x180] sm:$0xff]
          %v2883 = vld [vmem:[#allocation2 + $0x188] sm:$0xff]
          %v2884 = vld [vmem:[#allocation2 + $0x190] sm:$0xff]
          %v2885 = vld [vmem:[#allocation2 + $0x198] sm:$0xff]
          %v2886 = vld [vmem:[#allocation2 + $0x1a0] sm:$0xff]
          %v2887 = vld [vmem:[#allocation2 + $0x1a8] sm:$0xff]
          %v2888 = vld [vmem:[#allocation2 + $0x1b0] sm:$0xff]
          %v2889 = vld [vmem:[#allocation2 + $0x1b8] sm:$0xff]
          %v2890 = vld [vmem:[#allocation2 + $0x1c0] sm:$0xff]
          %v2891 = vld [vmem:[#allocation2 + $0x1c8] sm:$0xff]
          %v2892 = vld [vmem:[#allocation2 + $0x1d0] sm:$0xff]
          %v2893 = vld [vmem:[#allocation2 + $0x1d8] sm:$0xff]
          %v2894 = vld [vmem:[#allocation2 + $0x1e0] sm:$0xff]
          %v2895 = vld [vmem:[#allocation2 + $0x1e8] sm:$0xff]
          %v2896 = vld [vmem:[#allocation2 + $0x1f0] sm:$0xff]
          %v2897 = vld [vmem:[#allocation2 + $0x1f8] sm:$0xff]
          %v2898 = vlaneseq
          %v2899 = vshrl.u32 %v2898, 7
          %v2900 = vsub.s32 0, %v2899
          %v2901 = vrot.slane %v2753, %v2900
          %v2902 = vlaneseq
          %v2903 = vshrl.u32 %v2902, 7
          %v2904 = vsub.s32 0, %v2903
          %v2905 = vrot.slane %v2760, %v2904
          %2906 = vset.pattern.permute.xlu0 0
          %2907 = vperm.xlu0 %2906, %v2901
          %v2908 = vpop.permute.xlu0 %2907
          %2910 = vset.pattern.permute.xlu0 0
          %2911 = vperm.xlu0 %2910, %v2905
          %v2912 = vpop.permute.xlu0 %2911
          %v2914 = vmul.f32 %v2908, %v2834
          %v2915 = vmul.f32 %v2908, %v2836
          %v2916 = vmul.f32 %v2908, %v2838
          %v2917 = vmul.f32 %v2908, %v2840
          %v2918 = vmul.f32 %v2908, %v2842
          %v2919 = vmul.f32 %v2908, %v2844
          %v2920 = vmul.f32 %v2908, %v2846
          %v2921 = vmul.f32 %v2908, %v2848
          %v2922 = vmul.f32 %v2908, %v2850
          %v2923 = vmul.f32 %v2908, %v2852
          %v2924 = vmul.f32 %v2908, %v2854
          %v2925 = vmul.f32 %v2908, %v2856
          %v2926 = vmul.f32 %v2908, %v2858
          %v2927 = vmul.f32 %v2908, %v2860
          %v2928 = vmul.f32 %v2908, %v2862
          %v2929 = vmul.f32 %v2908, %v2864
          %v2930 = vmul.f32 %v2912, %v2866
          %v2931 = vmul.f32 %v2912, %v2868
          %v2932 = vmul.f32 %v2912, %v2870
          %v2933 = vmul.f32 %v2912, %v2872
          %v2934 = vmul.f32 %v2912, %v2874
          %v2935 = vmul.f32 %v2912, %v2876
          %v2936 = vmul.f32 %v2912, %v2878
          %v2937 = vmul.f32 %v2912, %v2880
          %v2938 = vmul.f32 %v2912, %v2882
          %v2939 = vmul.f32 %v2912, %v2884
          %v2940 = vmul.f32 %v2912, %v2886
          %v2941 = vmul.f32 %v2912, %v2888
          %v2942 = vmul.f32 %v2912, %v2890
          %v2943 = vmul.f32 %v2912, %v2892
          %v2944 = vmul.f32 %v2912, %v2894
          %v2945 = vmul.f32 %v2912, %v2896
          %v2946 = vsel %vm2832, 1, 0
          %v2947 = vsel %vm2833, 1, 0
          %vm2948 = vcmp.eq.s32.totalorder %v2946, 1
          %vm2949 = vcmp.eq.s32.totalorder %v2947, 1
          %v2950 = vsel %vm2948, %v2914, 0.0
          %v2951 = vsel %vm2948, %v2915, 0.0
          %v2952 = vsel %vm2948, %v2916, 0.0
          %v2953 = vsel %vm2948, %v2917, 0.0
          %v2954 = vsel %vm2948, %v2918, 0.0
          %v2955 = vsel %vm2948, %v2919, 0.0
          %v2956 = vsel %vm2948, %v2920, 0.0
          %v2957 = vsel %vm2948, %v2921, 0.0
          %v2958 = vsel %vm2948, %v2922, 0.0
          %v2959 = vsel %vm2948, %v2923, 0.0
          %v2960 = vsel %vm2948, %v2924, 0.0
          %v2961 = vsel %vm2948, %v2925, 0.0
          %v2962 = vsel %vm2948, %v2926, 0.0
          %v2963 = vsel %vm2948, %v2927, 0.0
          %v2964 = vsel %vm2948, %v2928, 0.0
          %v2965 = vsel %vm2948, %v2929, 0.0
          %v2966 = vsel %vm2949, %v2930, 0.0
          %v2967 = vsel %vm2949, %v2931, 0.0
          %v2968 = vsel %vm2949, %v2932, 0.0
          %v2969 = vsel %vm2949, %v2933, 0.0
          %v2970 = vsel %vm2949, %v2934, 0.0
          %v2971 = vsel %vm2949, %v2935, 0.0
          %v2972 = vsel %vm2949, %v2936, 0.0
          %v2973 = vsel %vm2949, %v2937, 0.0
          %v2974 = vsel %vm2949, %v2938, 0.0
          %v2975 = vsel %vm2949, %v2939, 0.0
          %v2976 = vsel %vm2949, %v2940, 0.0
          %v2977 = vsel %vm2949, %v2941, 0.0
          %v2978 = vsel %vm2949, %v2942, 0.0
          %v2979 = vsel %vm2949, %v2943, 0.0
          %v2980 = vsel %vm2949, %v2944, 0.0
          %v2981 = vsel %vm2949, %v2945, 0.0
          %v2982 = vadd.f32 %v2950, %v2966
          %v2983 = vadd.f32 %v2951, %v2967
          %v2984 = vadd.f32 %v2952, %v2968
          %v2985 = vadd.f32 %v2953, %v2969
          %v2986 = vadd.f32 %v2954, %v2970
          %v2987 = vadd.f32 %v2955, %v2971
          %v2988 = vadd.f32 %v2956, %v2972
          %v2989 = vadd.f32 %v2957, %v2973
          %v2990 = vadd.f32 %v2958, %v2974
          %v2991 = vadd.f32 %v2959, %v2975
          %v2992 = vadd.f32 %v2960, %v2976
          %v2993 = vadd.f32 %v2961, %v2977
          %v2994 = vadd.f32 %v2962, %v2978
          %v2995 = vadd.f32 %v2963, %v2979
          %v2996 = vadd.f32 %v2964, %v2980
          %v2997 = vadd.f32 %v2965, %v2981
          %2998 = vst [vmem:[%s517] sm:$0xff] %v2982
          %2999 = vst [vmem:[%s517 + $0x8] sm:$0xff] %v2983
          %3000 = vst [vmem:[%s517 + $0x10] sm:$0xff] %v2984
          %3001 = vst [vmem:[%s517 + $0x18] sm:$0xff] %v2985
          %3002 = vst [vmem:[%s517 + $0x20] sm:$0xff] %v2986
          %3003 = vst [vmem:[%s517 + $0x28] sm:$0xff] %v2987
          %3004 = vst [vmem:[%s517 + $0x30] sm:$0xff] %v2988
          %3005 = vst [vmem:[%s517 + $0x38] sm:$0xff] %v2989
          %3006 = vst [vmem:[%s517 + $0x40] sm:$0xff] %v2990
          %3007 = vst [vmem:[%s517 + $0x48] sm:$0xff] %v2991
          %3008 = vst [vmem:[%s517 + $0x50] sm:$0xff] %v2992
          %3009 = vst [vmem:[%s517 + $0x58] sm:$0xff] %v2993
          %3010 = vst [vmem:[%s517 + $0x60] sm:$0xff] %v2994
          %3011 = vst [vmem:[%s517 + $0x68] sm:$0xff] %v2995
          %3012 = vst [vmem:[%s517 + $0x70] sm:$0xff] %v2996
          %3013 = vst [vmem:[%s517 + $0x78] sm:$0xff] %v2997
          %v3014 = vlaneseq
          %v3015 = vshrl.u32 %v3014, 7
          %v3016 = vsub.s32 0, %v3015
          %v3017 = vrot.slane %v2815, %v3016
          %v3018 = vlaneseq
          %v3019 = vshrl.u32 %v3018, 7
          %v3020 = vsub.s32 0, %v3019
          %v3021 = vrot.slane %v2822, %v3020
          %3022 = vset.pattern.permute.xlu0 0
          %3023 = vperm.xlu0 %3022, %v3017
          %v3024 = vpop.permute.xlu0 %3023
          %3026 = vset.pattern.permute.xlu0 0
          %3027 = vperm.xlu0 %3026, %v3021
          %v3028 = vpop.permute.xlu0 %3027
          %v3030 = vmul.f32 %v3024, %v2835
          %v3031 = vmul.f32 %v3024, %v2837
          %v3032 = vmul.f32 %v3024, %v2839
          %v3033 = vmul.f32 %v3024, %v2841
          %v3034 = vmul.f32 %v3024, %v2843
          %v3035 = vmul.f32 %v3024, %v2845
          %v3036 = vmul.f32 %v3024, %v2847
          %v3037 = vmul.f32 %v3024, %v2849
          %v3038 = vmul.f32 %v3024, %v2851
          %v3039 = vmul.f32 %v3024, %v2853
          %v3040 = vmul.f32 %v3024, %v2855
          %v3041 = vmul.f32 %v3024, %v2857
          %v3042 = vmul.f32 %v3024, %v2859
          %v3043 = vmul.f32 %v3024, %v2861
          %v3044 = vmul.f32 %v3024, %v2863
          %v3045 = vmul.f32 %v3024, %v2865
          %v3046 = vmul.f32 %v3028, %v2867
          %v3047 = vmul.f32 %v3028, %v2869
          %v3048 = vmul.f32 %v3028, %v2871
          %v3049 = vmul.f32 %v3028, %v2873
          %v3050 = vmul.f32 %v3028, %v2875
          %v3051 = vmul.f32 %v3028, %v2877
          %v3052 = vmul.f32 %v3028, %v2879
          %v3053 = vmul.f32 %v3028, %v2881
          %v3054 = vmul.f32 %v3028, %v2883
          %v3055 = vmul.f32 %v3028, %v2885
          %v3056 = vmul.f32 %v3028, %v2887
          %v3057 = vmul.f32 %v3028, %v2889
          %v3058 = vmul.f32 %v3028, %v2891
          %v3059 = vmul.f32 %v3028, %v2893
          %v3060 = vmul.f32 %v3028, %v2895
          %v3061 = vmul.f32 %v3028, %v2897
          %v3062 = vsel %vm2948, %v3030, 0.0
          %v3063 = vsel %vm2948, %v3031, 0.0
          %v3064 = vsel %vm2948, %v3032, 0.0
          %v3065 = vsel %vm2948, %v3033, 0.0
          %v3066 = vsel %vm2948, %v3034, 0.0
          %v3067 = vsel %vm2948, %v3035, 0.0
          %v3068 = vsel %vm2948, %v3036, 0.0
          %v3069 = vsel %vm2948, %v3037, 0.0
          %v3070 = vsel %vm2948, %v3038, 0.0
          %v3071 = vsel %vm2948, %v3039, 0.0
          %v3072 = vsel %vm2948, %v3040, 0.0
          %v3073 = vsel %vm2948, %v3041, 0.0
          %v3074 = vsel %vm2948, %v3042, 0.0
          %v3075 = vsel %vm2948, %v3043, 0.0
          %v3076 = vsel %vm2948, %v3044, 0.0
          %v3077 = vsel %vm2948, %v3045, 0.0
          %v3078 = vsel %vm2949, %v3046, 0.0
          %v3079 = vsel %vm2949, %v3047, 0.0
          %v3080 = vsel %vm2949, %v3048, 0.0
          %v3081 = vsel %vm2949, %v3049, 0.0
          %v3082 = vsel %vm2949, %v3050, 0.0
          %v3083 = vsel %vm2949, %v3051, 0.0
          %v3084 = vsel %vm2949, %v3052, 0.0
          %v3085 = vsel %vm2949, %v3053, 0.0
          %v3086 = vsel %vm2949, %v3054, 0.0
          %v3087 = vsel %vm2949, %v3055, 0.0
          %v3088 = vsel %vm2949, %v3056, 0.0
          %v3089 = vsel %vm2949, %v3057, 0.0
          %v3090 = vsel %vm2949, %v3058, 0.0
          %v3091 = vsel %vm2949, %v3059, 0.0
          %v3092 = vsel %vm2949, %v3060, 0.0
          %v3093 = vsel %vm2949, %v3061, 0.0
          %v3094 = vadd.f32 %v3062, %v3078
          %v3095 = vadd.f32 %v3063, %v3079
          %v3096 = vadd.f32 %v3064, %v3080
          %v3097 = vadd.f32 %v3065, %v3081
          %v3098 = vadd.f32 %v3066, %v3082
          %v3099 = vadd.f32 %v3067, %v3083
          %v3100 = vadd.f32 %v3068, %v3084
          %v3101 = vadd.f32 %v3069, %v3085
          %v3102 = vadd.f32 %v3070, %v3086
          %v3103 = vadd.f32 %v3071, %v3087
          %v3104 = vadd.f32 %v3072, %v3088
          %v3105 = vadd.f32 %v3073, %v3089
          %v3106 = vadd.f32 %v3074, %v3090
          %v3107 = vadd.f32 %v3075, %v3091
          %v3108 = vadd.f32 %v3076, %v3092
          %v3109 = vadd.f32 %v3077, %v3093
          %3110 = vst [vmem:[%s524] sm:$0xff] %v3094
          %3111 = vst [vmem:[%s524 + $0x8] sm:$0xff] %v3095
          %3112 = vst [vmem:[%s524 + $0x10] sm:$0xff] %v3096
          %3113 = vst [vmem:[%s524 + $0x18] sm:$0xff] %v3097
          %3114 = vst [vmem:[%s524 + $0x20] sm:$0xff] %v3098
          %3115 = vst [vmem:[%s524 + $0x28] sm:$0xff] %v3099
          %3116 = vst [vmem:[%s524 + $0x30] sm:$0xff] %v3100
          %3117 = vst [vmem:[%s524 + $0x38] sm:$0xff] %v3101
          %3118 = vst [vmem:[%s524 + $0x40] sm:$0xff] %v3102
          %3119 = vst [vmem:[%s524 + $0x48] sm:$0xff] %v3103
          %3120 = vst [vmem:[%s524 + $0x50] sm:$0xff] %v3104
          %3121 = vst [vmem:[%s524 + $0x58] sm:$0xff] %v3105
          %3122 = vst [vmem:[%s524 + $0x60] sm:$0xff] %v3106
          %3123 = vst [vmem:[%s524 + $0x68] sm:$0xff] %v3107
          %3124 = vst [vmem:[%s524 + $0x70] sm:$0xff] %v3108
          %3125 = vst [vmem:[%s524 + $0x78] sm:$0xff] %v3109
        $region76: #{tpu_custom_call.1} parent=51 // pred_fallthru
          _
        %s3126 = sand.u32 %s251, 1
        %s3127 = scalar_lea.sflag [#allocation10], %s3126
        %s3128 = sand.u32 %s251, 1
        %s3129 = smul.addr %s3128, 128
        %s3130 = scalar_lea.vmem [#allocation16], %s3129
        %s3131 = sand.u32 %s279, 1
        %s3132 = scalar_lea.sflag [#allocation18], %s3131
        %s3133 = sand.u32 %s279, 1
        %s3134 = smul.addr %s3133, 128
        %s3135 = scalar_lea.vmem [#allocation17], %s3134
        // Predicated region
        $region77: #{tpu_custom_call.1} parent=51 // pred_check
          %p3136 = pneg %p261
        $region78: #{tpu_custom_call.1} parent=51 // pred_check_branch
          %3138 = sbr.rel (%p3136) target = $region80
        $region79: #{tpu_custom_call.1} parent=51 // pred_region
          %s3139 = sld [smem:[#allocation5 + %s42]]
          %s3141 = ssub.s32 2048, 2048
          %3142 = vsyncadd %s3127, %s3141
          %s3143 = smul.addr %s3139, 128
          %s3144 = scalar_lea.hbm %s11, %s3143
          %s3145 = sshll.u32 %s3130, 4
          %s3146 = int_to_ptr.vmem [resolvable:$true] %s3145
          %3151 = dma.vmem_to_hbm [thread:$0]  %s3146, 2048, %s3144, %s3127, 128, 256, 8
        $region80: #{tpu_custom_call.1} parent=51 // pred_fallthru
          _
        // Predicated region
        $region81: #{tpu_custom_call.1} parent=51 // pred_check
          %p3152 = pneg %p289
        $region82: #{tpu_custom_call.1} parent=51 // pred_check_branch
          %3154 = sbr.rel (%p3152) target = $region84
        $region83: #{tpu_custom_call.1} parent=51 // pred_region
          %s3155 = sld [smem:[#allocation5 + %s42]]
          %s3157 = ssub.s32 2048, 2048
          %3158 = vsyncadd %s3132, %s3157
          %s3159 = smul.addr %s3155, 128
          %s3160 = scalar_lea.hbm %s12, %s3159
          %s3161 = sshll.u32 %s3135, 4
          %s3162 = int_to_ptr.vmem [resolvable:$true] %s3161
          %3167 = dma.vmem_to_hbm [thread:$0]  %s3162, 2048, %s3160, %s3132, 128, 256, 8
        $region84: #{tpu_custom_call.1} parent=51 // pred_fallthru
          _
      $region52: #{tpu_custom_call.1} parent=5 // pred_fallthru
        _
      %p3168 = scmp.le.s32.totalorder 2, %s37
      // Predicated region
      $region85: #{tpu_custom_call.1} parent=5 // pred_check
        %p3169 = pneg %p3168
      $region86: #{tpu_custom_call.1} parent=5 // pred_check_branch
        %3171 = sbr.rel (%p3169) target = $region88
      $region87: #{tpu_custom_call.1} parent=5 // pred_region
        %s3172 = ssub.s32 %s37, 2
        // Predicated region
        $region89: #{tpu_custom_call.1} parent=87 // pred_check
          %p3173 = pneg %p267
        $region90: #{tpu_custom_call.1} parent=87 // pred_check_branch
          %3175 = sbr.rel (%p3173) target = $region92
        $region91: #{tpu_custom_call.1} parent=87 // pred_region
          %s3176 = sand.u32 %s252, 1
          %s3177 = scalar_lea.sflag [#allocation10], %s3176
          %s3178 = sand.u32 %s252, 1
          %s3179 = smul.addr %s3178, 128
          %s3180 = scalar_lea.vmem [#allocation16], %s3179
          %3181 = dma.done %s3177, 2048
        $region92: #{tpu_custom_call.1} parent=87 // pred_fallthru
          _
        // Predicated region
        $region93: #{tpu_custom_call.1} parent=87 // pred_check
          %p3182 = pneg %p295
        $region94: #{tpu_custom_call.1} parent=87 // pred_check_branch
          %3184 = sbr.rel (%p3182) target = $region96
        $region95: #{tpu_custom_call.1} parent=87 // pred_region
          %s3185 = sand.u32 %s280, 1
          %s3186 = scalar_lea.sflag [#allocation18], %s3185
          %s3187 = sand.u32 %s280, 1
          %s3188 = smul.addr %s3187, 128
          %s3189 = scalar_lea.vmem [#allocation17], %s3188
          %3190 = dma.done %s3186, 2048
        $region96: #{tpu_custom_call.1} parent=87 // pred_fallthru
          _
      $region88: #{tpu_custom_call.1} parent=5 // pred_fallthru
        _
    $region6: #{tpu_custom_call.1} parent=1 // loop_footer
      %s41 = sadd.s32 1, %s37
    $region7: #{tpu_custom_call.1} parent=1 // loop_footer_branch
      %36 = sbr.rel target = $region3
    $region8: #{tpu_custom_call.1} parent=1 // loop_exit
      _
    %3191 = vsyncpa [#allocation9], 1
    %s3192 = scalar_lea.sflag [#allocation9], 1
    %3193 = vsyncpa %s3192, 1
    %3194 = vsyncpa [#allocation12], 1
    %3195 = vsyncpa [#allocation10], 1
    %s3196 = scalar_lea.sflag [#allocation10], 1
    %3197 = vsyncpa %s3196, 1
    %3198 = vsyncpa [#allocation18], 1
    %s3199 = scalar_lea.sflag [#allocation18], 1
    %3200 = vsyncpa %s3199, 1

</llo_original>
